<compile_context>
chip_gen: v6e
topology: v6e:2x2x1
jax: 0.10.0
libtpu: 0.0.40
codegen_flags: <defaults>
</compile_context>

<pallas_src>
import functools

import numpy as np
import jax
import jax.numpy as jnp
from jax.experimental import pallas as pl
from jax.experimental.pallas import tpu as pltpu

N_LAYERS = 4


# ----------------------------------------------------------------------------
# Fused ObjProjector kernel: rel stack -> glue -> obj stack -> all stack
# (one batch element per grid step; all weights VMEM-resident)
# ----------------------------------------------------------------------------
def _fused_projector_kernel(alpha_ref, xr_ref, xo_ref, ht_ref, *refs,
                            modes, couts, pad_lanes):
    """refs layout: 3 stacks x [M x4, W x4, bias x4] (36 refs), then out_ref."""
    nl = N_LAYERS
    o_ref = refs[9 * nl]

    def run_stack(x_in, s):
        base = s * 3 * nl
        m_refs = refs[base:base + nl]
        w_refs = refs[base + nl:base + 2 * nl]
        b_refs = refs[base + 2 * nl:base + 3 * nl]
        x = x_in                                            # f32 (C, TV)
        for l in range(nl):
            a = alpha_ref[s, l]                             # PReLU alpha (SMEM scalar)
            mat = m_refs[l][...]                            # (TV, TV) bf16 graph-conv mix
            w = w_refs[l][...]                              # merged tcn+res conv, bf16
            bias = b_refs[l][...]                           # (Cout, TV) f32, lane-dense
            if modes[l] == "gcn_first":                     # Cin <= Cout
                g = jnp.dot(x.astype(jnp.bfloat16), mat,
                            preferred_element_type=jnp.float32)
                cat = jnp.concatenate([g, x], axis=0).astype(jnp.bfloat16)
                z = jnp.dot(w, cat, preferred_element_type=jnp.float32) + bias
            else:                                           # Cout < Cin: conv first
                h = jnp.dot(w, x.astype(jnp.bfloat16),
                            preferred_element_type=jnp.float32)
                co = couts[l]
                g = jnp.dot(h[:co].astype(jnp.bfloat16), mat,
                            preferred_element_type=jnp.float32)
                z = g + h[co:] + bias
            x = jnp.where(z >= 0.0, z, a * z)               # PReLU (f32 epilogue)
        return x_in + x                                     # fused outer residual

    # --- relative branch (TV = 128 lanes) ---
    x_rel_in = xr_ref[...]
    rel_out = run_stack(x_rel_in, 0)
    # obj_multi: human_trans pre-padded to 9 channels (rows 0..5 zero) in the wrapper
    obj_multi = rel_out + ht_ref[...]

    # --- absolute object branch (single node, TV = 8 lanes) ---
    obj_out = run_stack(xo_ref[...], 1)

    # --- joint branch over all nodes, v-major layout: [obj | multi | zero pad] ---
    pieces = [obj_out, obj_multi]
    if pad_lanes > 0:
        pieces.append(jnp.zeros((x_rel_in.shape[0], pad_lanes), jnp.float32))
    x_all_in = jnp.concatenate(pieces, axis=1)              # (C, TV_all_pad)
    o_ref[...] = run_stack(x_all_in, 2)


def fused_projector_pallas(x_rel, x_obj, ht9, params):
    """x_rel: (B,9,P*n_pre); x_obj: (B,9,n_pre); ht9: (B,9,P*n_pre) (rows 0..5 zero).

    Returns (B, 9, TV_all_pad) = x_all + all_stack(x_all), padded nodes included."""
    B, C, tv_rel = x_rel.shape
    tv_obj = x_obj.shape[2]
    tv_all = params["all"][0]["M"].shape[0]

    alphas = jnp.stack([jnp.stack([L["alpha"] for L in params[k]])
                        for k in ("rel", "obj", "all")]).astype(jnp.float32)  # (3,4)

    inputs = [alphas, x_rel, x_obj, ht9]
    in_specs = [
        pl.BlockSpec(memory_space=pltpu.MemorySpace.SMEM),
        pl.BlockSpec((None, C, tv_rel), lambda b: (b, 0, 0)),
        pl.BlockSpec((None, C, tv_obj), lambda b: (b, 0, 0)),
        pl.BlockSpec((None, C, tv_rel), lambda b: (b, 0, 0)),
    ]
    for sname in ("rel", "obj", "all"):
        for key in ("M", "W", "bias"):
            for L in params[sname]:
                arr = L[key]
                inputs.append(arr)
                # constant index_map -> parameters stay VMEM-resident across the batch grid
                in_specs.append(pl.BlockSpec(arr.shape, lambda b: (0, 0)))

    modes = tuple(L["mode"] for L in params["rel"])
    couts = tuple(L["cout"] for L in params["rel"])
    kernel = functools.partial(_fused_projector_kernel, modes=modes, couts=couts,
                               pad_lanes=tv_all - tv_obj - tv_rel)
    return pl.pallas_call(
        kernel,
        out_shape=jax.ShapeDtypeStruct((B, C, tv_all), jnp.float32),
        grid=(B,),
        in_specs=in_specs,
        out_specs=pl.BlockSpec((None, C, tv_all), lambda b: (b, 0, 0)),
        compiler_params=pltpu.CompilerParams(dimension_semantics=("parallel",)),
    )(*inputs)


def fused_projector_reference(x_rel, x_obj, ht9, params):
    """Plain-JAX f32 reference of the fused kernel (unmerged convs, unpadded)."""
    def stack_ref(x, layers):
        x_in = x
        for L in layers:
            g = jnp.einsum('bct,ts->bcs', x, L["M_ref"])
            z = (jnp.einsum('oc,bct->bot', L["w_ref"], g)
                 + jnp.einsum('oc,bct->bot', L["wres_ref"], x)
                 + L["b_ref"][None])
            x = jnp.where(z >= 0.0, z, L["alpha"] * z)
        return x_in + x

    rel_out = stack_ref(x_rel, params["rel"])
    obj_multi = rel_out + ht9
    obj_out = stack_ref(x_obj, params["obj"])
    x_all = jnp.concatenate([obj_out, obj_multi], axis=2)
    return stack_ref(x_all, params["all"])


# ----------------------------------------------------------------------------
# Mixing-operator precompute (wrapper-side; the operator is a parameter)
# ----------------------------------------------------------------------------
def build_mix_operator(T, A, version, v_pad=None):
    """Fold per-node temporal mix T (V,Tn,Tn) and per-step spatial mix A (Tn,V,V) into
    one (V*Tn, V*Tn) operator acting on activations flattened v-major (idx = v*Tn + t).
    Optional zero-padding of the node axis to v_pad (pad rows/cols of M are zero)."""
    Tn, V = A.shape[0], A.shape[1]
    if v_pad is not None and v_pad > V:
        A = jnp.pad(A, ((0, 0), (0, v_pad - V), (0, v_pad - V)))
        if T is not None:
            T = jnp.pad(T, ((0, v_pad - V), (0, 0), (0, 0)))
        V = v_pad
    eye_t = jnp.eye(Tn, dtype=A.dtype)
    # m_a[(v,t),(w,s)] = A[t,v,w] * delta_{t,s}   (spatial mix per time step)
    m_a = jnp.einsum('tvw,ts->vtws', A, eye_t).reshape(V * Tn, V * Tn)
    if version == 0:
        eye_v = jnp.eye(V, dtype=T.dtype)
        # m_t[(v,a),(w,b)] = T[v,a,b] * delta_{v,w} (temporal mix per node)
        m_t = jnp.einsum('vab,vw->vawb', T, eye_v).reshape(V * Tn, V * Tn)
        return jnp.dot(m_t, m_a)            # temporal first, then spatial
    return m_a


# ----------------------------------------------------------------------------
# Rotation helpers / DCT (plain JAX glue)
# ----------------------------------------------------------------------------
def axis_angle_to_matrix(aa):
    """Rodrigues. aa: (..., 3) -> (..., 3, 3)."""
    angle = jnp.linalg.norm(aa, axis=-1, keepdims=True)
    axis = aa / jnp.maximum(angle, 1e-8)
    x, y, z = axis[..., 0], axis[..., 1], axis[..., 2]
    a = angle[..., 0]
    c, s = jnp.cos(a), jnp.sin(a)
    C = 1.0 - c
    row0 = jnp.stack([c + x * x * C, x * y * C - z * s, x * z * C + y * s], axis=-1)
    row1 = jnp.stack([y * x * C + z * s, c + y * y * C, y * z * C - x * s], axis=-1)
    row2 = jnp.stack([z * x * C - y * s, z * y * C + x * s, c + z * z * C], axis=-1)
    return jnp.stack([row0, row1, row2], axis=-2)


def matrix_to_rotation_6d(R):
    """First two rows of R, flattened. R: (..., 3, 3) -> (..., 6)."""
    return R[..., :2, :].reshape(R.shape[:-2] + (6,))


def get_dct_matrix(N):
    dct_m = np.eye(N)
    for k in range(N):
        for i in range(N):
            w = np.sqrt(2.0 / N)
            if k == 0:
                w = np.sqrt(1.0 / N)
            dct_m[k, i] = w * np.cos(np.pi * (i + 0.5) * k / N)
    idct_m = np.linalg.inv(dct_m)
    return jnp.asarray(dct_m, jnp.float32), jnp.asarray(idct_m, jnp.float32)


# ----------------------------------------------------------------------------
# Parameter initialization (deterministic, synthetic; BN eval stats folded)
# ----------------------------------------------------------------------------
def init_st_gcnn(key, cin, cout, tn, v, version, v_pad=None):
    ks = jax.random.split(key, 6)
    bn_scale = jnp.float32(1.0 / np.sqrt(1.0 + 1e-5))  # BN eval: mean 0, var 1, gamma 1
    if version == 0:
        stdv_t = 1.0 / np.sqrt(tn)
        T = jax.random.uniform(ks[0], (v, tn, tn), jnp.float32, -stdv_t, stdv_t)
    else:
        T = None
    stdv_a = 1.0 / np.sqrt(v)
    A = jax.random.uniform(ks[1], (tn, v, v), jnp.float32, -stdv_a, stdv_a)
    stdv_w = 1.0 / np.sqrt(cin)
    w = jax.random.uniform(ks[2], (cout, cin), jnp.float32, -stdv_w, stdv_w) * bn_scale
    b = jax.random.uniform(ks[3], (cout, 1), jnp.float32, -stdv_w, stdv_w) * bn_scale
    wres = jax.random.uniform(ks[4], (cout, cin), jnp.float32, -stdv_w, stdv_w) * bn_scale
    bres = jax.random.uniform(ks[5], (cout, 1), jnp.float32, -stdv_w, stdv_w) * bn_scale

    M_pad = build_mix_operator(T, A, version, v_pad)       # (tv_pad, tv_pad) f32
    M_ref = build_mix_operator(T, A, version, None)        # (tv, tv) f32, unpadded
    tv_pad = M_pad.shape[0]
    bias = b + bres                                        # combined tcn + residual bias
    mode = "gcn_first" if cin <= cout else "conv_first"
    if mode == "gcn_first":
        W = jnp.concatenate([w, wres], axis=1)             # (cout, 2*cin)
    else:
        W = jnp.concatenate([w, wres], axis=0)             # (2*cout, cin)
    return {
        # kernel parameters (bf16 MXU operands, lane-dense f32 bias)
        "M": M_pad.astype(jnp.bfloat16),
        "W": W.astype(jnp.bfloat16),
        "bias": jnp.broadcast_to(bias, (cout, tv_pad)).astype(jnp.float32),
        "alpha": jnp.asarray(0.25, jnp.float32),           # PReLU
        "mode": mode,
        "cout": cout,
        # f32 unfused reference copies (validation only)
        "M_ref": M_ref, "w_ref": w, "wres_ref": wres, "b_ref": bias,
    }


def init_obj_projector(key, args):
    n_pre = args.dct
    P = args.num_verts
    chans = [(9, 32), (32, 16), (16, 32), (32, 9)]
    keys = jax.random.split(key, 12)

    v_all = P + 1
    tv_all = v_all * n_pre
    tv_all_pad = ((tv_all + 127) // 128) * 128             # lane-dense padding target
    v_all_pad = tv_all_pad // n_pre if tv_all_pad % n_pre == 0 else v_all

    params = {
        "rel": [init_st_gcnn(keys[i], ci, co, n_pre, P, 0)
                for i, (ci, co) in enumerate(chans)],
        "obj": [init_st_gcnn(keys[4 + i], ci, co, n_pre, 1, 0)
                for i, (ci, co) in enumerate(chans)],
        "all": [init_st_gcnn(keys[8 + i], ci, co, n_pre, v_all, 2, v_pad=v_all_pad)
                for i, (ci, co) in enumerate(chans)],
    }
    dct_m, idct_m = get_dct_matrix(args.past_len + args.future_len)
    params["dct_m"] = dct_m
    params["idct_m"] = idct_m
    return params


# ----------------------------------------------------------------------------
# ObjProjector forward / sample
# ----------------------------------------------------------------------------
def sample(params, args, obj_angles, obj_trans, human_verts, contact, initialize):
    n_pre = args.dct
    Tlen, B = obj_angles.shape[0], obj_angles.shape[1]
    P = human_verts.shape[2]
    C = 9

    hv3 = human_verts[:, :, :, :3]                                     # (T,B,P,3)
    dct_m = params["dct_m"][:n_pre]                                    # (n_pre, T)
    idct_m = params["idct_m"][:, :n_pre]                               # (T, n_pre)
    idx_pad = jnp.array(list(range(args.past_len)) +
                        [args.past_len - 1] * args.future_len)

    # --- relative object features -> DCT (plain einsum: tiny matmuls) ---
    obj_trans_rel = obj_trans[:, :, None, :] - hv3                     # (T,B,P,3)
    ang_rep = jnp.broadcast_to(obj_angles[:, :, None, :], (Tlen, B, P, 6))
    obj_rel = jnp.concatenate([ang_rep, obj_trans_rel], axis=3)[idx_pad]   # (T,B,P,9)

    obj_rel_flat = jnp.transpose(obj_rel, (1, 0, 3, 2)).reshape(B, Tlen, C * P)
    obj_rel_d = jnp.einsum('rk,bkf->brf', dct_m, obj_rel_flat)         # (B,n_pre,C*P)
    # v-major flattening (node-major / time-minor): (B,C,P,n_pre) -> (B,C,P*n_pre)
    obj_rel_d = jnp.transpose(obj_rel_d.reshape(B, n_pre, C, P), (0, 2, 3, 1))
    x_rel = obj_rel_d.reshape(B, C, P * n_pre)

    # --- human translation, same v-major layout, zero-padded to 9 channels ---
    human_trans = jnp.transpose(hv3, (1, 0, 3, 2)).reshape(B, Tlen, 3 * P)
    human_trans = jnp.einsum('rk,bkf->brf', dct_m, human_trans)        # (B,n_pre,3*P)
    human_trans = jnp.transpose(human_trans.reshape(B, n_pre, 3, P), (0, 2, 3, 1))
    ht9 = jnp.concatenate(
        [jnp.zeros((B, 6, P * n_pre), jnp.float32),
         human_trans.reshape(B, 3, P * n_pre)], axis=1)                # (B,9,P*n_pre)

    # --- absolute object features (single node) ---
    obj_gt = jnp.concatenate([obj_angles, obj_trans], axis=2)          # (T,B,9)
    obj = jnp.transpose(obj_gt[idx_pad], (1, 0, 2))                    # (B,T,9)
    obj = jnp.einsum('rk,bkf->brf', dct_m, obj)                        # (B,n_pre,9)
    x_obj = jnp.transpose(obj, (0, 2, 1))                              # (B,9,n_pre)

    # --- one fused Pallas call: rel stack -> glue -> obj stack -> all stack ---
    out = fused_projector_pallas(x_rel, x_obj, ht9, params)            # (B,9,V_pad*n_pre)

    v_pad = out.shape[2] // n_pre
    obj_all = out.reshape(B, C, v_pad, n_pre)[:, :, :P + 1, :]         # drop padded nodes
    obj_all = jnp.transpose(obj_all, (0, 1, 3, 2))                     # (B,C,n_pre,P+1)

    # --- IDCT ---
    obj_flat = jnp.transpose(obj_all, (0, 2, 1, 3)).reshape(B, n_pre, C * (P + 1))
    results = jnp.einsum('tr,brf->btf', idct_m, obj_flat)              # (B,T,9*(P+1))
    results = jnp.transpose(results.reshape(B, Tlen, C, P + 1), (1, 0, 3, 2))  # (T,B,P+1,9)
    results = results[:, :, :, :9]

    if initialize:
        final_results = jnp.mean(results, axis=2)                      # (T,B,9)
    else:
        # Eval-mode branch (argmax); training-mode torch.multinomial is stochastic.
        # TODO(synk): marker2bodypart hand-marker ids (+0.5 bump) come from external
        # data and are not available in-script; bump is omitted.
        csum = jnp.sum(contact, axis=1)                                # (B,)
        no_contact = csum == 0
        idx = jnp.argmax(contact, axis=1)                              # (B,)
        results_contact = results[:, :, 1:, :]                         # (T,B,P,9)
        gather_idx = jnp.broadcast_to(idx[None, :, None, None], (Tlen, B, 1, 9))
        gathered = jnp.take_along_axis(results_contact, gather_idx, axis=2)[:, :, 0, :]
        final_results = jnp.where(no_contact[None, :, None],
                                  results[:, :, 0, :], gathered)
    return final_results


def obj_projector_forward(params, args, obj_angles_aa, obj_trans, markers,
                          initialize=False):
    """obj_angles_aa: (T,B,3) axis-angle; obj_trans: (T,B,3); markers: (T,B,P,7)."""
    obj_angles = matrix_to_rotation_6d(axis_angle_to_matrix(obj_angles_aa))  # (T,B,6)
    human_verts = markers.astype(jnp.float32)
    contact = jnp.sum(human_verts[args.past_len:, :, :, 6], axis=0)          # (B,P)
    final_results = sample(params, args, obj_angles, obj_trans.astype(jnp.float32),
                           human_verts, contact, initialize)
    obj_gt = jnp.concatenate([obj_angles, obj_trans.astype(jnp.float32)], axis=2)
    return final_results, obj_gt


# ----------------------------------------------------------------------------
# Main
# ----------------------------------------------------------------------------
if __name__ == "__main__":
    class Args:
        pass

    args = Args()
    args.embedding_dim = 32   # unused by these layers (channels hard-coded 9/32/16)
    args.dct = 8              # n_pre
    args.num_verts = 16
    args.dropout = 0.1        # eval mode -> identity
    args.past_len = 4
    args.future_len = 4

    Tlen = args.past_len + args.future_len
    B, P = 2, args.num_verts

    key = jax.random.PRNGKey(0)
    k1, k2, k3, kp = jax.random.split(key, 4)
    obj_angles_aa = jax.random.normal(k1, (Tlen, B, 3), jnp.float32)
    obj_trans = jax.random.normal(k2, (Tlen, B, 3), jnp.float32)
    markers = jax.random.normal(k3, (Tlen, B, P, 7), jnp.float32)

    params = init_obj_projector(kp, args)

    # --- numerics sanity check: fused bf16 Pallas kernel vs unfused f32 JAX reference ---
    kr1, kr2, kr3 = jax.random.split(jax.random.PRNGKey(1), 3)
    x_rel_t = jax.random.normal(kr1, (B, 9, P * args.dct), jnp.float32)
    x_obj_t = jax.random.normal(kr2, (B, 9, args.dct), jnp.float32)
    ht_t = jax.random.normal(kr3, (B, 3, P * args.dct), jnp.float32)
    ht9_t = jnp.concatenate([jnp.zeros((B, 6, P * args.dct), jnp.float32), ht_t], axis=1)

    out_t = fused_projector_pallas(x_rel_t, x_obj_t, ht9_t, params)
    ref_t = fused_projector_reference(x_rel_t, x_obj_t, ht9_t, params)
    jax.block_until_ready(out_t)
    tv_real = ref_t.shape[2]
    diff = float(jnp.max(jnp.abs(out_t[:, :, :tv_real] - ref_t)))
    scale = 1.0 + float(jnp.max(jnp.abs(ref_t)))
    # loose tolerance: bf16 MXU operands vs f32 reference (intentional trade-off)
    assert diff < 7.5e-2 * scale, (diff, scale)

    # --- full forward ---
    final_results, obj_gt = obj_projector_forward(
        params, args, obj_angles_aa, obj_trans, markers, initialize=True)

    jax.block_until_ready(final_results)
    jax.block_until_ready(obj_gt)

    assert final_results.shape == (Tlen, B, 9), final_results.shape
    assert obj_gt.shape == (Tlen, B, 9), obj_gt.shape
    assert bool(jnp.all(jnp.isfinite(final_results)))
    print("KERNEL_OK")
</pallas_src>

<mosaic_0001>
module attributes {stable_mosaic.version = 11 : i64} {
  func.func @_fused_projector_kernel(%arg0: i32, %arg1: memref<3x4xf32, #tpu.memory_space<smem>>, %arg2: memref<1x9x128xf32, #tpu.memory_space<vmem>>, %arg3: memref<1x9x8xf32, #tpu.memory_space<vmem>>, %arg4: memref<1x9x128xf32, #tpu.memory_space<vmem>>, %arg5: memref<128x128xbf16, #tpu.memory_space<vmem>>, %arg6: memref<128x128xbf16, #tpu.memory_space<vmem>>, %arg7: memref<128x128xbf16, #tpu.memory_space<vmem>>, %arg8: memref<128x128xbf16, #tpu.memory_space<vmem>>, %arg9: memref<32x18xbf16, #tpu.memory_space<vmem>>, %arg10: memref<32x32xbf16, #tpu.memory_space<vmem>>, %arg11: memref<32x32xbf16, #tpu.memory_space<vmem>>, %arg12: memref<18x32xbf16, #tpu.memory_space<vmem>>, %arg13: memref<32x128xf32, #tpu.memory_space<vmem>>, %arg14: memref<16x128xf32, #tpu.memory_space<vmem>>, %arg15: memref<32x128xf32, #tpu.memory_space<vmem>>, %arg16: memref<9x128xf32, #tpu.memory_space<vmem>>, %arg17: memref<8x8xbf16, #tpu.memory_space<vmem>>, %arg18: memref<8x8xbf16, #tpu.memory_space<vmem>>, %arg19: memref<8x8xbf16, #tpu.memory_space<vmem>>, %arg20: memref<8x8xbf16, #tpu.memory_space<vmem>>, %arg21: memref<32x18xbf16, #tpu.memory_space<vmem>>, %arg22: memref<32x32xbf16, #tpu.memory_space<vmem>>, %arg23: memref<32x32xbf16, #tpu.memory_space<vmem>>, %arg24: memref<18x32xbf16, #tpu.memory_space<vmem>>, %arg25: memref<32x8xf32, #tpu.memory_space<vmem>>, %arg26: memref<16x8xf32, #tpu.memory_space<vmem>>, %arg27: memref<32x8xf32, #tpu.memory_space<vmem>>, %arg28: memref<9x8xf32, #tpu.memory_space<vmem>>, %arg29: memref<256x256xbf16, #tpu.memory_space<vmem>>, %arg30: memref<256x256xbf16, #tpu.memory_space<vmem>>, %arg31: memref<256x256xbf16, #tpu.memory_space<vmem>>, %arg32: memref<256x256xbf16, #tpu.memory_space<vmem>>, %arg33: memref<32x18xbf16, #tpu.memory_space<vmem>>, %arg34: memref<32x32xbf16, #tpu.memory_space<vmem>>, %arg35: memref<32x32xbf16, #tpu.memory_space<vmem>>, %arg36: memref<18x32xbf16, #tpu.memory_space<vmem>>, %arg37: memref<32x256xf32, #tpu.memory_space<vmem>>, %arg38: memref<16x256xf32, #tpu.memory_space<vmem>>, %arg39: memref<32x256xf32, #tpu.memory_space<vmem>>, %arg40: memref<9x256xf32, #tpu.memory_space<vmem>>, %arg41: memref<1x9x256xf32, #tpu.memory_space<vmem>>) attributes {dimension_semantics = [#tpu.dimension_semantics<parallel>], iteration_bounds = array<i64: 2>, scalar_prefetch = 0 : i64, scratch_operands = 0 : i64, tpu.core_type = #tpu.core_type<tc>, window_params = [{transform_indices = @transform_0, window_bounds = array<i64: 3, 4>}, {transform_indices = @transform_1, window_bounds = array<i64: 1, 9, 128>}, {transform_indices = @transform_2, window_bounds = array<i64: 1, 9, 8>}, {transform_indices = @transform_3, window_bounds = array<i64: 1, 9, 128>}, {pipeline_mode = #tpu.pipeline_mode<synchronous>, transform_indices = @transform_4, window_bounds = array<i64: 128, 128>}, {pipeline_mode = #tpu.pipeline_mode<synchronous>, transform_indices = @transform_5, window_bounds = array<i64: 128, 128>}, {pipeline_mode = #tpu.pipeline_mode<synchronous>, transform_indices = @transform_6, window_bounds = array<i64: 128, 128>}, {pipeline_mode = #tpu.pipeline_mode<synchronous>, transform_indices = @transform_7, window_bounds = array<i64: 128, 128>}, {pipeline_mode = #tpu.pipeline_mode<synchronous>, transform_indices = @transform_8, window_bounds = array<i64: 32, 18>}, {pipeline_mode = #tpu.pipeline_mode<synchronous>, transform_indices = @transform_9, window_bounds = array<i64: 32, 32>}, {pipeline_mode = #tpu.pipeline_mode<synchronous>, transform_indices = @transform_10, window_bounds = array<i64: 32, 32>}, {pipeline_mode = #tpu.pipeline_mode<synchronous>, transform_indices = @transform_11, window_bounds = array<i64: 18, 32>}, {pipeline_mode = #tpu.pipeline_mode<synchronous>, transform_indices = @transform_12, window_bounds = array<i64: 32, 128>}, {pipeline_mode = #tpu.pipeline_mode<synchronous>, transform_indices = @transform_13, window_bounds = array<i64: 16, 128>}, {pipeline_mode = #tpu.pipeline_mode<synchronous>, transform_indices = @transform_14, window_bounds = array<i64: 32, 128>}, {pipeline_mode = #tpu.pipeline_mode<synchronous>, transform_indices = @transform_15, window_bounds = array<i64: 9, 128>}, {pipeline_mode = #tpu.pipeline_mode<synchronous>, transform_indices = @transform_16, window_bounds = array<i64: 8, 8>}, {pipeline_mode = #tpu.pipeline_mode<synchronous>, transform_indices = @transform_17, window_bounds = array<i64: 8, 8>}, {pipeline_mode = #tpu.pipeline_mode<synchronous>, transform_indices = @transform_18, window_bounds = array<i64: 8, 8>}, {pipeline_mode = #tpu.pipeline_mode<synchronous>, transform_indices = @transform_19, window_bounds = array<i64: 8, 8>}, {pipeline_mode = #tpu.pipeline_mode<synchronous>, transform_indices = @transform_20, window_bounds = array<i64: 32, 18>}, {pipeline_mode = #tpu.pipeline_mode<synchronous>, transform_indices = @transform_21, window_bounds = array<i64: 32, 32>}, {pipeline_mode = #tpu.pipeline_mode<synchronous>, transform_indices = @transform_22, window_bounds = array<i64: 32, 32>}, {pipeline_mode = #tpu.pipeline_mode<synchronous>, transform_indices = @transform_23, window_bounds = array<i64: 18, 32>}, {pipeline_mode = #tpu.pipeline_mode<synchronous>, transform_indices = @transform_24, window_bounds = array<i64: 32, 8>}, {pipeline_mode = #tpu.pipeline_mode<synchronous>, transform_indices = @transform_25, window_bounds = array<i64: 16, 8>}, {pipeline_mode = #tpu.pipeline_mode<synchronous>, transform_indices = @transform_26, window_bounds = array<i64: 32, 8>}, {pipeline_mode = #tpu.pipeline_mode<synchronous>, transform_indices = @transform_27, window_bounds = array<i64: 9, 8>}, {pipeline_mode = #tpu.pipeline_mode<synchronous>, transform_indices = @transform_28, window_bounds = array<i64: 256, 256>}, {pipeline_mode = #tpu.pipeline_mode<synchronous>, transform_indices = @transform_29, window_bounds = array<i64: 256, 256>}, {pipeline_mode = #tpu.pipeline_mode<synchronous>, transform_indices = @transform_30, window_bounds = array<i64: 256, 256>}, {pipeline_mode = #tpu.pipeline_mode<synchronous>, transform_indices = @transform_31, window_bounds = array<i64: 256, 256>}, {pipeline_mode = #tpu.pipeline_mode<synchronous>, transform_indices = @transform_32, window_bounds = array<i64: 32, 18>}, {pipeline_mode = #tpu.pipeline_mode<synchronous>, transform_indices = @transform_33, window_bounds = array<i64: 32, 32>}, {pipeline_mode = #tpu.pipeline_mode<synchronous>, transform_indices = @transform_34, window_bounds = array<i64: 32, 32>}, {pipeline_mode = #tpu.pipeline_mode<synchronous>, transform_indices = @transform_35, window_bounds = array<i64: 18, 32>}, {pipeline_mode = #tpu.pipeline_mode<synchronous>, transform_indices = @transform_36, window_bounds = array<i64: 32, 256>}, {pipeline_mode = #tpu.pipeline_mode<synchronous>, transform_indices = @transform_37, window_bounds = array<i64: 16, 256>}, {pipeline_mode = #tpu.pipeline_mode<synchronous>, transform_indices = @transform_38, window_bounds = array<i64: 32, 256>}, {pipeline_mode = #tpu.pipeline_mode<synchronous>, transform_indices = @transform_39, window_bounds = array<i64: 9, 256>}, {transform_indices = @transform_40, window_bounds = array<i64: 1, 9, 256>}]} {
    %c0 = arith.constant 0 : index
    %c0_0 = arith.constant 0 : index
    %c0_1 = arith.constant 0 : index
    %0 = vector.load %arg2[%c0, %c0_0, %c0_1] : memref<1x9x128xf32, #tpu.memory_space<vmem>>, vector<1x9x128xf32>
    %1 = vector.shape_cast %0 : vector<1x9x128xf32> to vector<9x128xf32>
    %c0_2 = arith.constant 0 : index
    %c0_3 = arith.constant 0 : index
    %2 = memref.load %arg1[%c0_2, %c0_3] : memref<3x4xf32, #tpu.memory_space<smem>>
    %c0_4 = arith.constant 0 : index
    %c0_5 = arith.constant 0 : index
    %3 = vector.load %arg5[%c0_4, %c0_5] : memref<128x128xbf16, #tpu.memory_space<vmem>>, vector<128x128xbf16>
    %c0_6 = arith.constant 0 : index
    %c0_7 = arith.constant 0 : index
    %4 = vector.load %arg9[%c0_6, %c0_7] : memref<32x18xbf16, #tpu.memory_space<vmem>>, vector<32x18xbf16>
    %c0_8 = arith.constant 0 : index
    %c0_9 = arith.constant 0 : index
    %5 = vector.load %arg13[%c0_8, %c0_9] : memref<32x128xf32, #tpu.memory_space<vmem>>, vector<32x128xf32>
    %6 = arith.truncf %1 : vector<9x128xf32> to vector<9x128xbf16>
    %cst = arith.constant dense<0.000000e+00> : vector<9x128xf32>
    %7 = tpu.matmul %6, %3, %cst {dimension_numbers = #tpu.dot_dimension_numbers<[1], [0], [0], [1], [0, 0, 1, 1], [], []>} : vector<9x128xbf16>, vector<128x128xbf16>, vector<9x128xf32> -> vector<9x128xf32>
    %8 = tpu.concatenate %7, %1 in 0 : vector<9x128xf32>, vector<9x128xf32> -> vector<18x128xf32>
    %9 = arith.truncf %8 : vector<18x128xf32> to vector<18x128xbf16>
    %cst_10 = arith.constant dense<0.000000e+00> : vector<32x128xf32>
    %10 = tpu.matmul %4, %9, %cst_10 {dimension_numbers = #tpu.dot_dimension_numbers<[1], [0], [0], [1], [0, 0, 1, 1], [], []>} : vector<32x18xbf16>, vector<18x128xbf16>, vector<32x128xf32> -> vector<32x128xf32>
    %11 = arith.addf %10, %5 : vector<32x128xf32>
    %cst_11 = arith.constant 0.000000e+00 : f32
    %12 = vector.broadcast %cst_11 : f32 to vector<32x128xf32>
    %13 = arith.cmpf oge, %11, %12 : vector<32x128xf32>
    %14 = vector.broadcast %2 : f32 to vector<32x128xf32>
    %15 = arith.mulf %14, %11 : vector<32x128xf32>
    %16 = arith.select %13, %11, %15 : vector<32x128xi1>, vector<32x128xf32>
    %c0_12 = arith.constant 0 : index
    %c1 = arith.constant 1 : index
    %17 = memref.load %arg1[%c0_12, %c1] : memref<3x4xf32, #tpu.memory_space<smem>>
    %c0_13 = arith.constant 0 : index
    %c0_14 = arith.constant 0 : index
    %18 = vector.load %arg6[%c0_13, %c0_14] : memref<128x128xbf16, #tpu.memory_space<vmem>>, vector<128x128xbf16>
    %c0_15 = arith.constant 0 : index
    %c0_16 = arith.constant 0 : index
    %19 = vector.load %arg10[%c0_15, %c0_16] : memref<32x32xbf16, #tpu.memory_space<vmem>>, vector<32x32xbf16>
    %c0_17 = arith.constant 0 : index
    %c0_18 = arith.constant 0 : index
    %20 = vector.load %arg14[%c0_17, %c0_18] : memref<16x128xf32, #tpu.memory_space<vmem>>, vector<16x128xf32>
    %21 = arith.truncf %16 : vector<32x128xf32> to vector<32x128xbf16>
    %cst_19 = arith.constant dense<0.000000e+00> : vector<32x128xf32>
    %22 = tpu.matmul %19, %21, %cst_19 {dimension_numbers = #tpu.dot_dimension_numbers<[1], [0], [0], [1], [0, 0, 1, 1], [], []>} : vector<32x32xbf16>, vector<32x128xbf16>, vector<32x128xf32> -> vector<32x128xf32>
    %23 = vector.extract_strided_slice %22 {offsets = [0, 0], sizes = [16, 128], strides = [1, 1]} : vector<32x128xf32> to vector<16x128xf32>
    %24 = arith.truncf %23 : vector<16x128xf32> to vector<16x128xbf16>
    %cst_20 = arith.constant dense<0.000000e+00> : vector<16x128xf32>
    %25 = tpu.matmul %24, %18, %cst_20 {dimension_numbers = #tpu.dot_dimension_numbers<[1], [0], [0], [1], [0, 0, 1, 1], [], []>} : vector<16x128xbf16>, vector<128x128xbf16>, vector<16x128xf32> -> vector<16x128xf32>
    %26 = vector.extract_strided_slice %22 {offsets = [16, 0], sizes = [16, 128], strides = [1, 1]} : vector<32x128xf32> to vector<16x128xf32>
    %27 = arith.addf %25, %26 : vector<16x128xf32>
    %28 = arith.addf %27, %20 : vector<16x128xf32>
    %cst_21 = arith.constant 0.000000e+00 : f32
    %29 = vector.broadcast %cst_21 : f32 to vector<16x128xf32>
    %30 = arith.cmpf oge, %28, %29 : vector<16x128xf32>
    %31 = vector.broadcast %17 : f32 to vector<16x128xf32>
    %32 = arith.mulf %31, %28 : vector<16x128xf32>
    %33 = arith.select %30, %28, %32 : vector<16x128xi1>, vector<16x128xf32>
    %c0_22 = arith.constant 0 : index
    %c2 = arith.constant 2 : index
    %34 = memref.load %arg1[%c0_22, %c2] : memref<3x4xf32, #tpu.memory_space<smem>>
    %c0_23 = arith.constant 0 : index
    %c0_24 = arith.constant 0 : index
    %35 = vector.load %arg7[%c0_23, %c0_24] : memref<128x128xbf16, #tpu.memory_space<vmem>>, vector<128x128xbf16>
    %c0_25 = arith.constant 0 : index
    %c0_26 = arith.constant 0 : index
    %36 = vector.load %arg11[%c0_25, %c0_26] : memref<32x32xbf16, #tpu.memory_space<vmem>>, vector<32x32xbf16>
    %c0_27 = arith.constant 0 : index
    %c0_28 = arith.constant 0 : index
    %37 = vector.load %arg15[%c0_27, %c0_28] : memref<32x128xf32, #tpu.memory_space<vmem>>, vector<32x128xf32>
    %38 = arith.truncf %33 : vector<16x128xf32> to vector<16x128xbf16>
    %cst_29 = arith.constant dense<0.000000e+00> : vector<16x128xf32>
    %39 = tpu.matmul %38, %35, %cst_29 {dimension_numbers = #tpu.dot_dimension_numbers<[1], [0], [0], [1], [0, 0, 1, 1], [], []>} : vector<16x128xbf16>, vector<128x128xbf16>, vector<16x128xf32> -> vector<16x128xf32>
    %40 = tpu.concatenate %39, %33 in 0 : vector<16x128xf32>, vector<16x128xf32> -> vector<32x128xf32>
    %41 = arith.truncf %40 : vector<32x128xf32> to vector<32x128xbf16>
    %cst_30 = arith.constant dense<0.000000e+00> : vector<32x128xf32>
    %42 = tpu.matmul %36, %41, %cst_30 {dimension_numbers = #tpu.dot_dimension_numbers<[1], [0], [0], [1], [0, 0, 1, 1], [], []>} : vector<32x32xbf16>, vector<32x128xbf16>, vector<32x128xf32> -> vector<32x128xf32>
    %43 = arith.addf %42, %37 : vector<32x128xf32>
    %cst_31 = arith.constant 0.000000e+00 : f32
    %44 = vector.broadcast %cst_31 : f32 to vector<32x128xf32>
    %45 = arith.cmpf oge, %43, %44 : vector<32x128xf32>
    %46 = vector.broadcast %34 : f32 to vector<32x128xf32>
    %47 = arith.mulf %46, %43 : vector<32x128xf32>
    %48 = arith.select %45, %43, %47 : vector<32x128xi1>, vector<32x128xf32>
    %c0_32 = arith.constant 0 : index
    %c3 = arith.constant 3 : index
    %49 = memref.load %arg1[%c0_32, %c3] : memref<3x4xf32, #tpu.memory_space<smem>>
    %c0_33 = arith.constant 0 : index
    %c0_34 = arith.constant 0 : index
    %50 = vector.load %arg8[%c0_33, %c0_34] : memref<128x128xbf16, #tpu.memory_space<vmem>>, vector<128x128xbf16>
    %c0_35 = arith.constant 0 : index
    %c0_36 = arith.constant 0 : index
    %51 = vector.load %arg12[%c0_35, %c0_36] : memref<18x32xbf16, #tpu.memory_space<vmem>>, vector<18x32xbf16>
    %c0_37 = arith.constant 0 : index
    %c0_38 = arith.constant 0 : index
    %52 = vector.load %arg16[%c0_37, %c0_38] : memref<9x128xf32, #tpu.memory_space<vmem>>, vector<9x128xf32>
    %53 = arith.truncf %48 : vector<32x128xf32> to vector<32x128xbf16>
    %cst_39 = arith.constant dense<0.000000e+00> : vector<18x128xf32>
    %54 = tpu.matmul %51, %53, %cst_39 {dimension_numbers = #tpu.dot_dimension_numbers<[1], [0], [0], [1], [0, 0, 1, 1], [], []>} : vector<18x32xbf16>, vector<32x128xbf16>, vector<18x128xf32> -> vector<18x128xf32>
    %55 = vector.extract_strided_slice %54 {offsets = [0, 0], sizes = [9, 128], strides = [1, 1]} : vector<18x128xf32> to vector<9x128xf32>
    %56 = arith.truncf %55 : vector<9x128xf32> to vector<9x128xbf16>
    %cst_40 = arith.constant dense<0.000000e+00> : vector<9x128xf32>
    %57 = tpu.matmul %56, %50, %cst_40 {dimension_numbers = #tpu.dot_dimension_numbers<[1], [0], [0], [1], [0, 0, 1, 1], [], []>} : vector<9x128xbf16>, vector<128x128xbf16>, vector<9x128xf32> -> vector<9x128xf32>
    %58 = vector.extract_strided_slice %54 {offsets = [9, 0], sizes = [9, 128], strides = [1, 1]} : vector<18x128xf32> to vector<9x128xf32>
    %59 = arith.addf %57, %58 : vector<9x128xf32>
    %60 = arith.addf %59, %52 : vector<9x128xf32>
    %cst_41 = arith.constant 0.000000e+00 : f32
    %61 = vector.broadcast %cst_41 : f32 to vector<9x128xf32>
    %62 = arith.cmpf oge, %60, %61 : vector<9x128xf32>
    %63 = vector.broadcast %49 : f32 to vector<9x128xf32>
    %64 = arith.mulf %63, %60 : vector<9x128xf32>
    %65 = arith.select %62, %60, %64 : vector<9x128xi1>, vector<9x128xf32>
    %66 = arith.addf %1, %65 : vector<9x128xf32>
    %c0_42 = arith.constant 0 : index
    %c0_43 = arith.constant 0 : index
    %c0_44 = arith.constant 0 : index
    %67 = vector.load %arg4[%c0_42, %c0_43, %c0_44] : memref<1x9x128xf32, #tpu.memory_space<vmem>>, vector<1x9x128xf32>
    %68 = vector.shape_cast %67 : vector<1x9x128xf32> to vector<9x128xf32>
    %69 = arith.addf %66, %68 : vector<9x128xf32>
    %c0_45 = arith.constant 0 : index
    %c0_46 = arith.constant 0 : index
    %c0_47 = arith.constant 0 : index
    %70 = vector.load %arg3[%c0_45, %c0_46, %c0_47] : memref<1x9x8xf32, #tpu.memory_space<vmem>>, vector<1x9x8xf32>
    %71 = vector.shape_cast %70 : vector<1x9x8xf32> to vector<9x8xf32>
    %c1_48 = arith.constant 1 : index
    %c0_49 = arith.constant 0 : index
    %72 = memref.load %arg1[%c1_48, %c0_49] : memref<3x4xf32, #tpu.memory_space<smem>>
    %c0_50 = arith.constant 0 : index
    %c0_51 = arith.constant 0 : index
    %73 = vector.load %arg17[%c0_50, %c0_51] : memref<8x8xbf16, #tpu.memory_space<vmem>>, vector<8x8xbf16>
    %c0_52 = arith.constant 0 : index
    %c0_53 = arith.constant 0 : index
    %74 = vector.load %arg21[%c0_52, %c0_53] : memref<32x18xbf16, #tpu.memory_space<vmem>>, vector<32x18xbf16>
    %c0_54 = arith.constant 0 : index
    %c0_55 = arith.constant 0 : index
    %75 = vector.load %arg25[%c0_54, %c0_55] : memref<32x8xf32, #tpu.memory_space<vmem>>, vector<32x8xf32>
    %76 = arith.truncf %71 : vector<9x8xf32> to vector<9x8xbf16>
    %cst_56 = arith.constant dense<0.000000e+00> : vector<9x8xf32>
    %77 = tpu.matmul %76, %73, %cst_56 {dimension_numbers = #tpu.dot_dimension_numbers<[1], [0], [0], [1], [0, 0, 1, 1], [], []>} : vector<9x8xbf16>, vector<8x8xbf16>, vector<9x8xf32> -> vector<9x8xf32>
    %78 = tpu.concatenate %77, %71 in 0 : vector<9x8xf32>, vector<9x8xf32> -> vector<18x8xf32>
    %79 = arith.truncf %78 : vector<18x8xf32> to vector<18x8xbf16>
    %cst_57 = arith.constant dense<0.000000e+00> : vector<32x8xf32>
    %80 = tpu.matmul %74, %79, %cst_57 {dimension_numbers = #tpu.dot_dimension_numbers<[1], [0], [0], [1], [0, 0, 1, 1], [], []>} : vector<32x18xbf16>, vector<18x8xbf16>, vector<32x8xf32> -> vector<32x8xf32>
    %81 = arith.addf %80, %75 : vector<32x8xf32>
    %cst_58 = arith.constant 0.000000e+00 : f32
    %82 = vector.broadcast %cst_58 : f32 to vector<32x8xf32>
    %83 = arith.cmpf oge, %81, %82 : vector<32x8xf32>
    %84 = vector.broadcast %72 : f32 to vector<32x8xf32>
    %85 = arith.mulf %84, %81 : vector<32x8xf32>
    %86 = arith.select %83, %81, %85 : vector<32x8xi1>, vector<32x8xf32>
    %c1_59 = arith.constant 1 : index
    %c1_60 = arith.constant 1 : index
    %87 = memref.load %arg1[%c1_59, %c1_60] : memref<3x4xf32, #tpu.memory_space<smem>>
    %c0_61 = arith.constant 0 : index
    %c0_62 = arith.constant 0 : index
    %88 = vector.load %arg18[%c0_61, %c0_62] : memref<8x8xbf16, #tpu.memory_space<vmem>>, vector<8x8xbf16>
    %c0_63 = arith.constant 0 : index
    %c0_64 = arith.constant 0 : index
    %89 = vector.load %arg22[%c0_63, %c0_64] : memref<32x32xbf16, #tpu.memory_space<vmem>>, vector<32x32xbf16>
    %c0_65 = arith.constant 0 : index
    %c0_66 = arith.constant 0 : index
    %90 = vector.load %arg26[%c0_65, %c0_66] : memref<16x8xf32, #tpu.memory_space<vmem>>, vector<16x8xf32>
    %91 = arith.truncf %86 : vector<32x8xf32> to vector<32x8xbf16>
    %cst_67 = arith.constant dense<0.000000e+00> : vector<32x8xf32>
    %92 = tpu.matmul %89, %91, %cst_67 {dimension_numbers = #tpu.dot_dimension_numbers<[1], [0], [0], [1], [0, 0, 1, 1], [], []>} : vector<32x32xbf16>, vector<32x8xbf16>, vector<32x8xf32> -> vector<32x8xf32>
    %93 = vector.extract_strided_slice %92 {offsets = [0, 0], sizes = [16, 8], strides = [1, 1]} : vector<32x8xf32> to vector<16x8xf32>
    %94 = arith.truncf %93 : vector<16x8xf32> to vector<16x8xbf16>
    %cst_68 = arith.constant dense<0.000000e+00> : vector<16x8xf32>
    %95 = tpu.matmul %94, %88, %cst_68 {dimension_numbers = #tpu.dot_dimension_numbers<[1], [0], [0], [1], [0, 0, 1, 1], [], []>} : vector<16x8xbf16>, vector<8x8xbf16>, vector<16x8xf32> -> vector<16x8xf32>
    %96 = vector.extract_strided_slice %92 {offsets = [16, 0], sizes = [16, 8], strides = [1, 1]} : vector<32x8xf32> to vector<16x8xf32>
    %97 = arith.addf %95, %96 : vector<16x8xf32>
    %98 = arith.addf %97, %90 : vector<16x8xf32>
    %cst_69 = arith.constant 0.000000e+00 : f32
    %99 = vector.broadcast %cst_69 : f32 to vector<16x8xf32>
    %100 = arith.cmpf oge, %98, %99 : vector<16x8xf32>
    %101 = vector.broadcast %87 : f32 to vector<16x8xf32>
    %102 = arith.mulf %101, %98 : vector<16x8xf32>
    %103 = arith.select %100, %98, %102 : vector<16x8xi1>, vector<16x8xf32>
    %c1_70 = arith.constant 1 : index
    %c2_71 = arith.constant 2 : index
    %104 = memref.load %arg1[%c1_70, %c2_71] : memref<3x4xf32, #tpu.memory_space<smem>>
    %c0_72 = arith.constant 0 : index
    %c0_73 = arith.constant 0 : index
    %105 = vector.load %arg19[%c0_72, %c0_73] : memref<8x8xbf16, #tpu.memory_space<vmem>>, vector<8x8xbf16>
    %c0_74 = arith.constant 0 : index
    %c0_75 = arith.constant 0 : index
    %106 = vector.load %arg23[%c0_74, %c0_75] : memref<32x32xbf16, #tpu.memory_space<vmem>>, vector<32x32xbf16>
    %c0_76 = arith.constant 0 : index
    %c0_77 = arith.constant 0 : index
    %107 = vector.load %arg27[%c0_76, %c0_77] : memref<32x8xf32, #tpu.memory_space<vmem>>, vector<32x8xf32>
    %108 = arith.truncf %103 : vector<16x8xf32> to vector<16x8xbf16>
    %cst_78 = arith.constant dense<0.000000e+00> : vector<16x8xf32>
    %109 = tpu.matmul %108, %105, %cst_78 {dimension_numbers = #tpu.dot_dimension_numbers<[1], [0], [0], [1], [0, 0, 1, 1], [], []>} : vector<16x8xbf16>, vector<8x8xbf16>, vector<16x8xf32> -> vector<16x8xf32>
    %110 = tpu.concatenate %109, %103 in 0 : vector<16x8xf32>, vector<16x8xf32> -> vector<32x8xf32>
    %111 = arith.truncf %110 : vector<32x8xf32> to vector<32x8xbf16>
    %cst_79 = arith.constant dense<0.000000e+00> : vector<32x8xf32>
    %112 = tpu.matmul %106, %111, %cst_79 {dimension_numbers = #tpu.dot_dimension_numbers<[1], [0], [0], [1], [0, 0, 1, 1], [], []>} : vector<32x32xbf16>, vector<32x8xbf16>, vector<32x8xf32> -> vector<32x8xf32>
    %113 = arith.addf %112, %107 : vector<32x8xf32>
    %cst_80 = arith.constant 0.000000e+00 : f32
    %114 = vector.broadcast %cst_80 : f32 to vector<32x8xf32>
    %115 = arith.cmpf oge, %113, %114 : vector<32x8xf32>
    %116 = vector.broadcast %104 : f32 to vector<32x8xf32>
    %117 = arith.mulf %116, %113 : vector<32x8xf32>
    %118 = arith.select %115, %113, %117 : vector<32x8xi1>, vector<32x8xf32>
    %c1_81 = arith.constant 1 : index
    %c3_82 = arith.constant 3 : index
    %119 = memref.load %arg1[%c1_81, %c3_82] : memref<3x4xf32, #tpu.memory_space<smem>>
    %c0_83 = arith.constant 0 : index
    %c0_84 = arith.constant 0 : index
    %120 = vector.load %arg20[%c0_83, %c0_84] : memref<8x8xbf16, #tpu.memory_space<vmem>>, vector<8x8xbf16>
    %c0_85 = arith.constant 0 : index
    %c0_86 = arith.constant 0 : index
    %121 = vector.load %arg24[%c0_85, %c0_86] : memref<18x32xbf16, #tpu.memory_space<vmem>>, vector<18x32xbf16>
    %c0_87 = arith.constant 0 : index
    %c0_88 = arith.constant 0 : index
    %122 = vector.load %arg28[%c0_87, %c0_88] : memref<9x8xf32, #tpu.memory_space<vmem>>, vector<9x8xf32>
    %123 = arith.truncf %118 : vector<32x8xf32> to vector<32x8xbf16>
    %cst_89 = arith.constant dense<0.000000e+00> : vector<18x8xf32>
    %124 = tpu.matmul %121, %123, %cst_89 {dimension_numbers = #tpu.dot_dimension_numbers<[1], [0], [0], [1], [0, 0, 1, 1], [], []>} : vector<18x32xbf16>, vector<32x8xbf16>, vector<18x8xf32> -> vector<18x8xf32>
    %125 = vector.extract_strided_slice %124 {offsets = [0, 0], sizes = [9, 8], strides = [1, 1]} : vector<18x8xf32> to vector<9x8xf32>
    %126 = arith.truncf %125 : vector<9x8xf32> to vector<9x8xbf16>
    %cst_90 = arith.constant dense<0.000000e+00> : vector<9x8xf32>
    %127 = tpu.matmul %126, %120, %cst_90 {dimension_numbers = #tpu.dot_dimension_numbers<[1], [0], [0], [1], [0, 0, 1, 1], [], []>} : vector<9x8xbf16>, vector<8x8xbf16>, vector<9x8xf32> -> vector<9x8xf32>
    %128 = vector.extract_strided_slice %124 {offsets = [9, 0], sizes = [9, 8], strides = [1, 1]} : vector<18x8xf32> to vector<9x8xf32>
    %129 = arith.addf %127, %128 : vector<9x8xf32>
    %130 = arith.addf %129, %122 : vector<9x8xf32>
    %cst_91 = arith.constant 0.000000e+00 : f32
    %131 = vector.broadcast %cst_91 : f32 to vector<9x8xf32>
    %132 = arith.cmpf oge, %130, %131 : vector<9x8xf32>
    %133 = vector.broadcast %119 : f32 to vector<9x8xf32>
    %134 = arith.mulf %133, %130 : vector<9x8xf32>
    %135 = arith.select %132, %130, %134 : vector<9x8xi1>, vector<9x8xf32>
    %136 = arith.addf %71, %135 : vector<9x8xf32>
    %cst_92 = arith.constant 0.000000e+00 : f32
    %137 = vector.broadcast %cst_92 : f32 to vector<9x120xf32>
    %138 = tpu.concatenate %136, %69, %137 in 1 : vector<9x8xf32>, vector<9x128xf32>, vector<9x120xf32> -> vector<9x256xf32>
    %c2_93 = arith.constant 2 : index
    %c0_94 = arith.constant 0 : index
    %139 = memref.load %arg1[%c2_93, %c0_94] : memref<3x4xf32, #tpu.memory_space<smem>>
    %c0_95 = arith.constant 0 : index
    %c0_96 = arith.constant 0 : index
    %140 = vector.load %arg29[%c0_95, %c0_96] : memref<256x256xbf16, #tpu.memory_space<vmem>>, vector<256x256xbf16>
    %c0_97 = arith.constant 0 : index
    %c0_98 = arith.constant 0 : index
    %141 = vector.load %arg33[%c0_97, %c0_98] : memref<32x18xbf16, #tpu.memory_space<vmem>>, vector<32x18xbf16>
    %c0_99 = arith.constant 0 : index
    %c0_100 = arith.constant 0 : index
    %142 = vector.load %arg37[%c0_99, %c0_100] : memref<32x256xf32, #tpu.memory_space<vmem>>, vector<32x256xf32>
    %143 = arith.truncf %138 : vector<9x256xf32> to vector<9x256xbf16>
    %cst_101 = arith.constant dense<0.000000e+00> : vector<9x256xf32>
    %144 = tpu.matmul %143, %140, %cst_101 {dimension_numbers = #tpu.dot_dimension_numbers<[1], [0], [0], [1], [0, 0, 1, 1], [], []>} : vector<9x256xbf16>, vector<256x256xbf16>, vector<9x256xf32> -> vector<9x256xf32>
    %145 = tpu.concatenate %144, %138 in 0 : vector<9x256xf32>, vector<9x256xf32> -> vector<18x256xf32>
    %146 = arith.truncf %145 : vector<18x256xf32> to vector<18x256xbf16>
    %cst_102 = arith.constant dense<0.000000e+00> : vector<32x256xf32>
    %147 = tpu.matmul %141, %146, %cst_102 {dimension_numbers = #tpu.dot_dimension_numbers<[1], [0], [0], [1], [0, 0, 1, 1], [], []>} : vector<32x18xbf16>, vector<18x256xbf16>, vector<32x256xf32> -> vector<32x256xf32>
    %148 = arith.addf %147, %142 : vector<32x256xf32>
    %cst_103 = arith.constant 0.000000e+00 : f32
    %149 = vector.broadcast %cst_103 : f32 to vector<32x256xf32>
    %150 = arith.cmpf oge, %148, %149 : vector<32x256xf32>
    %151 = vector.broadcast %139 : f32 to vector<32x256xf32>
    %152 = arith.mulf %151, %148 : vector<32x256xf32>
    %153 = arith.select %150, %148, %152 : vector<32x256xi1>, vector<32x256xf32>
    %c2_104 = arith.constant 2 : index
    %c1_105 = arith.constant 1 : index
    %154 = memref.load %arg1[%c2_104, %c1_105] : memref<3x4xf32, #tpu.memory_space<smem>>
    %c0_106 = arith.constant 0 : index
    %c0_107 = arith.constant 0 : index
    %155 = vector.load %arg30[%c0_106, %c0_107] : memref<256x256xbf16, #tpu.memory_space<vmem>>, vector<256x256xbf16>
    %c0_108 = arith.constant 0 : index
    %c0_109 = arith.constant 0 : index
    %156 = vector.load %arg34[%c0_108, %c0_109] : memref<32x32xbf16, #tpu.memory_space<vmem>>, vector<32x32xbf16>
    %c0_110 = arith.constant 0 : index
    %c0_111 = arith.constant 0 : index
    %157 = vector.load %arg38[%c0_110, %c0_111] : memref<16x256xf32, #tpu.memory_space<vmem>>, vector<16x256xf32>
    %158 = arith.truncf %153 : vector<32x256xf32> to vector<32x256xbf16>
    %cst_112 = arith.constant dense<0.000000e+00> : vector<32x256xf32>
    %159 = tpu.matmul %156, %158, %cst_112 {dimension_numbers = #tpu.dot_dimension_numbers<[1], [0], [0], [1], [0, 0, 1, 1], [], []>} : vector<32x32xbf16>, vector<32x256xbf16>, vector<32x256xf32> -> vector<32x256xf32>
    %160 = vector.extract_strided_slice %159 {offsets = [0, 0], sizes = [16, 256], strides = [1, 1]} : vector<32x256xf32> to vector<16x256xf32>
    %161 = arith.truncf %160 : vector<16x256xf32> to vector<16x256xbf16>
    %cst_113 = arith.constant dense<0.000000e+00> : vector<16x256xf32>
    %162 = tpu.matmul %161, %155, %cst_113 {dimension_numbers = #tpu.dot_dimension_numbers<[1], [0], [0], [1], [0, 0, 1, 1], [], []>} : vector<16x256xbf16>, vector<256x256xbf16>, vector<16x256xf32> -> vector<16x256xf32>
    %163 = vector.extract_strided_slice %159 {offsets = [16, 0], sizes = [16, 256], strides = [1, 1]} : vector<32x256xf32> to vector<16x256xf32>
    %164 = arith.addf %162, %163 : vector<16x256xf32>
    %165 = arith.addf %164, %157 : vector<16x256xf32>
    %cst_114 = arith.constant 0.000000e+00 : f32
    %166 = vector.broadcast %cst_114 : f32 to vector<16x256xf32>
    %167 = arith.cmpf oge, %165, %166 : vector<16x256xf32>
    %168 = vector.broadcast %154 : f32 to vector<16x256xf32>
    %169 = arith.mulf %168, %165 : vector<16x256xf32>
    %170 = arith.select %167, %165, %169 : vector<16x256xi1>, vector<16x256xf32>
    %c2_115 = arith.constant 2 : index
    %c2_116 = arith.constant 2 : index
    %171 = memref.load %arg1[%c2_115, %c2_116] : memref<3x4xf32, #tpu.memory_space<smem>>
    %c0_117 = arith.constant 0 : index
    %c0_118 = arith.constant 0 : index
    %172 = vector.load %arg31[%c0_117, %c0_118] : memref<256x256xbf16, #tpu.memory_space<vmem>>, vector<256x256xbf16>
    %c0_119 = arith.constant 0 : index
    %c0_120 = arith.constant 0 : index
    %173 = vector.load %arg35[%c0_119, %c0_120] : memref<32x32xbf16, #tpu.memory_space<vmem>>, vector<32x32xbf16>
    %c0_121 = arith.constant 0 : index
    %c0_122 = arith.constant 0 : index
    %174 = vector.load %arg39[%c0_121, %c0_122] : memref<32x256xf32, #tpu.memory_space<vmem>>, vector<32x256xf32>
    %175 = arith.truncf %170 : vector<16x256xf32> to vector<16x256xbf16>
    %cst_123 = arith.constant dense<0.000000e+00> : vector<16x256xf32>
    %176 = tpu.matmul %175, %172, %cst_123 {dimension_numbers = #tpu.dot_dimension_numbers<[1], [0], [0], [1], [0, 0, 1, 1], [], []>} : vector<16x256xbf16>, vector<256x256xbf16>, vector<16x256xf32> -> vector<16x256xf32>
    %177 = tpu.concatenate %176, %170 in 0 : vector<16x256xf32>, vector<16x256xf32> -> vector<32x256xf32>
    %178 = arith.truncf %177 : vector<32x256xf32> to vector<32x256xbf16>
    %cst_124 = arith.constant dense<0.000000e+00> : vector<32x256xf32>
    %179 = tpu.matmul %173, %178, %cst_124 {dimension_numbers = #tpu.dot_dimension_numbers<[1], [0], [0], [1], [0, 0, 1, 1], [], []>} : vector<32x32xbf16>, vector<32x256xbf16>, vector<32x256xf32> -> vector<32x256xf32>
    %180 = arith.addf %179, %174 : vector<32x256xf32>
    %cst_125 = arith.constant 0.000000e+00 : f32
    %181 = vector.broadcast %cst_125 : f32 to vector<32x256xf32>
    %182 = arith.cmpf oge, %180, %181 : vector<32x256xf32>
    %183 = vector.broadcast %171 : f32 to vector<32x256xf32>
    %184 = arith.mulf %183, %180 : vector<32x256xf32>
    %185 = arith.select %182, %180, %184 : vector<32x256xi1>, vector<32x256xf32>
    %c2_126 = arith.constant 2 : index
    %c3_127 = arith.constant 3 : index
    %186 = memref.load %arg1[%c2_126, %c3_127] : memref<3x4xf32, #tpu.memory_space<smem>>
    %c0_128 = arith.constant 0 : index
    %c0_129 = arith.constant 0 : index
    %187 = vector.load %arg32[%c0_128, %c0_129] : memref<256x256xbf16, #tpu.memory_space<vmem>>, vector<256x256xbf16>
    %c0_130 = arith.constant 0 : index
    %c0_131 = arith.constant 0 : index
    %188 = vector.load %arg36[%c0_130, %c0_131] : memref<18x32xbf16, #tpu.memory_space<vmem>>, vector<18x32xbf16>
    %c0_132 = arith.constant 0 : index
    %c0_133 = arith.constant 0 : index
    %189 = vector.load %arg40[%c0_132, %c0_133] : memref<9x256xf32, #tpu.memory_space<vmem>>, vector<9x256xf32>
    %190 = arith.truncf %185 : vector<32x256xf32> to vector<32x256xbf16>
    %cst_134 = arith.constant dense<0.000000e+00> : vector<18x256xf32>
    %191 = tpu.matmul %188, %190, %cst_134 {dimension_numbers = #tpu.dot_dimension_numbers<[1], [0], [0], [1], [0, 0, 1, 1], [], []>} : vector<18x32xbf16>, vector<32x256xbf16>, vector<18x256xf32> -> vector<18x256xf32>
    %192 = vector.extract_strided_slice %191 {offsets = [0, 0], sizes = [9, 256], strides = [1, 1]} : vector<18x256xf32> to vector<9x256xf32>
    %193 = arith.truncf %192 : vector<9x256xf32> to vector<9x256xbf16>
    %cst_135 = arith.constant dense<0.000000e+00> : vector<9x256xf32>
    %194 = tpu.matmul %193, %187, %cst_135 {dimension_numbers = #tpu.dot_dimension_numbers<[1], [0], [0], [1], [0, 0, 1, 1], [], []>} : vector<9x256xbf16>, vector<256x256xbf16>, vector<9x256xf32> -> vector<9x256xf32>
    %195 = vector.extract_strided_slice %191 {offsets = [9, 0], sizes = [9, 256], strides = [1, 1]} : vector<18x256xf32> to vector<9x256xf32>
    %196 = arith.addf %194, %195 : vector<9x256xf32>
    %197 = arith.addf %196, %189 : vector<9x256xf32>
    %cst_136 = arith.constant 0.000000e+00 : f32
    %198 = vector.broadcast %cst_136 : f32 to vector<9x256xf32>
    %199 = arith.cmpf oge, %197, %198 : vector<9x256xf32>
    %200 = vector.broadcast %186 : f32 to vector<9x256xf32>
    %201 = arith.mulf %200, %197 : vector<9x256xf32>
    %202 = arith.select %199, %197, %201 : vector<9x256xi1>, vector<9x256xf32>
    %203 = arith.addf %138, %202 : vector<9x256xf32>
    %c0_137 = arith.constant 0 : index
    %c0_138 = arith.constant 0 : index
    %c0_139 = arith.constant 0 : index
    %204 = vector.load %arg41[%c0_137, %c0_138, %c0_139] : memref<1x9x256xf32, #tpu.memory_space<vmem>>, vector<1x9x256xf32>
    %205 = vector.shape_cast %204 : vector<1x9x256xf32> to vector<9x256xf32>
    %206 = vector.shape_cast %203 : vector<9x256xf32> to vector<1x9x256xf32>
    tpu.vector_store %arg41[%c0_137, %c0_138, %c0_139], %206 {strides = array<i32>} : memref<1x9x256xf32, #tpu.memory_space<vmem>>, vector<1x9x256xf32>,
    return
  }
  func.func @transform_0(%arg0: i32) -> (i32, i32) {
    %c0_i32 = arith.constant 0 : i32
    %c0_i32_0 = arith.constant 0 : i32
    %c0_i32_1 = arith.constant 0 : i32
    return %c0_i32, %c0_i32_0 : i32, i32
  }
  func.func @transform_1(%arg0: i32) -> (i32, i32, i32) {
    %c0_i32 = arith.constant 0 : i32
    %c0_i32_0 = arith.constant 0 : i32
    %c0_i32_1 = arith.constant 0 : i32
    return %arg0, %c0_i32, %c0_i32_0 : i32, i32, i32
  }
  func.func @transform_2(%arg0: i32) -> (i32, i32, i32) {
    %c0_i32 = arith.constant 0 : i32
    %c0_i32_0 = arith.constant 0 : i32
    %c0_i32_1 = arith.constant 0 : i32
    return %arg0, %c0_i32, %c0_i32_0 : i32, i32, i32
  }
  func.func @transform_3(%arg0: i32) -> (i32, i32, i32) {
    %c0_i32 = arith.constant 0 : i32
    %c0_i32_0 = arith.constant 0 : i32
    %c0_i32_1 = arith.constant 0 : i32
    return %arg0, %c0_i32, %c0_i32_0 : i32, i32, i32
  }
  func.func @transform_4(%arg0: i32) -> (i32, i32) {
    %c0_i32 = arith.constant 0 : i32
    %c0_i32_0 = arith.constant 0 : i32
    %c0_i32_1 = arith.constant 0 : i32
    return %c0_i32, %c0_i32_0 : i32, i32
  }
  func.func @transform_5(%arg0: i32) -> (i32, i32) {
    %c0_i32 = arith.constant 0 : i32
    %c0_i32_0 = arith.constant 0 : i32
    %c0_i32_1 = arith.constant 0 : i32
    return %c0_i32, %c0_i32_0 : i32, i32
  }
  func.func @transform_6(%arg0: i32) -> (i32, i32) {
    %c0_i32 = arith.constant 0 : i32
    %c0_i32_0 = arith.constant 0 : i32
    %c0_i32_1 = arith.constant 0 : i32
    return %c0_i32, %c0_i32_0 : i32, i32
  }
  func.func @transform_7(%arg0: i32) -> (i32, i32) {
    %c0_i32 = arith.constant 0 : i32
    %c0_i32_0 = arith.constant 0 : i32
    %c0_i32_1 = arith.constant 0 : i32
    return %c0_i32, %c0_i32_0 : i32, i32
  }
  func.func @transform_8(%arg0: i32) -> (i32, i32) {
    %c0_i32 = arith.constant 0 : i32
    %c0_i32_0 = arith.constant 0 : i32
    %c0_i32_1 = arith.constant 0 : i32
    return %c0_i32, %c0_i32_0 : i32, i32
  }
  func.func @transform_9(%arg0: i32) -> (i32, i32) {
    %c0_i32 = arith.constant 0 : i32
    %c0_i32_0 = arith.constant 0 : i32
    %c0_i32_1 = arith.constant 0 : i32
    return %c0_i32, %c0_i32_0 : i32, i32
  }
  func.func @transform_10(%arg0: i32) -> (i32, i32) {
    %c0_i32 = arith.constant 0 : i32
    %c0_i32_0 = arith.constant 0 : i32
    %c0_i32_1 = arith.constant 0 : i32
    return %c0_i32, %c0_i32_0 : i32, i32
  }
  func.func @transform_11(%arg0: i32) -> (i32, i32) {
    %c0_i32 = arith.constant 0 : i32
    %c0_i32_0 = arith.constant 0 : i32
    %c0_i32_1 = arith.constant 0 : i32
    return %c0_i32, %c0_i32_0 : i32, i32
  }
  func.func @transform_12(%arg0: i32) -> (i32, i32) {
    %c0_i32 = arith.constant 0 : i32
    %c0_i32_0 = arith.constant 0 : i32
    %c0_i32_1 = arith.constant 0 : i32
    return %c0_i32, %c0_i32_0 : i32, i32
  }
  func.func @transform_13(%arg0: i32) -> (i32, i32) {
    %c0_i32 = arith.constant 0 : i32
    %c0_i32_0 = arith.constant 0 : i32
    %c0_i32_1 = arith.constant 0 : i32
    return %c0_i32, %c0_i32_0 : i32, i32
  }
  func.func @transform_14(%arg0: i32) -> (i32, i32) {
    %c0_i32 = arith.constant 0 : i32
    %c0_i32_0 = arith.constant 0 : i32
    %c0_i32_1 = arith.constant 0 : i32
    return %c0_i32, %c0_i32_0 : i32, i32
  }
  func.func @transform_15(%arg0: i32) -> (i32, i32) {
    %c0_i32 = arith.constant 0 : i32
    %c0_i32_0 = arith.constant 0 : i32
    %c0_i32_1 = arith.constant 0 : i32
    return %c0_i32, %c0_i32_0 : i32, i32
  }
  func.func @transform_16(%arg0: i32) -> (i32, i32) {
    %c0_i32 = arith.constant 0 : i32
    %c0_i32_0 = arith.constant 0 : i32
    %c0_i32_1 = arith.constant 0 : i32
    return %c0_i32, %c0_i32_0 : i32, i32
  }
  func.func @transform_17(%arg0: i32) -> (i32, i32) {
    %c0_i32 = arith.constant 0 : i32
    %c0_i32_0 = arith.constant 0 : i32
    %c0_i32_1 = arith.constant 0 : i32
    return %c0_i32, %c0_i32_0 : i32, i32
  }
  func.func @transform_18(%arg0: i32) -> (i32, i32) {
    %c0_i32 = arith.constant 0 : i32
    %c0_i32_0 = arith.constant 0 : i32
    %c0_i32_1 = arith.constant 0 : i32
    return %c0_i32, %c0_i32_0 : i32, i32
  }
  func.func @transform_19(%arg0: i32) -> (i32, i32) {
    %c0_i32 = arith.constant 0 : i32
    %c0_i32_0 = arith.constant 0 : i32
    %c0_i32_1 = arith.constant 0 : i32
    return %c0_i32, %c0_i32_0 : i32, i32
  }
  func.func @transform_20(%arg0: i32) -> (i32, i32) {
    %c0_i32 = arith.constant 0 : i32
    %c0_i32_0 = arith.constant 0 : i32
    %c0_i32_1 = arith.constant 0 : i32
    return %c0_i32, %c0_i32_0 : i32, i32
  }
  func.func @transform_21(%arg0: i32) -> (i32, i32) {
    %c0_i32 = arith.constant 0 : i32
    %c0_i32_0 = arith.constant 0 : i32
    %c0_i32_1 = arith.constant 0 : i32
    return %c0_i32, %c0_i32_0 : i32, i32
  }
  func.func @transform_22(%arg0: i32) -> (i32, i32) {
    %c0_i32 = arith.constant 0 : i32
    %c0_i32_0 = arith.constant 0 : i32
    %c0_i32_1 = arith.constant 0 : i32
    return %c0_i32, %c0_i32_0 : i32, i32
  }
  func.func @transform_23(%arg0: i32) -> (i32, i32) {
    %c0_i32 = arith.constant 0 : i32
    %c0_i32_0 = arith.constant 0 : i32
    %c0_i32_1 = arith.constant 0 : i32
    return %c0_i32, %c0_i32_0 : i32, i32
  }
  func.func @transform_24(%arg0: i32) -> (i32, i32) {
    %c0_i32 = arith.constant 0 : i32
    %c0_i32_0 = arith.constant 0 : i32
    %c0_i32_1 = arith.constant 0 : i32
    return %c0_i32, %c0_i32_0 : i32, i32
  }
  func.func @transform_25(%arg0: i32) -> (i32, i32) {
    %c0_i32 = arith.constant 0 : i32
    %c0_i32_0 = arith.constant 0 : i32
    %c0_i32_1 = arith.constant 0 : i32
    return %c0_i32, %c0_i32_0 : i32, i32
  }
  func.func @transform_26(%arg0: i32) -> (i32, i32) {
    %c0_i32 = arith.constant 0 : i32
    %c0_i32_0 = arith.constant 0 : i32
    %c0_i32_1 = arith.constant 0 : i32
    return %c0_i32, %c0_i32_0 : i32, i32
  }
  func.func @transform_27(%arg0: i32) -> (i32, i32) {
    %c0_i32 = arith.constant 0 : i32
    %c0_i32_0 = arith.constant 0 : i32
    %c0_i32_1 = arith.constant 0 : i32
    return %c0_i32, %c0_i32_0 : i32, i32
  }
  func.func @transform_28(%arg0: i32) -> (i32, i32) {
    %c0_i32 = arith.constant 0 : i32
    %c0_i32_0 = arith.constant 0 : i32
    %c0_i32_1 = arith.constant 0 : i32
    return %c0_i32, %c0_i32_0 : i32, i32
  }
  func.func @transform_29(%arg0: i32) -> (i32, i32) {
    %c0_i32 = arith.constant 0 : i32
    %c0_i32_0 = arith.constant 0 : i32
    %c0_i32_1 = arith.constant 0 : i32
    return %c0_i32, %c0_i32_0 : i32, i32
  }
  func.func @transform_30(%arg0: i32) -> (i32, i32) {
    %c0_i32 = arith.constant 0 : i32
    %c0_i32_0 = arith.constant 0 : i32
    %c0_i32_1 = arith.constant 0 : i32
    return %c0_i32, %c0_i32_0 : i32, i32
  }
  func.func @transform_31(%arg0: i32) -> (i32, i32) {
    %c0_i32 = arith.constant 0 : i32
    %c0_i32_0 = arith.constant 0 : i32
    %c0_i32_1 = arith.constant 0 : i32
    return %c0_i32, %c0_i32_0 : i32, i32
  }
  func.func @transform_32(%arg0: i32) -> (i32, i32) {
    %c0_i32 = arith.constant 0 : i32
    %c0_i32_0 = arith.constant 0 : i32
    %c0_i32_1 = arith.constant 0 : i32
    return %c0_i32, %c0_i32_0 : i32, i32
  }
  func.func @transform_33(%arg0: i32) -> (i32, i32) {
    %c0_i32 = arith.constant 0 : i32
    %c0_i32_0 = arith.constant 0 : i32
    %c0_i32_1 = arith.constant 0 : i32
    return %c0_i32, %c0_i32_0 : i32, i32
  }
  func.func @transform_34(%arg0: i32) -> (i32, i32) {
    %c0_i32 = arith.constant 0 : i32
    %c0_i32_0 = arith.constant 0 : i32
    %c0_i32_1 = arith.constant 0 : i32
    return %c0_i32, %c0_i32_0 : i32, i32
  }
  func.func @transform_35(%arg0: i32) -> (i32, i32) {
    %c0_i32 = arith.constant 0 : i32
    %c0_i32_0 = arith.constant 0 : i32
    %c0_i32_1 = arith.constant 0 : i32
    return %c0_i32, %c0_i32_0 : i32, i32
  }
  func.func @transform_36(%arg0: i32) -> (i32, i32) {
    %c0_i32 = arith.constant 0 : i32
    %c0_i32_0 = arith.constant 0 : i32
    %c0_i32_1 = arith.constant 0 : i32
    return %c0_i32, %c0_i32_0 : i32, i32
  }
  func.func @transform_37(%arg0: i32) -> (i32, i32) {
    %c0_i32 = arith.constant 0 : i32
    %c0_i32_0 = arith.constant 0 : i32
    %c0_i32_1 = arith.constant 0 : i32
    return %c0_i32, %c0_i32_0 : i32, i32
  }
  func.func @transform_38(%arg0: i32) -> (i32, i32) {
    %c0_i32 = arith.constant 0 : i32
    %c0_i32_0 = arith.constant 0 : i32
    %c0_i32_1 = arith.constant 0 : i32
    return %c0_i32, %c0_i32_0 : i32, i32
  }
  func.func @transform_39(%arg0: i32) -> (i32, i32) {
    %c0_i32 = arith.constant 0 : i32
    %c0_i32_0 = arith.constant 0 : i32
    %c0_i32_1 = arith.constant 0 : i32
    return %c0_i32, %c0_i32_0 : i32, i32
  }
  func.func @transform_40(%arg0: i32) -> (i32, i32, i32) {
    %c0_i32 = arith.constant 0 : i32
    %c0_i32_0 = arith.constant 0 : i32
    %c0_i32_1 = arith.constant 0 : i32
    return %arg0, %c0_i32, %c0_i32_0 : i32, i32, i32
  }
}

</mosaic_0001>

<llo_original>
// kernel: tpu_custom_call.1
$region0: #{tpu_custom_call.1}
  #allocation0 [shape = 'u32[]', space=smem, size = 0x4, offset = 0x4, fixed_abs, tag = 'smem constant byte address 0x4 - core index']
  #allocation1 [shape = 'u32[144,128]{1,0:T(1,128)}', space=vmem, size = 0x12000, scoped, tag = 'internal scratch']
  %s0 = inlined_call_operand.smem [shape: u32[41], index: -1, kind: input, shape index: {}]
  %s1 = sld [smem:[%s0]]
  %s2 = scalar_lea.smem %s0, 1
  %s3 = sld [smem:[%s2]]
  %s4 = scalar_lea.smem %s0, 2
  %s5 = sld [smem:[%s4]]
  %s6 = scalar_lea.smem %s0, 3
  %s7 = sld [smem:[%s6]]
  %s8 = scalar_lea.smem %s0, 4
  %s9 = sld [smem:[%s8]]
  %s10 = scalar_lea.smem %s0, 5
  %s11 = sld [smem:[%s10]]
  %s12 = scalar_lea.smem %s0, 6
  %s13 = sld [smem:[%s12]]
  %s14 = scalar_lea.smem %s0, 7
  %s15 = sld [smem:[%s14]]
  %s16 = scalar_lea.smem %s0, 8
  %s17 = sld [smem:[%s16]]
  %s18 = scalar_lea.smem %s0, 9
  %s19 = sld [smem:[%s18]]
  %s20 = scalar_lea.smem %s0, 10
  %s21 = sld [smem:[%s20]]
  %s22 = scalar_lea.smem %s0, 11
  %s23 = sld [smem:[%s22]]
  %s24 = scalar_lea.smem %s0, 12
  %s25 = sld [smem:[%s24]]
  %s26 = scalar_lea.smem %s0, 13
  %s27 = sld [smem:[%s26]]
  %s28 = scalar_lea.smem %s0, 14
  %s29 = sld [smem:[%s28]]
  %s30 = scalar_lea.smem %s0, 15
  %s31 = sld [smem:[%s30]]
  %s32 = scalar_lea.smem %s0, 16
  %s33 = sld [smem:[%s32]]
  %s34 = scalar_lea.smem %s0, 17
  %s35 = sld [smem:[%s34]]
  %s36 = scalar_lea.smem %s0, 18
  %s37 = sld [smem:[%s36]]
  %s38 = scalar_lea.smem %s0, 19
  %s39 = sld [smem:[%s38]]
  %s40 = scalar_lea.smem %s0, 20
  %s41 = sld [smem:[%s40]]
  %s42 = scalar_lea.smem %s0, 21
  %s43 = sld [smem:[%s42]]
  %s44 = scalar_lea.smem %s0, 22
  %s45 = sld [smem:[%s44]]
  %s46 = scalar_lea.smem %s0, 23
  %s47 = sld [smem:[%s46]]
  %s48 = scalar_lea.smem %s0, 24
  %s49 = sld [smem:[%s48]]
  %s50 = scalar_lea.smem %s0, 25
  %s51 = sld [smem:[%s50]]
  %s52 = scalar_lea.smem %s0, 26
  %s53 = sld [smem:[%s52]]
  %s54 = scalar_lea.smem %s0, 27
  %s55 = sld [smem:[%s54]]
  %s56 = scalar_lea.smem %s0, 28
  %s57 = sld [smem:[%s56]]
  %s58 = scalar_lea.smem %s0, 29
  %s59 = sld [smem:[%s58]]
  %s60 = scalar_lea.smem %s0, 30
  %s61 = sld [smem:[%s60]]
  %s62 = scalar_lea.smem %s0, 31
  %s63 = sld [smem:[%s62]]
  %s64 = scalar_lea.smem %s0, 32
  %s65 = sld [smem:[%s64]]
  %s66 = scalar_lea.smem %s0, 33
  %s67 = sld [smem:[%s66]]
  %s68 = scalar_lea.smem %s0, 34
  %s69 = sld [smem:[%s68]]
  %s70 = scalar_lea.smem %s0, 35
  %s71 = sld [smem:[%s70]]
  %s72 = scalar_lea.smem %s0, 36
  %s73 = sld [smem:[%s72]]
  %s74 = scalar_lea.smem %s0, 37
  %s75 = sld [smem:[%s74]]
  %s76 = scalar_lea.smem %s0, 38
  %s77 = sld [smem:[%s76]]
  %s78 = scalar_lea.smem %s0, 39
  %s79 = sld [smem:[%s78]]
  %s80 = scalar_lea.smem %s0, 40
  %s81 = sld [smem:[%s80]]
  %s82 = sld [smem:[#allocation0]]
  $region297: #{tpu_custom_call.1} parent=0
    _
  %s84 = ssub.s32 1, %s82
  %s85 = scalar_select 0, %s84, %s82
  $region1: #{tpu_custom_call.1} parent=0
    #allocation2 [shape = 'u8[2048]{0}', space=smem, size = 0x800, scoped, tag = 'input window, operand 0, single buffered']
    #allocation3 [shape = 's32[2]{0}', space=sflag, size = 0x8, scoped, tag = 'scoped memory for tpu_custom_call.1']
    #allocation4 [shape = 's32[2]{0}', space=sflag, size = 0x8, scoped, tag = 'scoped memory for tpu_custom_call.1']
    #allocation5 [shape = 'u8[32768]{0}', space=vmem, size = 0x8000, scoped, tag = 'input window, operand 6, single buffered']
    #allocation6 [shape = 'u8[32768]{0}', space=vmem, size = 0x8000, scoped, tag = 'input window, operand 7, single buffered']
    #allocation7 [shape = 's32[1]{0}', space=sflag, size = 0x4, scoped, tag = 'scoped memory for tpu_custom_call.1']
    #allocation8 [shape = 'u8[8192]{0}', space=vmem, size = 0x2000, scoped, tag = 'input window, operand 9, single buffered']
    #allocation9 [shape = 'u8[8192]{0}', space=vmem, size = 0x2000, scoped, tag = 'input window, operand 10, single buffered']
    #allocation10 [shape = 's32[1]{0}', space=sflag, size = 0x4, scoped, tag = 'scoped memory for tpu_custom_call.1']
    #allocation11 [shape = 'u8[6144]{0}', space=vmem, size = 0x1800, scoped, tag = 'input window, operand 11, single buffered']
    #allocation12 [shape = 'u8[16384]{0}', space=vmem, size = 0x4000, scoped, tag = 'input window, operand 12, single buffered']
    #allocation13 [shape = 's32[1]{0}', space=sflag, size = 0x4, scoped, tag = 'scoped memory for tpu_custom_call.1']
    #allocation14 [shape = 'u8[8192]{0}', space=vmem, size = 0x2000, scoped, tag = 'input window, operand 13, single buffered']
    #allocation15 [shape = 'u8[16384]{0}', space=vmem, size = 0x4000, scoped, tag = 'input window, operand 14, single buffered']
    #allocation16 [shape = 's32[1]{0}', space=sflag, size = 0x4, scoped, tag = 'scoped memory for tpu_custom_call.1']
    #allocation17 [shape = 'u8[8192]{0}', space=vmem, size = 0x2000, scoped, tag = 'input window, operand 15, single buffered']
    #allocation18 [shape = 'u8[2048]{0}', space=vmem, size = 0x800, scoped, tag = 'input window, operand 16, single buffered']
    #allocation19 [shape = 's32[1]{0}', space=sflag, size = 0x4, scoped, tag = 'scoped memory for tpu_custom_call.1']
    #allocation20 [shape = 'u8[2048]{0}', space=vmem, size = 0x800, scoped, tag = 'input window, operand 17, single buffered']
    #allocation21 [shape = 'u8[2048]{0}', space=vmem, size = 0x800, scoped, tag = 'input window, operand 18, single buffered']
    #allocation22 [shape = 's32[1]{0}', space=sflag, size = 0x4, scoped, tag = 'scoped memory for tpu_custom_call.1']
    #allocation23 [shape = 'u8[2048]{0}', space=vmem, size = 0x800, scoped, tag = 'input window, operand 19, single buffered']
    #allocation24 [shape = 'u8[8192]{0}', space=vmem, size = 0x2000, scoped, tag = 'input window, operand 21, single buffered']
    #allocation25 [shape = 's32[1]{0}', space=sflag, size = 0x4, scoped, tag = 'scoped memory for tpu_custom_call.1']
    #allocation26 [shape = 'u8[8192]{0}', space=vmem, size = 0x2000, scoped, tag = 'input window, operand 22, single buffered']
    #allocation27 [shape = 'u8[6144]{0}', space=vmem, size = 0x1800, scoped, tag = 'input window, operand 23, single buffered']
    #allocation28 [shape = 's32[1]{0}', space=sflag, size = 0x4, scoped, tag = 'scoped memory for tpu_custom_call.1']
    #allocation29 [shape = 'u8[131072]{0}', space=vmem, size = 0x20000, scoped, tag = 'input window, operand 29, single buffered']
    #allocation30 [shape = 'u8[131072]{0}', space=vmem, size = 0x20000, scoped, tag = 'input window, operand 30, single buffered']
    #allocation31 [shape = 's32[1]{0}', space=sflag, size = 0x4, scoped, tag = 'scoped memory for tpu_custom_call.1']
    #allocation32 [shape = 'u8[131072]{0}', space=vmem, size = 0x20000, scoped, tag = 'input window, operand 31, single buffered']
    #allocation33 [shape = 'u8[8192]{0}', space=vmem, size = 0x2000, scoped, tag = 'input window, operand 33, single buffered']
    #allocation34 [shape = 's32[1]{0}', space=sflag, size = 0x4, scoped, tag = 'scoped memory for tpu_custom_call.1']
    #allocation35 [shape = 'u8[8192]{0}', space=vmem, size = 0x2000, scoped, tag = 'input window, operand 34, single buffered']
    #allocation36 [shape = 'u8[6144]{0}', space=vmem, size = 0x1800, scoped, tag = 'input window, operand 35, single buffered']
    #allocation37 [shape = 's32[1]{0}', space=sflag, size = 0x4, scoped, tag = 'scoped memory for tpu_custom_call.1']
    #allocation38 [shape = 'u8[32768]{0}', space=vmem, size = 0x8000, scoped, tag = 'input window, operand 36, single buffered']
    #allocation39 [shape = 'u8[32768]{0}', space=vmem, size = 0x8000, scoped, tag = 'input window, operand 38, single buffered']
    #allocation40 [shape = 's32[1]{0}', space=sflag, size = 0x4, scoped, tag = 'scoped memory for tpu_custom_call.1']
    #allocation41 [shape = 'u8[16384]{0}', space=vmem, size = 0x4000, scoped, tag = 'input window, operand 39, single buffered']
    %86 = vsyncpa [#allocation4], 0
    %87 = vsyncpa [#allocation3], 0
    %88 = vsyncpa [#allocation7], 0
    %89 = vsyncpa [#allocation10], 0
    %90 = vsyncpa [#allocation13], 0
    %91 = vsyncpa [#allocation16], 0
    %92 = vsyncpa [#allocation19], 0
    %93 = vsyncpa [#allocation22], 0
    %94 = vsyncpa [#allocation25], 0
    %95 = vsyncpa [#allocation28], 0
    %96 = vsyncpa [#allocation31], 0
    %97 = vsyncpa [#allocation34], 0
    %98 = vsyncpa [#allocation37], 0
    %99 = vsyncpa [#allocation40], 0
    loop: start=0, step=1, limit=4
    $region2: #{tpu_custom_call.1} parent=1 // loop_pre_header
      _
    $region3: #{tpu_custom_call.1} parent=1 // loop_header
      %s101 = sphi 0, %s105
      %p102 = scmp.ge.s32.totalorder %s101, 4
      %s109 = sphi 0, %s109
      %s111 = sphi 0, %s109
      %s112 = sphi 0, %s111
      %s126 = sphi 0, %s112
      %s132 = sphi 0, %s134
      %s135 = sphi 0, %s132
      %s136 = sphi 0, %s135
      %s152 = sphi 0, %s136
      %s158 = sphi 0, %s160
      %s161 = sphi 0, %s158
      %s162 = sphi 0, %s161
      %s178 = sphi 0, %s162
      %s184 = sphi 0, %s186
      %s187 = sphi 0, %s184
      %s188 = sphi 0, %s187
      %s204 = sphi 0, %s188
      %s208 = sphi 0, %s208
      %s210 = sphi 0, %s208
      %s211 = sphi 0, %s210
      %s225 = sphi 0, %s211
      %s229 = sphi 0, %s229
      %s231 = sphi 0, %s229
      %s232 = sphi 0, %s231
      %s246 = sphi 0, %s232
      %s250 = sphi 0, %s250
      %s252 = sphi 0, %s250
      %s253 = sphi 0, %s252
      %s267 = sphi 0, %s253
      %s271 = sphi 0, %s271
      %s273 = sphi 0, %s271
      %s274 = sphi 0, %s273
      %s288 = sphi 0, %s274
      %s292 = sphi 0, %s292
      %s294 = sphi 0, %s292
      %s295 = sphi 0, %s294
      %s309 = sphi 0, %s295
      %s313 = sphi 0, %s313
      %s315 = sphi 0, %s313
      %s316 = sphi 0, %s315
      %s330 = sphi 0, %s316
      %s334 = sphi 0, %s334
      %s336 = sphi 0, %s334
      %s337 = sphi 0, %s336
      %s351 = sphi 0, %s337
      %s355 = sphi 0, %s355
      %s357 = sphi 0, %s355
      %s358 = sphi 0, %s357
      %s372 = sphi 0, %s358
      %s376 = sphi 0, %s376
      %s378 = sphi 0, %s376
      %s379 = sphi 0, %s378
      %s393 = sphi 0, %s379
      %s397 = sphi 0, %s397
      %s399 = sphi 0, %s397
      %s400 = sphi 0, %s399
      %s414 = sphi 0, %s400
      %s418 = sphi 0, %s418
      %s420 = sphi 0, %s418
      %s421 = sphi 0, %s420
      %s435 = sphi 0, %s421
      %s439 = sphi 0, %s439
      %s441 = sphi 0, %s439
      %s442 = sphi 0, %s441
      %s456 = sphi 0, %s442
      %s460 = sphi 0, %s460
      %s462 = sphi 0, %s460
      %s463 = sphi 0, %s462
      %s477 = sphi 0, %s463
      %s481 = sphi 0, %s481
      %s483 = sphi 0, %s481
      %s484 = sphi 0, %s483
      %s498 = sphi 0, %s484
      %s502 = sphi 0, %s502
      %s504 = sphi 0, %s502
      %s505 = sphi 0, %s504
      %s519 = sphi 0, %s505
      %s523 = sphi 0, %s523
      %s525 = sphi 0, %s523
      %s526 = sphi 0, %s525
      %s540 = sphi 0, %s526
      %s544 = sphi 0, %s544
      %s546 = sphi 0, %s544
      %s547 = sphi 0, %s546
      %s561 = sphi 0, %s547
      %s565 = sphi 0, %s565
      %s567 = sphi 0, %s565
      %s568 = sphi 0, %s567
      %s582 = sphi 0, %s568
      %s586 = sphi 0, %s586
      %s588 = sphi 0, %s586
      %s589 = sphi 0, %s588
      %s603 = sphi 0, %s589
      %s607 = sphi 0, %s607
      %s609 = sphi 0, %s607
      %s610 = sphi 0, %s609
      %s624 = sphi 0, %s610
      %s628 = sphi 0, %s628
      %s630 = sphi 0, %s628
      %s631 = sphi 0, %s630
      %s645 = sphi 0, %s631
      %s649 = sphi 0, %s649
      %s651 = sphi 0, %s649
      %s652 = sphi 0, %s651
      %s666 = sphi 0, %s652
      %s670 = sphi 0, %s670
      %s672 = sphi 0, %s670
      %s673 = sphi 0, %s672
      %s687 = sphi 0, %s673
      %s691 = sphi 0, %s691
      %s693 = sphi 0, %s691
      %s694 = sphi 0, %s693
      %s708 = sphi 0, %s694
      %s712 = sphi 0, %s712
      %s714 = sphi 0, %s712
      %s715 = sphi 0, %s714
      %s729 = sphi 0, %s715
      %s733 = sphi 0, %s733
      %s735 = sphi 0, %s733
      %s736 = sphi 0, %s735
      %s750 = sphi 0, %s736
      %s754 = sphi 0, %s754
      %s756 = sphi 0, %s754
      %s757 = sphi 0, %s756
      %s771 = sphi 0, %s757
      %s775 = sphi 0, %s775
      %s777 = sphi 0, %s775
      %s778 = sphi 0, %s777
      %s792 = sphi 0, %s778
      %s796 = sphi 0, %s796
      %s798 = sphi 0, %s796
      %s799 = sphi 0, %s798
      %s813 = sphi 0, %s799
      %s817 = sphi 0, %s817
      %s819 = sphi 0, %s817
      %s820 = sphi 0, %s819
      %s834 = sphi 0, %s820
      %s838 = sphi 0, %s838
      %s840 = sphi 0, %s838
      %s841 = sphi 0, %s840
      %s855 = sphi 0, %s841
      %s859 = sphi 0, %s859
      %s861 = sphi 0, %s859
      %s862 = sphi 0, %s861
      %s876 = sphi 0, %s862
      %s880 = sphi 0, %s880
      %s882 = sphi 0, %s880
      %s883 = sphi 0, %s882
      %s897 = sphi 0, %s883
      %s901 = sphi 0, %s901
      %s903 = sphi 0, %s901
      %s904 = sphi 0, %s903
      %s918 = sphi 0, %s904
      %s922 = sphi 0, %s922
      %s924 = sphi 0, %s922
      %s925 = sphi 0, %s924
      %s939 = sphi 0, %s925
      %s943 = sphi 0, %s943
      %s945 = sphi 0, %s943
      %s946 = sphi 0, %s945
      %s960 = sphi 0, %s946
      %s966 = sphi 0, %s968
      %s969 = sphi 0, %s966
      %s970 = sphi 0, %s969
      %s986 = sphi 0, %s970
    $region4: #{tpu_custom_call.1} parent=1 // loop_header_branch
      %104 = sbr.rel (%p102) target = $region8
    $region5: #{tpu_custom_call.1} parent=1 // loop_body
      %s106 = ssub.s32 %s101, 1
      %s107 = ssub.s32 %s101, 2
      %s108 = sadd.s32 %s101, 1
      %s110 = sadd.s32 %s109, 1
      %p113 = scmp.eq.s32.totalorder %s101, 1
      %p114 = scmp.ne.s32.totalorder %s109, %s111
      %p115 = scmp.eq.s32.totalorder %s101, 0
      %p116 = por %p114, %p115
      %p117 = scmp.ne.s32.totalorder %s109, %s111
      %p118 = scmp.eq.s32.totalorder %s106, 1
      %p119 = por %p117, %p118
      %p120 = scmp.ne.s32.totalorder %s111, %s112
      %p121 = scmp.eq.s32.totalorder %s106, 0
      %p122 = por %p120, %p121
      %p123 = scmp.ne.s32.totalorder %s111, %s112
      %p124 = scmp.eq.s32.totalorder %s107, 1
      %p125 = por %p123, %p124
      %p127 = scmp.ne.s32.totalorder %s112, %s126
      %p128 = scmp.eq.s32.totalorder %s107, 0
      %p129 = por %p127, %p128
      %s130 = ssub.s32 %s101, %s108
      %p131 = scmp.eq.s32.totalorder %s130, 0
      %s133 = sadd.s32 %s132, 1
      %s134 = scalar_select %p131, %s132, %s133
      %p137 = pneg %p131
      %p138 = scmp.eq.s32.totalorder %s101, 1
      %p139 = por %p137, %p138
      %p140 = scmp.ne.s32.totalorder %s132, %s135
      %p141 = scmp.eq.s32.totalorder %s101, 0
      %p142 = por %p140, %p141
      %p143 = scmp.ne.s32.totalorder %s132, %s135
      %p144 = scmp.eq.s32.totalorder %s106, 1
      %p145 = por %p143, %p144
      %p146 = scmp.ne.s32.totalorder %s135, %s136
      %p147 = scmp.eq.s32.totalorder %s106, 0
      %p148 = por %p146, %p147
      %p149 = scmp.ne.s32.totalorder %s135, %s136
      %p150 = scmp.eq.s32.totalorder %s107, 1
      %p151 = por %p149, %p150
      %p153 = scmp.ne.s32.totalorder %s136, %s152
      %p154 = scmp.eq.s32.totalorder %s107, 0
      %p155 = por %p153, %p154
      %s156 = ssub.s32 %s101, %s108
      %p157 = scmp.eq.s32.totalorder %s156, 0
      %s159 = sadd.s32 %s158, 1
      %s160 = scalar_select %p157, %s158, %s159
      %p163 = pneg %p157
      %p164 = scmp.eq.s32.totalorder %s101, 1
      %p165 = por %p163, %p164
      %p166 = scmp.ne.s32.totalorder %s158, %s161
      %p167 = scmp.eq.s32.totalorder %s101, 0
      %p168 = por %p166, %p167
      %p169 = scmp.ne.s32.totalorder %s158, %s161
      %p170 = scmp.eq.s32.totalorder %s106, 1
      %p171 = por %p169, %p170
      %p172 = scmp.ne.s32.totalorder %s161, %s162
      %p173 = scmp.eq.s32.totalorder %s106, 0
      %p174 = por %p172, %p173
      %p175 = scmp.ne.s32.totalorder %s161, %s162
      %p176 = scmp.eq.s32.totalorder %s107, 1
      %p177 = por %p175, %p176
      %p179 = scmp.ne.s32.totalorder %s162, %s178
      %p180 = scmp.eq.s32.totalorder %s107, 0
      %p181 = por %p179, %p180
      %s182 = ssub.s32 %s101, %s108
      %p183 = scmp.eq.s32.totalorder %s182, 0
      %s185 = sadd.s32 %s184, 1
      %s186 = scalar_select %p183, %s184, %s185
      %p189 = pneg %p183
      %p190 = scmp.eq.s32.totalorder %s101, 1
      %p191 = por %p189, %p190
      %p192 = scmp.ne.s32.totalorder %s184, %s187
      %p193 = scmp.eq.s32.totalorder %s101, 0
      %p194 = por %p192, %p193
      %p195 = scmp.ne.s32.totalorder %s184, %s187
      %p196 = scmp.eq.s32.totalorder %s106, 1
      %p197 = por %p195, %p196
      %p198 = scmp.ne.s32.totalorder %s187, %s188
      %p199 = scmp.eq.s32.totalorder %s106, 0
      %p200 = por %p198, %p199
      %p201 = scmp.ne.s32.totalorder %s187, %s188
      %p202 = scmp.eq.s32.totalorder %s107, 1
      %p203 = por %p201, %p202
      %p205 = scmp.ne.s32.totalorder %s188, %s204
      %p206 = scmp.eq.s32.totalorder %s107, 0
      %p207 = por %p205, %p206
      %s209 = sadd.s32 %s208, 1
      %p212 = scmp.eq.s32.totalorder %s101, 1
      %p213 = scmp.ne.s32.totalorder %s208, %s210
      %p214 = scmp.eq.s32.totalorder %s101, 0
      %p215 = por %p213, %p214
      %p216 = scmp.ne.s32.totalorder %s208, %s210
      %p217 = scmp.eq.s32.totalorder %s106, 1
      %p218 = por %p216, %p217
      %p219 = scmp.ne.s32.totalorder %s210, %s211
      %p220 = scmp.eq.s32.totalorder %s106, 0
      %p221 = por %p219, %p220
      %p222 = scmp.ne.s32.totalorder %s210, %s211
      %p223 = scmp.eq.s32.totalorder %s107, 1
      %p224 = por %p222, %p223
      %p226 = scmp.ne.s32.totalorder %s211, %s225
      %p227 = scmp.eq.s32.totalorder %s107, 0
      %p228 = por %p226, %p227
      %s230 = sadd.s32 %s229, 1
      %p233 = scmp.eq.s32.totalorder %s101, 1
      %p234 = scmp.ne.s32.totalorder %s229, %s231
      %p235 = scmp.eq.s32.totalorder %s101, 0
      %p236 = por %p234, %p235
      %p237 = scmp.ne.s32.totalorder %s229, %s231
      %p238 = scmp.eq.s32.totalorder %s106, 1
      %p239 = por %p237, %p238
      %p240 = scmp.ne.s32.totalorder %s231, %s232
      %p241 = scmp.eq.s32.totalorder %s106, 0
      %p242 = por %p240, %p241
      %p243 = scmp.ne.s32.totalorder %s231, %s232
      %p244 = scmp.eq.s32.totalorder %s107, 1
      %p245 = por %p243, %p244
      %p247 = scmp.ne.s32.totalorder %s232, %s246
      %p248 = scmp.eq.s32.totalorder %s107, 0
      %p249 = por %p247, %p248
      %s251 = sadd.s32 %s250, 1
      %p254 = scmp.eq.s32.totalorder %s101, 1
      %p255 = scmp.ne.s32.totalorder %s250, %s252
      %p256 = scmp.eq.s32.totalorder %s101, 0
      %p257 = por %p255, %p256
      %p258 = scmp.ne.s32.totalorder %s250, %s252
      %p259 = scmp.eq.s32.totalorder %s106, 1
      %p260 = por %p258, %p259
      %p261 = scmp.ne.s32.totalorder %s252, %s253
      %p262 = scmp.eq.s32.totalorder %s106, 0
      %p263 = por %p261, %p262
      %p264 = scmp.ne.s32.totalorder %s252, %s253
      %p265 = scmp.eq.s32.totalorder %s107, 1
      %p266 = por %p264, %p265
      %p268 = scmp.ne.s32.totalorder %s253, %s267
      %p269 = scmp.eq.s32.totalorder %s107, 0
      %p270 = por %p268, %p269
      %s272 = sadd.s32 %s271, 1
      %p275 = scmp.eq.s32.totalorder %s101, 1
      %p276 = scmp.ne.s32.totalorder %s271, %s273
      %p277 = scmp.eq.s32.totalorder %s101, 0
      %p278 = por %p276, %p277
      %p279 = scmp.ne.s32.totalorder %s271, %s273
      %p280 = scmp.eq.s32.totalorder %s106, 1
      %p281 = por %p279, %p280
      %p282 = scmp.ne.s32.totalorder %s273, %s274
      %p283 = scmp.eq.s32.totalorder %s106, 0
      %p284 = por %p282, %p283
      %p285 = scmp.ne.s32.totalorder %s273, %s274
      %p286 = scmp.eq.s32.totalorder %s107, 1
      %p287 = por %p285, %p286
      %p289 = scmp.ne.s32.totalorder %s274, %s288
      %p290 = scmp.eq.s32.totalorder %s107, 0
      %p291 = por %p289, %p290
      %s293 = sadd.s32 %s292, 1
      %p296 = scmp.eq.s32.totalorder %s101, 1
      %p297 = scmp.ne.s32.totalorder %s292, %s294
      %p298 = scmp.eq.s32.totalorder %s101, 0
      %p299 = por %p297, %p298
      %p300 = scmp.ne.s32.totalorder %s292, %s294
      %p301 = scmp.eq.s32.totalorder %s106, 1
      %p302 = por %p300, %p301
      %p303 = scmp.ne.s32.totalorder %s294, %s295
      %p304 = scmp.eq.s32.totalorder %s106, 0
      %p305 = por %p303, %p304
      %p306 = scmp.ne.s32.totalorder %s294, %s295
      %p307 = scmp.eq.s32.totalorder %s107, 1
      %p308 = por %p306, %p307
      %p310 = scmp.ne.s32.totalorder %s295, %s309
      %p311 = scmp.eq.s32.totalorder %s107, 0
      %p312 = por %p310, %p311
      %s314 = sadd.s32 %s313, 1
      %p317 = scmp.eq.s32.totalorder %s101, 1
      %p318 = scmp.ne.s32.totalorder %s313, %s315
      %p319 = scmp.eq.s32.totalorder %s101, 0
      %p320 = por %p318, %p319
      %p321 = scmp.ne.s32.totalorder %s313, %s315
      %p322 = scmp.eq.s32.totalorder %s106, 1
      %p323 = por %p321, %p322
      %p324 = scmp.ne.s32.totalorder %s315, %s316
      %p325 = scmp.eq.s32.totalorder %s106, 0
      %p326 = por %p324, %p325
      %p327 = scmp.ne.s32.totalorder %s315, %s316
      %p328 = scmp.eq.s32.totalorder %s107, 1
      %p329 = por %p327, %p328
      %p331 = scmp.ne.s32.totalorder %s316, %s330
      %p332 = scmp.eq.s32.totalorder %s107, 0
      %p333 = por %p331, %p332
      %s335 = sadd.s32 %s334, 1
      %p338 = scmp.eq.s32.totalorder %s101, 1
      %p339 = scmp.ne.s32.totalorder %s334, %s336
      %p340 = scmp.eq.s32.totalorder %s101, 0
      %p341 = por %p339, %p340
      %p342 = scmp.ne.s32.totalorder %s334, %s336
      %p343 = scmp.eq.s32.totalorder %s106, 1
      %p344 = por %p342, %p343
      %p345 = scmp.ne.s32.totalorder %s336, %s337
      %p346 = scmp.eq.s32.totalorder %s106, 0
      %p347 = por %p345, %p346
      %p348 = scmp.ne.s32.totalorder %s336, %s337
      %p349 = scmp.eq.s32.totalorder %s107, 1
      %p350 = por %p348, %p349
      %p352 = scmp.ne.s32.totalorder %s337, %s351
      %p353 = scmp.eq.s32.totalorder %s107, 0
      %p354 = por %p352, %p353
      %s356 = sadd.s32 %s355, 1
      %p359 = scmp.eq.s32.totalorder %s101, 1
      %p360 = scmp.ne.s32.totalorder %s355, %s357
      %p361 = scmp.eq.s32.totalorder %s101, 0
      %p362 = por %p360, %p361
      %p363 = scmp.ne.s32.totalorder %s355, %s357
      %p364 = scmp.eq.s32.totalorder %s106, 1
      %p365 = por %p363, %p364
      %p366 = scmp.ne.s32.totalorder %s357, %s358
      %p367 = scmp.eq.s32.totalorder %s106, 0
      %p368 = por %p366, %p367
      %p369 = scmp.ne.s32.totalorder %s357, %s358
      %p370 = scmp.eq.s32.totalorder %s107, 1
      %p371 = por %p369, %p370
      %p373 = scmp.ne.s32.totalorder %s358, %s372
      %p374 = scmp.eq.s32.totalorder %s107, 0
      %p375 = por %p373, %p374
      %s377 = sadd.s32 %s376, 1
      %p380 = scmp.eq.s32.totalorder %s101, 1
      %p381 = scmp.ne.s32.totalorder %s376, %s378
      %p382 = scmp.eq.s32.totalorder %s101, 0
      %p383 = por %p381, %p382
      %p384 = scmp.ne.s32.totalorder %s376, %s378
      %p385 = scmp.eq.s32.totalorder %s106, 1
      %p386 = por %p384, %p385
      %p387 = scmp.ne.s32.totalorder %s378, %s379
      %p388 = scmp.eq.s32.totalorder %s106, 0
      %p389 = por %p387, %p388
      %p390 = scmp.ne.s32.totalorder %s378, %s379
      %p391 = scmp.eq.s32.totalorder %s107, 1
      %p392 = por %p390, %p391
      %p394 = scmp.ne.s32.totalorder %s379, %s393
      %p395 = scmp.eq.s32.totalorder %s107, 0
      %p396 = por %p394, %p395
      %s398 = sadd.s32 %s397, 1
      %p401 = scmp.eq.s32.totalorder %s101, 1
      %p402 = scmp.ne.s32.totalorder %s397, %s399
      %p403 = scmp.eq.s32.totalorder %s101, 0
      %p404 = por %p402, %p403
      %p405 = scmp.ne.s32.totalorder %s397, %s399
      %p406 = scmp.eq.s32.totalorder %s106, 1
      %p407 = por %p405, %p406
      %p408 = scmp.ne.s32.totalorder %s399, %s400
      %p409 = scmp.eq.s32.totalorder %s106, 0
      %p410 = por %p408, %p409
      %p411 = scmp.ne.s32.totalorder %s399, %s400
      %p412 = scmp.eq.s32.totalorder %s107, 1
      %p413 = por %p411, %p412
      %p415 = scmp.ne.s32.totalorder %s400, %s414
      %p416 = scmp.eq.s32.totalorder %s107, 0
      %p417 = por %p415, %p416
      %s419 = sadd.s32 %s418, 1
      %p422 = scmp.eq.s32.totalorder %s101, 1
      %p423 = scmp.ne.s32.totalorder %s418, %s420
      %p424 = scmp.eq.s32.totalorder %s101, 0
      %p425 = por %p423, %p424
      %p426 = scmp.ne.s32.totalorder %s418, %s420
      %p427 = scmp.eq.s32.totalorder %s106, 1
      %p428 = por %p426, %p427
      %p429 = scmp.ne.s32.totalorder %s420, %s421
      %p430 = scmp.eq.s32.totalorder %s106, 0
      %p431 = por %p429, %p430
      %p432 = scmp.ne.s32.totalorder %s420, %s421
      %p433 = scmp.eq.s32.totalorder %s107, 1
      %p434 = por %p432, %p433
      %p436 = scmp.ne.s32.totalorder %s421, %s435
      %p437 = scmp.eq.s32.totalorder %s107, 0
      %p438 = por %p436, %p437
      %s440 = sadd.s32 %s439, 1
      %p443 = scmp.eq.s32.totalorder %s101, 1
      %p444 = scmp.ne.s32.totalorder %s439, %s441
      %p445 = scmp.eq.s32.totalorder %s101, 0
      %p446 = por %p444, %p445
      %p447 = scmp.ne.s32.totalorder %s439, %s441
      %p448 = scmp.eq.s32.totalorder %s106, 1
      %p449 = por %p447, %p448
      %p450 = scmp.ne.s32.totalorder %s441, %s442
      %p451 = scmp.eq.s32.totalorder %s106, 0
      %p452 = por %p450, %p451
      %p453 = scmp.ne.s32.totalorder %s441, %s442
      %p454 = scmp.eq.s32.totalorder %s107, 1
      %p455 = por %p453, %p454
      %p457 = scmp.ne.s32.totalorder %s442, %s456
      %p458 = scmp.eq.s32.totalorder %s107, 0
      %p459 = por %p457, %p458
      %s461 = sadd.s32 %s460, 1
      %p464 = scmp.eq.s32.totalorder %s101, 1
      %p465 = scmp.ne.s32.totalorder %s460, %s462
      %p466 = scmp.eq.s32.totalorder %s101, 0
      %p467 = por %p465, %p466
      %p468 = scmp.ne.s32.totalorder %s460, %s462
      %p469 = scmp.eq.s32.totalorder %s106, 1
      %p470 = por %p468, %p469
      %p471 = scmp.ne.s32.totalorder %s462, %s463
      %p472 = scmp.eq.s32.totalorder %s106, 0
      %p473 = por %p471, %p472
      %p474 = scmp.ne.s32.totalorder %s462, %s463
      %p475 = scmp.eq.s32.totalorder %s107, 1
      %p476 = por %p474, %p475
      %p478 = scmp.ne.s32.totalorder %s463, %s477
      %p479 = scmp.eq.s32.totalorder %s107, 0
      %p480 = por %p478, %p479
      %s482 = sadd.s32 %s481, 1
      %p485 = scmp.eq.s32.totalorder %s101, 1
      %p486 = scmp.ne.s32.totalorder %s481, %s483
      %p487 = scmp.eq.s32.totalorder %s101, 0
      %p488 = por %p486, %p487
      %p489 = scmp.ne.s32.totalorder %s481, %s483
      %p490 = scmp.eq.s32.totalorder %s106, 1
      %p491 = por %p489, %p490
      %p492 = scmp.ne.s32.totalorder %s483, %s484
      %p493 = scmp.eq.s32.totalorder %s106, 0
      %p494 = por %p492, %p493
      %p495 = scmp.ne.s32.totalorder %s483, %s484
      %p496 = scmp.eq.s32.totalorder %s107, 1
      %p497 = por %p495, %p496
      %p499 = scmp.ne.s32.totalorder %s484, %s498
      %p500 = scmp.eq.s32.totalorder %s107, 0
      %p501 = por %p499, %p500
      %s503 = sadd.s32 %s502, 1
      %p506 = scmp.eq.s32.totalorder %s101, 1
      %p507 = scmp.ne.s32.totalorder %s502, %s504
      %p508 = scmp.eq.s32.totalorder %s101, 0
      %p509 = por %p507, %p508
      %p510 = scmp.ne.s32.totalorder %s502, %s504
      %p511 = scmp.eq.s32.totalorder %s106, 1
      %p512 = por %p510, %p511
      %p513 = scmp.ne.s32.totalorder %s504, %s505
      %p514 = scmp.eq.s32.totalorder %s106, 0
      %p515 = por %p513, %p514
      %p516 = scmp.ne.s32.totalorder %s504, %s505
      %p517 = scmp.eq.s32.totalorder %s107, 1
      %p518 = por %p516, %p517
      %p520 = scmp.ne.s32.totalorder %s505, %s519
      %p521 = scmp.eq.s32.totalorder %s107, 0
      %p522 = por %p520, %p521
      %s524 = sadd.s32 %s523, 1
      %p527 = scmp.eq.s32.totalorder %s101, 1
      %p528 = scmp.ne.s32.totalorder %s523, %s525
      %p529 = scmp.eq.s32.totalorder %s101, 0
      %p530 = por %p528, %p529
      %p531 = scmp.ne.s32.totalorder %s523, %s525
      %p532 = scmp.eq.s32.totalorder %s106, 1
      %p533 = por %p531, %p532
      %p534 = scmp.ne.s32.totalorder %s525, %s526
      %p535 = scmp.eq.s32.totalorder %s106, 0
      %p536 = por %p534, %p535
      %p537 = scmp.ne.s32.totalorder %s525, %s526
      %p538 = scmp.eq.s32.totalorder %s107, 1
      %p539 = por %p537, %p538
      %p541 = scmp.ne.s32.totalorder %s526, %s540
      %p542 = scmp.eq.s32.totalorder %s107, 0
      %p543 = por %p541, %p542
      %s545 = sadd.s32 %s544, 1
      %p548 = scmp.eq.s32.totalorder %s101, 1
      %p549 = scmp.ne.s32.totalorder %s544, %s546
      %p550 = scmp.eq.s32.totalorder %s101, 0
      %p551 = por %p549, %p550
      %p552 = scmp.ne.s32.totalorder %s544, %s546
      %p553 = scmp.eq.s32.totalorder %s106, 1
      %p554 = por %p552, %p553
      %p555 = scmp.ne.s32.totalorder %s546, %s547
      %p556 = scmp.eq.s32.totalorder %s106, 0
      %p557 = por %p555, %p556
      %p558 = scmp.ne.s32.totalorder %s546, %s547
      %p559 = scmp.eq.s32.totalorder %s107, 1
      %p560 = por %p558, %p559
      %p562 = scmp.ne.s32.totalorder %s547, %s561
      %p563 = scmp.eq.s32.totalorder %s107, 0
      %p564 = por %p562, %p563
      %s566 = sadd.s32 %s565, 1
      %p569 = scmp.eq.s32.totalorder %s101, 1
      %p570 = scmp.ne.s32.totalorder %s565, %s567
      %p571 = scmp.eq.s32.totalorder %s101, 0
      %p572 = por %p570, %p571
      %p573 = scmp.ne.s32.totalorder %s565, %s567
      %p574 = scmp.eq.s32.totalorder %s106, 1
      %p575 = por %p573, %p574
      %p576 = scmp.ne.s32.totalorder %s567, %s568
      %p577 = scmp.eq.s32.totalorder %s106, 0
      %p578 = por %p576, %p577
      %p579 = scmp.ne.s32.totalorder %s567, %s568
      %p580 = scmp.eq.s32.totalorder %s107, 1
      %p581 = por %p579, %p580
      %p583 = scmp.ne.s32.totalorder %s568, %s582
      %p584 = scmp.eq.s32.totalorder %s107, 0
      %p585 = por %p583, %p584
      %s587 = sadd.s32 %s586, 1
      %p590 = scmp.eq.s32.totalorder %s101, 1
      %p591 = scmp.ne.s32.totalorder %s586, %s588
      %p592 = scmp.eq.s32.totalorder %s101, 0
      %p593 = por %p591, %p592
      %p594 = scmp.ne.s32.totalorder %s586, %s588
      %p595 = scmp.eq.s32.totalorder %s106, 1
      %p596 = por %p594, %p595
      %p597 = scmp.ne.s32.totalorder %s588, %s589
      %p598 = scmp.eq.s32.totalorder %s106, 0
      %p599 = por %p597, %p598
      %p600 = scmp.ne.s32.totalorder %s588, %s589
      %p601 = scmp.eq.s32.totalorder %s107, 1
      %p602 = por %p600, %p601
      %p604 = scmp.ne.s32.totalorder %s589, %s603
      %p605 = scmp.eq.s32.totalorder %s107, 0
      %p606 = por %p604, %p605
      %s608 = sadd.s32 %s607, 1
      %p611 = scmp.eq.s32.totalorder %s101, 1
      %p612 = scmp.ne.s32.totalorder %s607, %s609
      %p613 = scmp.eq.s32.totalorder %s101, 0
      %p614 = por %p612, %p613
      %p615 = scmp.ne.s32.totalorder %s607, %s609
      %p616 = scmp.eq.s32.totalorder %s106, 1
      %p617 = por %p615, %p616
      %p618 = scmp.ne.s32.totalorder %s609, %s610
      %p619 = scmp.eq.s32.totalorder %s106, 0
      %p620 = por %p618, %p619
      %p621 = scmp.ne.s32.totalorder %s609, %s610
      %p622 = scmp.eq.s32.totalorder %s107, 1
      %p623 = por %p621, %p622
      %p625 = scmp.ne.s32.totalorder %s610, %s624
      %p626 = scmp.eq.s32.totalorder %s107, 0
      %p627 = por %p625, %p626
      %s629 = sadd.s32 %s628, 1
      %p632 = scmp.eq.s32.totalorder %s101, 1
      %p633 = scmp.ne.s32.totalorder %s628, %s630
      %p634 = scmp.eq.s32.totalorder %s101, 0
      %p635 = por %p633, %p634
      %p636 = scmp.ne.s32.totalorder %s628, %s630
      %p637 = scmp.eq.s32.totalorder %s106, 1
      %p638 = por %p636, %p637
      %p639 = scmp.ne.s32.totalorder %s630, %s631
      %p640 = scmp.eq.s32.totalorder %s106, 0
      %p641 = por %p639, %p640
      %p642 = scmp.ne.s32.totalorder %s630, %s631
      %p643 = scmp.eq.s32.totalorder %s107, 1
      %p644 = por %p642, %p643
      %p646 = scmp.ne.s32.totalorder %s631, %s645
      %p647 = scmp.eq.s32.totalorder %s107, 0
      %p648 = por %p646, %p647
      %s650 = sadd.s32 %s649, 1
      %p653 = scmp.eq.s32.totalorder %s101, 1
      %p654 = scmp.ne.s32.totalorder %s649, %s651
      %p655 = scmp.eq.s32.totalorder %s101, 0
      %p656 = por %p654, %p655
      %p657 = scmp.ne.s32.totalorder %s649, %s651
      %p658 = scmp.eq.s32.totalorder %s106, 1
      %p659 = por %p657, %p658
      %p660 = scmp.ne.s32.totalorder %s651, %s652
      %p661 = scmp.eq.s32.totalorder %s106, 0
      %p662 = por %p660, %p661
      %p663 = scmp.ne.s32.totalorder %s651, %s652
      %p664 = scmp.eq.s32.totalorder %s107, 1
      %p665 = por %p663, %p664
      %p667 = scmp.ne.s32.totalorder %s652, %s666
      %p668 = scmp.eq.s32.totalorder %s107, 0
      %p669 = por %p667, %p668
      %s671 = sadd.s32 %s670, 1
      %p674 = scmp.eq.s32.totalorder %s101, 1
      %p675 = scmp.ne.s32.totalorder %s670, %s672
      %p676 = scmp.eq.s32.totalorder %s101, 0
      %p677 = por %p675, %p676
      %p678 = scmp.ne.s32.totalorder %s670, %s672
      %p679 = scmp.eq.s32.totalorder %s106, 1
      %p680 = por %p678, %p679
      %p681 = scmp.ne.s32.totalorder %s672, %s673
      %p682 = scmp.eq.s32.totalorder %s106, 0
      %p683 = por %p681, %p682
      %p684 = scmp.ne.s32.totalorder %s672, %s673
      %p685 = scmp.eq.s32.totalorder %s107, 1
      %p686 = por %p684, %p685
      %p688 = scmp.ne.s32.totalorder %s673, %s687
      %p689 = scmp.eq.s32.totalorder %s107, 0
      %p690 = por %p688, %p689
      %s692 = sadd.s32 %s691, 1
      %p695 = scmp.eq.s32.totalorder %s101, 1
      %p696 = scmp.ne.s32.totalorder %s691, %s693
      %p697 = scmp.eq.s32.totalorder %s101, 0
      %p698 = por %p696, %p697
      %p699 = scmp.ne.s32.totalorder %s691, %s693
      %p700 = scmp.eq.s32.totalorder %s106, 1
      %p701 = por %p699, %p700
      %p702 = scmp.ne.s32.totalorder %s693, %s694
      %p703 = scmp.eq.s32.totalorder %s106, 0
      %p704 = por %p702, %p703
      %p705 = scmp.ne.s32.totalorder %s693, %s694
      %p706 = scmp.eq.s32.totalorder %s107, 1
      %p707 = por %p705, %p706
      %p709 = scmp.ne.s32.totalorder %s694, %s708
      %p710 = scmp.eq.s32.totalorder %s107, 0
      %p711 = por %p709, %p710
      %s713 = sadd.s32 %s712, 1
      %p716 = scmp.eq.s32.totalorder %s101, 1
      %p717 = scmp.ne.s32.totalorder %s712, %s714
      %p718 = scmp.eq.s32.totalorder %s101, 0
      %p719 = por %p717, %p718
      %p720 = scmp.ne.s32.totalorder %s712, %s714
      %p721 = scmp.eq.s32.totalorder %s106, 1
      %p722 = por %p720, %p721
      %p723 = scmp.ne.s32.totalorder %s714, %s715
      %p724 = scmp.eq.s32.totalorder %s106, 0
      %p725 = por %p723, %p724
      %p726 = scmp.ne.s32.totalorder %s714, %s715
      %p727 = scmp.eq.s32.totalorder %s107, 1
      %p728 = por %p726, %p727
      %p730 = scmp.ne.s32.totalorder %s715, %s729
      %p731 = scmp.eq.s32.totalorder %s107, 0
      %p732 = por %p730, %p731
      %s734 = sadd.s32 %s733, 1
      %p737 = scmp.eq.s32.totalorder %s101, 1
      %p738 = scmp.ne.s32.totalorder %s733, %s735
      %p739 = scmp.eq.s32.totalorder %s101, 0
      %p740 = por %p738, %p739
      %p741 = scmp.ne.s32.totalorder %s733, %s735
      %p742 = scmp.eq.s32.totalorder %s106, 1
      %p743 = por %p741, %p742
      %p744 = scmp.ne.s32.totalorder %s735, %s736
      %p745 = scmp.eq.s32.totalorder %s106, 0
      %p746 = por %p744, %p745
      %p747 = scmp.ne.s32.totalorder %s735, %s736
      %p748 = scmp.eq.s32.totalorder %s107, 1
      %p749 = por %p747, %p748
      %p751 = scmp.ne.s32.totalorder %s736, %s750
      %p752 = scmp.eq.s32.totalorder %s107, 0
      %p753 = por %p751, %p752
      %s755 = sadd.s32 %s754, 1
      %p758 = scmp.eq.s32.totalorder %s101, 1
      %p759 = scmp.ne.s32.totalorder %s754, %s756
      %p760 = scmp.eq.s32.totalorder %s101, 0
      %p761 = por %p759, %p760
      %p762 = scmp.ne.s32.totalorder %s754, %s756
      %p763 = scmp.eq.s32.totalorder %s106, 1
      %p764 = por %p762, %p763
      %p765 = scmp.ne.s32.totalorder %s756, %s757
      %p766 = scmp.eq.s32.totalorder %s106, 0
      %p767 = por %p765, %p766
      %p768 = scmp.ne.s32.totalorder %s756, %s757
      %p769 = scmp.eq.s32.totalorder %s107, 1
      %p770 = por %p768, %p769
      %p772 = scmp.ne.s32.totalorder %s757, %s771
      %p773 = scmp.eq.s32.totalorder %s107, 0
      %p774 = por %p772, %p773
      %s776 = sadd.s32 %s775, 1
      %p779 = scmp.eq.s32.totalorder %s101, 1
      %p780 = scmp.ne.s32.totalorder %s775, %s777
      %p781 = scmp.eq.s32.totalorder %s101, 0
      %p782 = por %p780, %p781
      %p783 = scmp.ne.s32.totalorder %s775, %s777
      %p784 = scmp.eq.s32.totalorder %s106, 1
      %p785 = por %p783, %p784
      %p786 = scmp.ne.s32.totalorder %s777, %s778
      %p787 = scmp.eq.s32.totalorder %s106, 0
      %p788 = por %p786, %p787
      %p789 = scmp.ne.s32.totalorder %s777, %s778
      %p790 = scmp.eq.s32.totalorder %s107, 1
      %p791 = por %p789, %p790
      %p793 = scmp.ne.s32.totalorder %s778, %s792
      %p794 = scmp.eq.s32.totalorder %s107, 0
      %p795 = por %p793, %p794
      %s797 = sadd.s32 %s796, 1
      %p800 = scmp.eq.s32.totalorder %s101, 1
      %p801 = scmp.ne.s32.totalorder %s796, %s798
      %p802 = scmp.eq.s32.totalorder %s101, 0
      %p803 = por %p801, %p802
      %p804 = scmp.ne.s32.totalorder %s796, %s798
      %p805 = scmp.eq.s32.totalorder %s106, 1
      %p806 = por %p804, %p805
      %p807 = scmp.ne.s32.totalorder %s798, %s799
      %p808 = scmp.eq.s32.totalorder %s106, 0
      %p809 = por %p807, %p808
      %p810 = scmp.ne.s32.totalorder %s798, %s799
      %p811 = scmp.eq.s32.totalorder %s107, 1
      %p812 = por %p810, %p811
      %p814 = scmp.ne.s32.totalorder %s799, %s813
      %p815 = scmp.eq.s32.totalorder %s107, 0
      %p816 = por %p814, %p815
      %s818 = sadd.s32 %s817, 1
      %p821 = scmp.eq.s32.totalorder %s101, 1
      %p822 = scmp.ne.s32.totalorder %s817, %s819
      %p823 = scmp.eq.s32.totalorder %s101, 0
      %p824 = por %p822, %p823
      %p825 = scmp.ne.s32.totalorder %s817, %s819
      %p826 = scmp.eq.s32.totalorder %s106, 1
      %p827 = por %p825, %p826
      %p828 = scmp.ne.s32.totalorder %s819, %s820
      %p829 = scmp.eq.s32.totalorder %s106, 0
      %p830 = por %p828, %p829
      %p831 = scmp.ne.s32.totalorder %s819, %s820
      %p832 = scmp.eq.s32.totalorder %s107, 1
      %p833 = por %p831, %p832
      %p835 = scmp.ne.s32.totalorder %s820, %s834
      %p836 = scmp.eq.s32.totalorder %s107, 0
      %p837 = por %p835, %p836
      %s839 = sadd.s32 %s838, 1
      %p842 = scmp.eq.s32.totalorder %s101, 1
      %p843 = scmp.ne.s32.totalorder %s838, %s840
      %p844 = scmp.eq.s32.totalorder %s101, 0
      %p845 = por %p843, %p844
      %p846 = scmp.ne.s32.totalorder %s838, %s840
      %p847 = scmp.eq.s32.totalorder %s106, 1
      %p848 = por %p846, %p847
      %p849 = scmp.ne.s32.totalorder %s840, %s841
      %p850 = scmp.eq.s32.totalorder %s106, 0
      %p851 = por %p849, %p850
      %p852 = scmp.ne.s32.totalorder %s840, %s841
      %p853 = scmp.eq.s32.totalorder %s107, 1
      %p854 = por %p852, %p853
      %p856 = scmp.ne.s32.totalorder %s841, %s855
      %p857 = scmp.eq.s32.totalorder %s107, 0
      %p858 = por %p856, %p857
      %s860 = sadd.s32 %s859, 1
      %p863 = scmp.eq.s32.totalorder %s101, 1
      %p864 = scmp.ne.s32.totalorder %s859, %s861
      %p865 = scmp.eq.s32.totalorder %s101, 0
      %p866 = por %p864, %p865
      %p867 = scmp.ne.s32.totalorder %s859, %s861
      %p868 = scmp.eq.s32.totalorder %s106, 1
      %p869 = por %p867, %p868
      %p870 = scmp.ne.s32.totalorder %s861, %s862
      %p871 = scmp.eq.s32.totalorder %s106, 0
      %p872 = por %p870, %p871
      %p873 = scmp.ne.s32.totalorder %s861, %s862
      %p874 = scmp.eq.s32.totalorder %s107, 1
      %p875 = por %p873, %p874
      %p877 = scmp.ne.s32.totalorder %s862, %s876
      %p878 = scmp.eq.s32.totalorder %s107, 0
      %p879 = por %p877, %p878
      %s881 = sadd.s32 %s880, 1
      %p884 = scmp.eq.s32.totalorder %s101, 1
      %p885 = scmp.ne.s32.totalorder %s880, %s882
      %p886 = scmp.eq.s32.totalorder %s101, 0
      %p887 = por %p885, %p886
      %p888 = scmp.ne.s32.totalorder %s880, %s882
      %p889 = scmp.eq.s32.totalorder %s106, 1
      %p890 = por %p888, %p889
      %p891 = scmp.ne.s32.totalorder %s882, %s883
      %p892 = scmp.eq.s32.totalorder %s106, 0
      %p893 = por %p891, %p892
      %p894 = scmp.ne.s32.totalorder %s882, %s883
      %p895 = scmp.eq.s32.totalorder %s107, 1
      %p896 = por %p894, %p895
      %p898 = scmp.ne.s32.totalorder %s883, %s897
      %p899 = scmp.eq.s32.totalorder %s107, 0
      %p900 = por %p898, %p899
      %s902 = sadd.s32 %s901, 1
      %p905 = scmp.eq.s32.totalorder %s101, 1
      %p906 = scmp.ne.s32.totalorder %s901, %s903
      %p907 = scmp.eq.s32.totalorder %s101, 0
      %p908 = por %p906, %p907
      %p909 = scmp.ne.s32.totalorder %s901, %s903
      %p910 = scmp.eq.s32.totalorder %s106, 1
      %p911 = por %p909, %p910
      %p912 = scmp.ne.s32.totalorder %s903, %s904
      %p913 = scmp.eq.s32.totalorder %s106, 0
      %p914 = por %p912, %p913
      %p915 = scmp.ne.s32.totalorder %s903, %s904
      %p916 = scmp.eq.s32.totalorder %s107, 1
      %p917 = por %p915, %p916
      %p919 = scmp.ne.s32.totalorder %s904, %s918
      %p920 = scmp.eq.s32.totalorder %s107, 0
      %p921 = por %p919, %p920
      %s923 = sadd.s32 %s922, 1
      %p926 = scmp.eq.s32.totalorder %s101, 1
      %p927 = scmp.ne.s32.totalorder %s922, %s924
      %p928 = scmp.eq.s32.totalorder %s101, 0
      %p929 = por %p927, %p928
      %p930 = scmp.ne.s32.totalorder %s922, %s924
      %p931 = scmp.eq.s32.totalorder %s106, 1
      %p932 = por %p930, %p931
      %p933 = scmp.ne.s32.totalorder %s924, %s925
      %p934 = scmp.eq.s32.totalorder %s106, 0
      %p935 = por %p933, %p934
      %p936 = scmp.ne.s32.totalorder %s924, %s925
      %p937 = scmp.eq.s32.totalorder %s107, 1
      %p938 = por %p936, %p937
      %p940 = scmp.ne.s32.totalorder %s925, %s939
      %p941 = scmp.eq.s32.totalorder %s107, 0
      %p942 = por %p940, %p941
      %s944 = sadd.s32 %s943, 1
      %p947 = scmp.eq.s32.totalorder %s101, 1
      %p948 = scmp.ne.s32.totalorder %s943, %s945
      %p949 = scmp.eq.s32.totalorder %s101, 0
      %p950 = por %p948, %p949
      %p951 = scmp.ne.s32.totalorder %s943, %s945
      %p952 = scmp.eq.s32.totalorder %s106, 1
      %p953 = por %p951, %p952
      %p954 = scmp.ne.s32.totalorder %s945, %s946
      %p955 = scmp.eq.s32.totalorder %s106, 0
      %p956 = por %p954, %p955
      %p957 = scmp.ne.s32.totalorder %s945, %s946
      %p958 = scmp.eq.s32.totalorder %s107, 1
      %p959 = por %p957, %p958
      %p961 = scmp.ne.s32.totalorder %s946, %s960
      %p962 = scmp.eq.s32.totalorder %s107, 0
      %p963 = por %p961, %p962
      %s964 = ssub.s32 %s101, %s108
      %p965 = scmp.eq.s32.totalorder %s964, 0
      %s967 = sadd.s32 %s966, 1
      %s968 = scalar_select %p965, %s966, %s967
      %p971 = pneg %p965
      %p972 = scmp.eq.s32.totalorder %s101, 1
      %p973 = por %p971, %p972
      %p974 = scmp.ne.s32.totalorder %s966, %s969
      %p975 = scmp.eq.s32.totalorder %s101, 0
      %p976 = por %p974, %p975
      %p977 = scmp.ne.s32.totalorder %s966, %s969
      %p978 = scmp.eq.s32.totalorder %s106, 1
      %p979 = por %p977, %p978
      %p980 = scmp.ne.s32.totalorder %s969, %s970
      %p981 = scmp.eq.s32.totalorder %s106, 0
      %p982 = por %p980, %p981
      %p983 = scmp.ne.s32.totalorder %s969, %s970
      %p984 = scmp.eq.s32.totalorder %s107, 1
      %p985 = por %p983, %p984
      %p987 = scmp.ne.s32.totalorder %s970, %s986
      %p988 = scmp.eq.s32.totalorder %s107, 0
      %p989 = por %p987, %p988
      %p990 = scmp.le.s32.totalorder 1, %s101
      %p991 = scmp.lt.s32.totalorder %s101, 3
      %p992 = pnand %p990, %p991
      %p993 = pneg %p992
      // Predicated region
      $region9: #{tpu_custom_call.1} parent=5 // pred_check
        _
      $region10: #{tpu_custom_call.1} parent=5 // pred_check_branch
        %995 = sbr.rel (%p992) target = $region12
      $region11: #{tpu_custom_call.1} parent=5 // pred_region
        %s996 = ssub.s32 %s101, 1
        // Predicated region
        $region13: #{tpu_custom_call.1} parent=11 // pred_check
          %p997 = pneg %p122
        $region14: #{tpu_custom_call.1} parent=11 // pred_check_branch
          %999 = sbr.rel (%p997) target = $region16
        $region15: #{tpu_custom_call.1} parent=11 // pred_region
          %s1001 = ssub.s32 64, 64
          %1002 = vsyncadd [#allocation4], %s1001
          %s1004 = sshll.u32 %s1, 4
          %s1005 = int_to_ptr.vmem [resolvable:$true] %s1004
          %1007 = dma.vmem_to_smem %s1005, 64, [#allocation2], [#allocation4]
        $region16: #{tpu_custom_call.1} parent=11 // pred_fallthru
          _
        // Predicated region
        $region17: #{tpu_custom_call.1} parent=11 // pred_check
          %p1008 = pneg %p221
        $region18: #{tpu_custom_call.1} parent=11 // pred_check_branch
          %1010 = sbr.rel (%p1008) target = $region20
        $region19: #{tpu_custom_call.1} parent=11 // pred_region
          _
        $region20: #{tpu_custom_call.1} parent=11 // pred_fallthru
          _
        // Predicated region
        $region21: #{tpu_custom_call.1} parent=11 // pred_check
          %p1011 = pneg %p242
        $region22: #{tpu_custom_call.1} parent=11 // pred_check_branch
          %1013 = sbr.rel (%p1011) target = $region24
        $region23: #{tpu_custom_call.1} parent=11 // pred_region
          _
        $region24: #{tpu_custom_call.1} parent=11 // pred_fallthru
          _
        // Predicated region
        $region25: #{tpu_custom_call.1} parent=11 // pred_check
          %p1014 = pneg %p263
        $region26: #{tpu_custom_call.1} parent=11 // pred_check_branch
          %1016 = sbr.rel (%p1014) target = $region28
        $region27: #{tpu_custom_call.1} parent=11 // pred_region
          %s1018 = ssub.s32 1024, 1024
          %1019 = vsyncadd [#allocation3], %s1018
          %s1020 = sshll.u32 [#allocation5], 4
          %s1021 = int_to_ptr.vmem [resolvable:$true] %s1020
          %1026 = dma.hbm_to_vmem [thread:$0]  %s13, 1024, %s1021, [#allocation3], 64, 64, 4
        $region28: #{tpu_custom_call.1} parent=11 // pred_fallthru
          _
        // Predicated region
        $region29: #{tpu_custom_call.1} parent=11 // pred_check
          %p1027 = pneg %p284
        $region30: #{tpu_custom_call.1} parent=11 // pred_check_branch
          %1029 = sbr.rel (%p1027) target = $region32
        $region31: #{tpu_custom_call.1} parent=11 // pred_region
          %s1031 = ssub.s32 1024, 1024
          %1032 = vsyncadd [#allocation7], %s1031
          %s1033 = sshll.u32 [#allocation6], 4
          %s1034 = int_to_ptr.vmem [resolvable:$true] %s1033
          %1039 = dma.hbm_to_vmem [thread:$0]  %s15, 1024, %s1034, [#allocation7], 64, 64, 4
        $region32: #{tpu_custom_call.1} parent=11 // pred_fallthru
          _
        // Predicated region
        $region33: #{tpu_custom_call.1} parent=11 // pred_check
          %p1040 = pneg %p305
        $region34: #{tpu_custom_call.1} parent=11 // pred_check_branch
          %1042 = sbr.rel (%p1040) target = $region36
        $region35: #{tpu_custom_call.1} parent=11 // pred_region
          _
        $region36: #{tpu_custom_call.1} parent=11 // pred_fallthru
          _
        // Predicated region
        $region37: #{tpu_custom_call.1} parent=11 // pred_check
          %p1043 = pneg %p326
        $region38: #{tpu_custom_call.1} parent=11 // pred_check_branch
          %1045 = sbr.rel (%p1043) target = $region40
        $region39: #{tpu_custom_call.1} parent=11 // pred_region
          %s1047 = ssub.s32 256, 256
          %1048 = vsyncadd [#allocation7], %s1047
          %s1049 = sshll.u32 [#allocation8], 4
          %s1050 = int_to_ptr.vmem [resolvable:$true] %s1049
          %1055 = dma.hbm_to_vmem [thread:$0]  %s19, 256, %s1050, [#allocation7], 64, 64, 4
        $region40: #{tpu_custom_call.1} parent=11 // pred_fallthru
          _
        // Predicated region
        $region41: #{tpu_custom_call.1} parent=11 // pred_check
          %p1056 = pneg %p347
        $region42: #{tpu_custom_call.1} parent=11 // pred_check_branch
          %1058 = sbr.rel (%p1056) target = $region44
        $region43: #{tpu_custom_call.1} parent=11 // pred_region
          %s1060 = ssub.s32 256, 256
          %1061 = vsyncadd [#allocation10], %s1060
          %s1062 = sshll.u32 [#allocation9], 4
          %s1063 = int_to_ptr.vmem [resolvable:$true] %s1062
          %1068 = dma.hbm_to_vmem [thread:$0]  %s21, 256, %s1063, [#allocation10], 64, 64, 4
        $region44: #{tpu_custom_call.1} parent=11 // pred_fallthru
          _
        // Predicated region
        $region45: #{tpu_custom_call.1} parent=11 // pred_check
          %p1069 = pneg %p368
        $region46: #{tpu_custom_call.1} parent=11 // pred_check_branch
          %1071 = sbr.rel (%p1069) target = $region48
        $region47: #{tpu_custom_call.1} parent=11 // pred_region
          %s1073 = ssub.s32 192, 192
          %1074 = vsyncadd [#allocation10], %s1073
          %s1075 = sshll.u32 [#allocation11], 4
          %s1076 = int_to_ptr.vmem [resolvable:$true] %s1075
          %1081 = dma.hbm_to_vmem [thread:$0]  %s23, 192, %s1076, [#allocation10], 64, 64, 4
        $region48: #{tpu_custom_call.1} parent=11 // pred_fallthru
          _
        // Predicated region
        $region49: #{tpu_custom_call.1} parent=11 // pred_check
          %p1082 = pneg %p389
        $region50: #{tpu_custom_call.1} parent=11 // pred_check_branch
          %1084 = sbr.rel (%p1082) target = $region52
        $region51: #{tpu_custom_call.1} parent=11 // pred_region
          %s1086 = ssub.s32 512, 512
          %1087 = vsyncadd [#allocation13], %s1086
          %s1088 = sshll.u32 [#allocation12], 4
          %s1089 = int_to_ptr.vmem [resolvable:$true] %s1088
          %1094 = dma.hbm_to_vmem [thread:$0]  %s25, 512, %s1089, [#allocation13], 128, 128, 8
        $region52: #{tpu_custom_call.1} parent=11 // pred_fallthru
          _
        // Predicated region
        $region53: #{tpu_custom_call.1} parent=11 // pred_check
          %p1095 = pneg %p410
        $region54: #{tpu_custom_call.1} parent=11 // pred_check_branch
          %1097 = sbr.rel (%p1095) target = $region56
        $region55: #{tpu_custom_call.1} parent=11 // pred_region
          %s1099 = ssub.s32 256, 256
          %1100 = vsyncadd [#allocation13], %s1099
          %s1101 = sshll.u32 [#allocation14], 4
          %s1102 = int_to_ptr.vmem [resolvable:$true] %s1101
          %1107 = dma.hbm_to_vmem [thread:$0]  %s27, 256, %s1102, [#allocation13], 128, 128, 8
        $region56: #{tpu_custom_call.1} parent=11 // pred_fallthru
          _
        // Predicated region
        $region57: #{tpu_custom_call.1} parent=11 // pred_check
          %p1108 = pneg %p431
        $region58: #{tpu_custom_call.1} parent=11 // pred_check_branch
          %1110 = sbr.rel (%p1108) target = $region60
        $region59: #{tpu_custom_call.1} parent=11 // pred_region
          %s1112 = ssub.s32 512, 512
          %1113 = vsyncadd [#allocation16], %s1112
          %s1114 = sshll.u32 [#allocation15], 4
          %s1115 = int_to_ptr.vmem [resolvable:$true] %s1114
          %1120 = dma.hbm_to_vmem [thread:$0]  %s29, 512, %s1115, [#allocation16], 128, 128, 8
        $region60: #{tpu_custom_call.1} parent=11 // pred_fallthru
          _
        // Predicated region
        $region61: #{tpu_custom_call.1} parent=11 // pred_check
          %p1121 = pneg %p452
        $region62: #{tpu_custom_call.1} parent=11 // pred_check_branch
          %1123 = sbr.rel (%p1121) target = $region64
        $region63: #{tpu_custom_call.1} parent=11 // pred_region
          %s1125 = ssub.s32 256, 256
          %1126 = vsyncadd [#allocation16], %s1125
          %s1127 = sshll.u32 [#allocation17], 4
          %s1128 = int_to_ptr.vmem [resolvable:$true] %s1127
          %1133 = dma.hbm_to_vmem [thread:$0]  %s31, 256, %s1128, [#allocation16], 128, 128, 8
        $region64: #{tpu_custom_call.1} parent=11 // pred_fallthru
          _
        // Predicated region
        $region65: #{tpu_custom_call.1} parent=11 // pred_check
          %p1134 = pneg %p473
        $region66: #{tpu_custom_call.1} parent=11 // pred_check_branch
          %1136 = sbr.rel (%p1134) target = $region68
        $region67: #{tpu_custom_call.1} parent=11 // pred_region
          %s1138 = ssub.s32 64, 64
          %1139 = vsyncadd [#allocation19], %s1138
          %s1141 = sshll.u32 [#allocation18], 4
          %s1142 = int_to_ptr.vmem [resolvable:$true] %s1141
          %1144 = dma.hbm_to_vmem [thread:$0]  %s33, 64, %s1142, [#allocation19]
        $region68: #{tpu_custom_call.1} parent=11 // pred_fallthru
          _
        // Predicated region
        $region69: #{tpu_custom_call.1} parent=11 // pred_check
          %p1145 = pneg %p494
        $region70: #{tpu_custom_call.1} parent=11 // pred_check_branch
          %1147 = sbr.rel (%p1145) target = $region72
        $region71: #{tpu_custom_call.1} parent=11 // pred_region
          %s1149 = ssub.s32 64, 64
          %1150 = vsyncadd [#allocation19], %s1149
          %s1152 = sshll.u32 [#allocation20], 4
          %s1153 = int_to_ptr.vmem [resolvable:$true] %s1152
          %1155 = dma.hbm_to_vmem [thread:$0]  %s35, 64, %s1153, [#allocation19]
        $region72: #{tpu_custom_call.1} parent=11 // pred_fallthru
          _
        // Predicated region
        $region73: #{tpu_custom_call.1} parent=11 // pred_check
          %p1156 = pneg %p515
        $region74: #{tpu_custom_call.1} parent=11 // pred_check_branch
          %1158 = sbr.rel (%p1156) target = $region76
        $region75: #{tpu_custom_call.1} parent=11 // pred_region
          %s1160 = ssub.s32 64, 64
          %1161 = vsyncadd [#allocation22], %s1160
          %s1163 = sshll.u32 [#allocation21], 4
          %s1164 = int_to_ptr.vmem [resolvable:$true] %s1163
          %1166 = dma.hbm_to_vmem [thread:$0]  %s37, 64, %s1164, [#allocation22]
        $region76: #{tpu_custom_call.1} parent=11 // pred_fallthru
          _
        // Predicated region
        $region77: #{tpu_custom_call.1} parent=11 // pred_check
          %p1167 = pneg %p536
        $region78: #{tpu_custom_call.1} parent=11 // pred_check_branch
          %1169 = sbr.rel (%p1167) target = $region80
        $region79: #{tpu_custom_call.1} parent=11 // pred_region
          %s1171 = ssub.s32 64, 64
          %1172 = vsyncadd [#allocation22], %s1171
          %s1174 = sshll.u32 [#allocation23], 4
          %s1175 = int_to_ptr.vmem [resolvable:$true] %s1174
          %1177 = dma.hbm_to_vmem [thread:$0]  %s39, 64, %s1175, [#allocation22]
        $region80: #{tpu_custom_call.1} parent=11 // pred_fallthru
          _
        // Predicated region
        $region81: #{tpu_custom_call.1} parent=11 // pred_check
          %p1178 = pneg %p557
        $region82: #{tpu_custom_call.1} parent=11 // pred_check_branch
          %1180 = sbr.rel (%p1178) target = $region84
        $region83: #{tpu_custom_call.1} parent=11 // pred_region
          _
        $region84: #{tpu_custom_call.1} parent=11 // pred_fallthru
          _
        // Predicated region
        $region85: #{tpu_custom_call.1} parent=11 // pred_check
          %p1181 = pneg %p578
        $region86: #{tpu_custom_call.1} parent=11 // pred_check_branch
          %1183 = sbr.rel (%p1181) target = $region88
        $region87: #{tpu_custom_call.1} parent=11 // pred_region
          %s1185 = ssub.s32 256, 256
          %1186 = vsyncadd [#allocation25], %s1185
          %s1187 = sshll.u32 [#allocation24], 4
          %s1188 = int_to_ptr.vmem [resolvable:$true] %s1187
          %1193 = dma.hbm_to_vmem [thread:$0]  %s43, 256, %s1188, [#allocation25], 64, 64, 4
        $region88: #{tpu_custom_call.1} parent=11 // pred_fallthru
          _
        // Predicated region
        $region89: #{tpu_custom_call.1} parent=11 // pred_check
          %p1194 = pneg %p599
        $region90: #{tpu_custom_call.1} parent=11 // pred_check_branch
          %1196 = sbr.rel (%p1194) target = $region92
        $region91: #{tpu_custom_call.1} parent=11 // pred_region
          %s1198 = ssub.s32 256, 256
          %1199 = vsyncadd [#allocation25], %s1198
          %s1200 = sshll.u32 [#allocation26], 4
          %s1201 = int_to_ptr.vmem [resolvable:$true] %s1200
          %1206 = dma.hbm_to_vmem [thread:$0]  %s45, 256, %s1201, [#allocation25], 64, 64, 4
        $region92: #{tpu_custom_call.1} parent=11 // pred_fallthru
          _
        // Predicated region
        $region93: #{tpu_custom_call.1} parent=11 // pred_check
          %p1207 = pneg %p620
        $region94: #{tpu_custom_call.1} parent=11 // pred_check_branch
          %1209 = sbr.rel (%p1207) target = $region96
        $region95: #{tpu_custom_call.1} parent=11 // pred_region
          %s1211 = ssub.s32 192, 192
          %1212 = vsyncadd [#allocation28], %s1211
          %s1213 = sshll.u32 [#allocation27], 4
          %s1214 = int_to_ptr.vmem [resolvable:$true] %s1213
          %1219 = dma.hbm_to_vmem [thread:$0]  %s47, 192, %s1214, [#allocation28], 64, 64, 4
        $region96: #{tpu_custom_call.1} parent=11 // pred_fallthru
          _
        // Predicated region
        $region97: #{tpu_custom_call.1} parent=11 // pred_check
          %p1220 = pneg %p641
        $region98: #{tpu_custom_call.1} parent=11 // pred_check_branch
          %1222 = sbr.rel (%p1220) target = $region100
        $region99: #{tpu_custom_call.1} parent=11 // pred_region
          _
        $region100: #{tpu_custom_call.1} parent=11 // pred_fallthru
          _
        // Predicated region
        $region101: #{tpu_custom_call.1} parent=11 // pred_check
          %p1223 = pneg %p662
        $region102: #{tpu_custom_call.1} parent=11 // pred_check_branch
          %1225 = sbr.rel (%p1223) target = $region104
        $region103: #{tpu_custom_call.1} parent=11 // pred_region
          _
        $region104: #{tpu_custom_call.1} parent=11 // pred_fallthru
          _
        // Predicated region
        $region105: #{tpu_custom_call.1} parent=11 // pred_check
          %p1226 = pneg %p683
        $region106: #{tpu_custom_call.1} parent=11 // pred_check_branch
          %1228 = sbr.rel (%p1226) target = $region108
        $region107: #{tpu_custom_call.1} parent=11 // pred_region
          _
        $region108: #{tpu_custom_call.1} parent=11 // pred_fallthru
          _
        // Predicated region
        $region109: #{tpu_custom_call.1} parent=11 // pred_check
          %p1229 = pneg %p704
        $region110: #{tpu_custom_call.1} parent=11 // pred_check_branch
          %1231 = sbr.rel (%p1229) target = $region112
        $region111: #{tpu_custom_call.1} parent=11 // pred_region
          _
        $region112: #{tpu_custom_call.1} parent=11 // pred_fallthru
          _
        // Predicated region
        $region113: #{tpu_custom_call.1} parent=11 // pred_check
          %p1232 = pneg %p725
        $region114: #{tpu_custom_call.1} parent=11 // pred_check_branch
          %1234 = sbr.rel (%p1232) target = $region116
        $region115: #{tpu_custom_call.1} parent=11 // pred_region
          _
        $region116: #{tpu_custom_call.1} parent=11 // pred_fallthru
          _
        // Predicated region
        $region117: #{tpu_custom_call.1} parent=11 // pred_check
          %p1235 = pneg %p746
        $region118: #{tpu_custom_call.1} parent=11 // pred_check_branch
          %1237 = sbr.rel (%p1235) target = $region120
        $region119: #{tpu_custom_call.1} parent=11 // pred_region
          %s1239 = ssub.s32 4096, 4096
          %1240 = vsyncadd [#allocation28], %s1239
          %s1241 = sshll.u32 [#allocation29], 4
          %s1242 = int_to_ptr.vmem [resolvable:$true] %s1241
          %1247 = dma.hbm_to_vmem [thread:$0]  %s59, 4096, %s1242, [#allocation28], 128, 128, 8
        $region120: #{tpu_custom_call.1} parent=11 // pred_fallthru
          _
        // Predicated region
        $region121: #{tpu_custom_call.1} parent=11 // pred_check
          %p1248 = pneg %p767
        $region122: #{tpu_custom_call.1} parent=11 // pred_check_branch
          %1250 = sbr.rel (%p1248) target = $region124
        $region123: #{tpu_custom_call.1} parent=11 // pred_region
          %s1252 = ssub.s32 4096, 4096
          %1253 = vsyncadd [#allocation31], %s1252
          %s1254 = sshll.u32 [#allocation30], 4
          %s1255 = int_to_ptr.vmem [resolvable:$true] %s1254
          %1260 = dma.hbm_to_vmem [thread:$0]  %s61, 4096, %s1255, [#allocation31], 128, 128, 8
        $region124: #{tpu_custom_call.1} parent=11 // pred_fallthru
          _
        // Predicated region
        $region125: #{tpu_custom_call.1} parent=11 // pred_check
          %p1261 = pneg %p788
        $region126: #{tpu_custom_call.1} parent=11 // pred_check_branch
          %1263 = sbr.rel (%p1261) target = $region128
        $region127: #{tpu_custom_call.1} parent=11 // pred_region
          %s1265 = ssub.s32 4096, 4096
          %1266 = vsyncadd [#allocation31], %s1265
          %s1267 = sshll.u32 [#allocation32], 4
          %s1268 = int_to_ptr.vmem [resolvable:$true] %s1267
          %1273 = dma.hbm_to_vmem [thread:$0]  %s63, 4096, %s1268, [#allocation31], 128, 128, 8
        $region128: #{tpu_custom_call.1} parent=11 // pred_fallthru
          _
        // Predicated region
        $region129: #{tpu_custom_call.1} parent=11 // pred_check
          %p1274 = pneg %p809
        $region130: #{tpu_custom_call.1} parent=11 // pred_check_branch
          %1276 = sbr.rel (%p1274) target = $region132
        $region131: #{tpu_custom_call.1} parent=11 // pred_region
          _
        $region132: #{tpu_custom_call.1} parent=11 // pred_fallthru
          _
        // Predicated region
        $region133: #{tpu_custom_call.1} parent=11 // pred_check
          %p1277 = pneg %p830
        $region134: #{tpu_custom_call.1} parent=11 // pred_check_branch
          %1279 = sbr.rel (%p1277) target = $region136
        $region135: #{tpu_custom_call.1} parent=11 // pred_region
          %s1281 = ssub.s32 256, 256
          %1282 = vsyncadd [#allocation34], %s1281
          %s1283 = sshll.u32 [#allocation33], 4
          %s1284 = int_to_ptr.vmem [resolvable:$true] %s1283
          %1289 = dma.hbm_to_vmem [thread:$0]  %s67, 256, %s1284, [#allocation34], 64, 64, 4
        $region136: #{tpu_custom_call.1} parent=11 // pred_fallthru
          _
        // Predicated region
        $region137: #{tpu_custom_call.1} parent=11 // pred_check
          %p1290 = pneg %p851
        $region138: #{tpu_custom_call.1} parent=11 // pred_check_branch
          %1292 = sbr.rel (%p1290) target = $region140
        $region139: #{tpu_custom_call.1} parent=11 // pred_region
          %s1294 = ssub.s32 256, 256
          %1295 = vsyncadd [#allocation34], %s1294
          %s1296 = sshll.u32 [#allocation35], 4
          %s1297 = int_to_ptr.vmem [resolvable:$true] %s1296
          %1302 = dma.hbm_to_vmem [thread:$0]  %s69, 256, %s1297, [#allocation34], 64, 64, 4
        $region140: #{tpu_custom_call.1} parent=11 // pred_fallthru
          _
        // Predicated region
        $region141: #{tpu_custom_call.1} parent=11 // pred_check
          %p1303 = pneg %p872
        $region142: #{tpu_custom_call.1} parent=11 // pred_check_branch
          %1305 = sbr.rel (%p1303) target = $region144
        $region143: #{tpu_custom_call.1} parent=11 // pred_region
          %s1307 = ssub.s32 192, 192
          %1308 = vsyncadd [#allocation37], %s1307
          %s1309 = sshll.u32 [#allocation36], 4
          %s1310 = int_to_ptr.vmem [resolvable:$true] %s1309
          %1315 = dma.hbm_to_vmem [thread:$0]  %s71, 192, %s1310, [#allocation37], 64, 64, 4
        $region144: #{tpu_custom_call.1} parent=11 // pred_fallthru
          _
        // Predicated region
        $region145: #{tpu_custom_call.1} parent=11 // pred_check
          %p1316 = pneg %p893
        $region146: #{tpu_custom_call.1} parent=11 // pred_check_branch
          %1318 = sbr.rel (%p1316) target = $region148
        $region147: #{tpu_custom_call.1} parent=11 // pred_region
          %s1320 = ssub.s32 1024, 1024
          %1321 = vsyncadd [#allocation37], %s1320
          %s1322 = sshll.u32 [#allocation38], 4
          %s1323 = int_to_ptr.vmem [resolvable:$true] %s1322
          %1328 = dma.hbm_to_vmem [thread:$0]  %s73, 1024, %s1323, [#allocation37], 256, 256, 16
        $region148: #{tpu_custom_call.1} parent=11 // pred_fallthru
          _
        // Predicated region
        $region149: #{tpu_custom_call.1} parent=11 // pred_check
          %p1329 = pneg %p914
        $region150: #{tpu_custom_call.1} parent=11 // pred_check_branch
          %1331 = sbr.rel (%p1329) target = $region152
        $region151: #{tpu_custom_call.1} parent=11 // pred_region
          _
        $region152: #{tpu_custom_call.1} parent=11 // pred_fallthru
          _
        // Predicated region
        $region153: #{tpu_custom_call.1} parent=11 // pred_check
          %p1332 = pneg %p935
        $region154: #{tpu_custom_call.1} parent=11 // pred_check_branch
          %1334 = sbr.rel (%p1332) target = $region156
        $region155: #{tpu_custom_call.1} parent=11 // pred_region
          %s1336 = ssub.s32 1024, 1024
          %1337 = vsyncadd [#allocation40], %s1336
          %s1338 = sshll.u32 [#allocation39], 4
          %s1339 = int_to_ptr.vmem [resolvable:$true] %s1338
          %1344 = dma.hbm_to_vmem [thread:$0]  %s77, 1024, %s1339, [#allocation40], 256, 256, 16
        $region156: #{tpu_custom_call.1} parent=11 // pred_fallthru
          _
        // Predicated region
        $region157: #{tpu_custom_call.1} parent=11 // pred_check
          %p1345 = pneg %p956
        $region158: #{tpu_custom_call.1} parent=11 // pred_check_branch
          %1347 = sbr.rel (%p1345) target = $region160
        $region159: #{tpu_custom_call.1} parent=11 // pred_region
          %s1349 = ssub.s32 512, 512
          %1350 = vsyncadd [#allocation40], %s1349
          %s1351 = sshll.u32 [#allocation41], 4
          %s1352 = int_to_ptr.vmem [resolvable:$true] %s1351
          %1357 = dma.hbm_to_vmem [thread:$0]  %s79, 512, %s1352, [#allocation40], 256, 256, 16
        $region160: #{tpu_custom_call.1} parent=11 // pred_fallthru
          _
      $region12: #{tpu_custom_call.1} parent=5 // pred_fallthru
        _
      %p1358 = scmp.lt.s32.totalorder %s101, 2
      // Predicated region
      $region161: #{tpu_custom_call.1} parent=5 // pred_check
        %p1359 = pneg %p1358
      $region162: #{tpu_custom_call.1} parent=5 // pred_check_branch
        %1361 = sbr.rel (%p1359) target = $region164
      $region163: #{tpu_custom_call.1} parent=5 // pred_region
        // Predicated region
        $region165: #{tpu_custom_call.1} parent=163 // pred_check
          %p1362 = pneg %p142
        $region166: #{tpu_custom_call.1} parent=163 // pred_check_branch
          %1364 = sbr.rel (%p1362) target = $region168
        $region167: #{tpu_custom_call.1} parent=163 // pred_region
          %p1365 = scmp.lt.s32.totalorder %s101, 1
          %s1366 = scalar_select %p1365, %s101, 1
          %s1367 = smul.addr %s1366, 2
          %s1368 = smul.addr %s1367, 8
          %s1369 = scalar_lea.vmem %s3, %s1368
        $region168: #{tpu_custom_call.1} parent=163 // pred_fallthru
          _
        // Predicated region
        $region169: #{tpu_custom_call.1} parent=163 // pred_check
          %p1370 = pneg %p168
        $region170: #{tpu_custom_call.1} parent=163 // pred_check_branch
          %1372 = sbr.rel (%p1370) target = $region172
        $region171: #{tpu_custom_call.1} parent=163 // pred_region
          %p1373 = scmp.lt.s32.totalorder %s101, 1
          %s1374 = scalar_select %p1373, %s101, 1
          %s1375 = smul.addr %s1374, 2
          %s1376 = smul.addr %s1375, 8
          %s1377 = scalar_lea.vmem %s5, %s1376
        $region172: #{tpu_custom_call.1} parent=163 // pred_fallthru
          _
        // Predicated region
        $region173: #{tpu_custom_call.1} parent=163 // pred_check
          %p1378 = pneg %p194
        $region174: #{tpu_custom_call.1} parent=163 // pred_check_branch
          %1380 = sbr.rel (%p1378) target = $region176
        $region175: #{tpu_custom_call.1} parent=163 // pred_region
          %p1381 = scmp.lt.s32.totalorder %s101, 1
          %s1382 = scalar_select %p1381, %s101, 1
          %s1383 = smul.addr %s1382, 2
          %s1384 = smul.addr %s1383, 8
          %s1385 = scalar_lea.vmem %s7, %s1384
        $region176: #{tpu_custom_call.1} parent=163 // pred_fallthru
          _
      $region164: #{tpu_custom_call.1} parent=5 // pred_fallthru
        _
      %p1386 = scmp.le.s32.totalorder 1, %s101
      %p1387 = scmp.lt.s32.totalorder %s101, 3
      %p1388 = pnand %p1386, %p1387
      %p1389 = pneg %p1388
      // Predicated region
      $region177: #{tpu_custom_call.1} parent=5 // pred_check
        _
      $region178: #{tpu_custom_call.1} parent=5 // pred_check_branch
        %1391 = sbr.rel (%p1388) target = $region180
      $region179: #{tpu_custom_call.1} parent=5 // pred_region
        %s1392 = ssub.s32 %s101, 1
        // Predicated region
        $region181: #{tpu_custom_call.1} parent=179 // pred_check
          %p1393 = pneg %p122
        $region182: #{tpu_custom_call.1} parent=179 // pred_check_branch
          %1395 = sbr.rel (%p1393) target = $region184
        $region183: #{tpu_custom_call.1} parent=179 // pred_region
          %1396 = dma.done [#allocation4], 64
        $region184: #{tpu_custom_call.1} parent=179 // pred_fallthru
          _
        // Predicated region
        $region185: #{tpu_custom_call.1} parent=179 // pred_check
          %p1397 = pneg %p263
        $region186: #{tpu_custom_call.1} parent=179 // pred_check_branch
          %1399 = sbr.rel (%p1397) target = $region188
        $region187: #{tpu_custom_call.1} parent=179 // pred_region
          %1400 = dma.done [#allocation3], 1024
        $region188: #{tpu_custom_call.1} parent=179 // pred_fallthru
          _
        // Predicated region
        $region189: #{tpu_custom_call.1} parent=179 // pred_check
          %p1401 = pneg %p284
        $region190: #{tpu_custom_call.1} parent=179 // pred_check_branch
          %1403 = sbr.rel (%p1401) target = $region192
        $region191: #{tpu_custom_call.1} parent=179 // pred_region
          %1404 = dma.done [#allocation7], 1024
        $region192: #{tpu_custom_call.1} parent=179 // pred_fallthru
          _
        // Predicated region
        $region193: #{tpu_custom_call.1} parent=179 // pred_check
          %p1405 = pneg %p326
        $region194: #{tpu_custom_call.1} parent=179 // pred_check_branch
          %1407 = sbr.rel (%p1405) target = $region196
        $region195: #{tpu_custom_call.1} parent=179 // pred_region
          %1408 = dma.done [#allocation7], 256
        $region196: #{tpu_custom_call.1} parent=179 // pred_fallthru
          _
        // Predicated region
        $region197: #{tpu_custom_call.1} parent=179 // pred_check
          %p1409 = pneg %p347
        $region198: #{tpu_custom_call.1} parent=179 // pred_check_branch
          %1411 = sbr.rel (%p1409) target = $region200
        $region199: #{tpu_custom_call.1} parent=179 // pred_region
          %1412 = dma.done [#allocation10], 256
        $region200: #{tpu_custom_call.1} parent=179 // pred_fallthru
          _
        // Predicated region
        $region201: #{tpu_custom_call.1} parent=179 // pred_check
          %p1413 = pneg %p368
        $region202: #{tpu_custom_call.1} parent=179 // pred_check_branch
          %1415 = sbr.rel (%p1413) target = $region204
        $region203: #{tpu_custom_call.1} parent=179 // pred_region
          %1416 = dma.done [#allocation10], 192
        $region204: #{tpu_custom_call.1} parent=179 // pred_fallthru
          _
        // Predicated region
        $region205: #{tpu_custom_call.1} parent=179 // pred_check
          %p1417 = pneg %p389
        $region206: #{tpu_custom_call.1} parent=179 // pred_check_branch
          %1419 = sbr.rel (%p1417) target = $region208
        $region207: #{tpu_custom_call.1} parent=179 // pred_region
          %1420 = dma.done [#allocation13], 512
        $region208: #{tpu_custom_call.1} parent=179 // pred_fallthru
          _
        // Predicated region
        $region209: #{tpu_custom_call.1} parent=179 // pred_check
          %p1421 = pneg %p410
        $region210: #{tpu_custom_call.1} parent=179 // pred_check_branch
          %1423 = sbr.rel (%p1421) target = $region212
        $region211: #{tpu_custom_call.1} parent=179 // pred_region
          %1424 = dma.done [#allocation13], 256
        $region212: #{tpu_custom_call.1} parent=179 // pred_fallthru
          _
        // Predicated region
        $region213: #{tpu_custom_call.1} parent=179 // pred_check
          %p1425 = pneg %p431
        $region214: #{tpu_custom_call.1} parent=179 // pred_check_branch
          %1427 = sbr.rel (%p1425) target = $region216
        $region215: #{tpu_custom_call.1} parent=179 // pred_region
          %1428 = dma.done [#allocation16], 512
        $region216: #{tpu_custom_call.1} parent=179 // pred_fallthru
          _
        // Predicated region
        $region217: #{tpu_custom_call.1} parent=179 // pred_check
          %p1429 = pneg %p452
        $region218: #{tpu_custom_call.1} parent=179 // pred_check_branch
          %1431 = sbr.rel (%p1429) target = $region220
        $region219: #{tpu_custom_call.1} parent=179 // pred_region
          %1432 = dma.done [#allocation16], 256
        $region220: #{tpu_custom_call.1} parent=179 // pred_fallthru
          _
        // Predicated region
        $region221: #{tpu_custom_call.1} parent=179 // pred_check
          %p1433 = pneg %p473
        $region222: #{tpu_custom_call.1} parent=179 // pred_check_branch
          %1435 = sbr.rel (%p1433) target = $region224
        $region223: #{tpu_custom_call.1} parent=179 // pred_region
          %1436 = dma.done [#allocation19], 64
        $region224: #{tpu_custom_call.1} parent=179 // pred_fallthru
          _
        // Predicated region
        $region225: #{tpu_custom_call.1} parent=179 // pred_check
          %p1437 = pneg %p494
        $region226: #{tpu_custom_call.1} parent=179 // pred_check_branch
          %1439 = sbr.rel (%p1437) target = $region228
        $region227: #{tpu_custom_call.1} parent=179 // pred_region
          %1440 = dma.done [#allocation19], 64
        $region228: #{tpu_custom_call.1} parent=179 // pred_fallthru
          _
        // Predicated region
        $region229: #{tpu_custom_call.1} parent=179 // pred_check
          %p1441 = pneg %p515
        $region230: #{tpu_custom_call.1} parent=179 // pred_check_branch
          %1443 = sbr.rel (%p1441) target = $region232
        $region231: #{tpu_custom_call.1} parent=179 // pred_region
          %1444 = dma.done [#allocation22], 64
        $region232: #{tpu_custom_call.1} parent=179 // pred_fallthru
          _
        // Predicated region
        $region233: #{tpu_custom_call.1} parent=179 // pred_check
          %p1445 = pneg %p536
        $region234: #{tpu_custom_call.1} parent=179 // pred_check_branch
          %1447 = sbr.rel (%p1445) target = $region236
        $region235: #{tpu_custom_call.1} parent=179 // pred_region
          %1448 = dma.done [#allocation22], 64
        $region236: #{tpu_custom_call.1} parent=179 // pred_fallthru
          _
        // Predicated region
        $region237: #{tpu_custom_call.1} parent=179 // pred_check
          %p1449 = pneg %p578
        $region238: #{tpu_custom_call.1} parent=179 // pred_check_branch
          %1451 = sbr.rel (%p1449) target = $region240
        $region239: #{tpu_custom_call.1} parent=179 // pred_region
          %1452 = dma.done [#allocation25], 256
        $region240: #{tpu_custom_call.1} parent=179 // pred_fallthru
          _
        // Predicated region
        $region241: #{tpu_custom_call.1} parent=179 // pred_check
          %p1453 = pneg %p599
        $region242: #{tpu_custom_call.1} parent=179 // pred_check_branch
          %1455 = sbr.rel (%p1453) target = $region244
        $region243: #{tpu_custom_call.1} parent=179 // pred_region
          %1456 = dma.done [#allocation25], 256
        $region244: #{tpu_custom_call.1} parent=179 // pred_fallthru
          _
        // Predicated region
        $region245: #{tpu_custom_call.1} parent=179 // pred_check
          %p1457 = pneg %p620
        $region246: #{tpu_custom_call.1} parent=179 // pred_check_branch
          %1459 = sbr.rel (%p1457) target = $region248
        $region247: #{tpu_custom_call.1} parent=179 // pred_region
          %1460 = dma.done [#allocation28], 192
        $region248: #{tpu_custom_call.1} parent=179 // pred_fallthru
          _
        // Predicated region
        $region249: #{tpu_custom_call.1} parent=179 // pred_check
          %p1461 = pneg %p746
        $region250: #{tpu_custom_call.1} parent=179 // pred_check_branch
          %1463 = sbr.rel (%p1461) target = $region252
        $region251: #{tpu_custom_call.1} parent=179 // pred_region
          %1464 = dma.done [#allocation28], 4096
        $region252: #{tpu_custom_call.1} parent=179 // pred_fallthru
          _
        // Predicated region
        $region253: #{tpu_custom_call.1} parent=179 // pred_check
          %p1465 = pneg %p767
        $region254: #{tpu_custom_call.1} parent=179 // pred_check_branch
          %1467 = sbr.rel (%p1465) target = $region256
        $region255: #{tpu_custom_call.1} parent=179 // pred_region
          %1468 = dma.done [#allocation31], 4096
        $region256: #{tpu_custom_call.1} parent=179 // pred_fallthru
          _
        // Predicated region
        $region257: #{tpu_custom_call.1} parent=179 // pred_check
          %p1469 = pneg %p788
        $region258: #{tpu_custom_call.1} parent=179 // pred_check_branch
          %1471 = sbr.rel (%p1469) target = $region260
        $region259: #{tpu_custom_call.1} parent=179 // pred_region
          %1472 = dma.done [#allocation31], 4096
        $region260: #{tpu_custom_call.1} parent=179 // pred_fallthru
          _
        // Predicated region
        $region261: #{tpu_custom_call.1} parent=179 // pred_check
          %p1473 = pneg %p830
        $region262: #{tpu_custom_call.1} parent=179 // pred_check_branch
          %1475 = sbr.rel (%p1473) target = $region264
        $region263: #{tpu_custom_call.1} parent=179 // pred_region
          %1476 = dma.done [#allocation34], 256
        $region264: #{tpu_custom_call.1} parent=179 // pred_fallthru
          _
        // Predicated region
        $region265: #{tpu_custom_call.1} parent=179 // pred_check
          %p1477 = pneg %p851
        $region266: #{tpu_custom_call.1} parent=179 // pred_check_branch
          %1479 = sbr.rel (%p1477) target = $region268
        $region267: #{tpu_custom_call.1} parent=179 // pred_region
          %1480 = dma.done [#allocation34], 256
        $region268: #{tpu_custom_call.1} parent=179 // pred_fallthru
          _
        // Predicated region
        $region269: #{tpu_custom_call.1} parent=179 // pred_check
          %p1481 = pneg %p872
        $region270: #{tpu_custom_call.1} parent=179 // pred_check_branch
          %1483 = sbr.rel (%p1481) target = $region272
        $region271: #{tpu_custom_call.1} parent=179 // pred_region
          %1484 = dma.done [#allocation37], 192
        $region272: #{tpu_custom_call.1} parent=179 // pred_fallthru
          _
        // Predicated region
        $region273: #{tpu_custom_call.1} parent=179 // pred_check
          %p1485 = pneg %p893
        $region274: #{tpu_custom_call.1} parent=179 // pred_check_branch
          %1487 = sbr.rel (%p1485) target = $region276
        $region275: #{tpu_custom_call.1} parent=179 // pred_region
          %1488 = dma.done [#allocation37], 1024
        $region276: #{tpu_custom_call.1} parent=179 // pred_fallthru
          _
        // Predicated region
        $region277: #{tpu_custom_call.1} parent=179 // pred_check
          %p1489 = pneg %p935
        $region278: #{tpu_custom_call.1} parent=179 // pred_check_branch
          %1491 = sbr.rel (%p1489) target = $region280
        $region279: #{tpu_custom_call.1} parent=179 // pred_region
          %1492 = dma.done [#allocation40], 1024
        $region280: #{tpu_custom_call.1} parent=179 // pred_fallthru
          _
        // Predicated region
        $region281: #{tpu_custom_call.1} parent=179 // pred_check
          %p1493 = pneg %p956
        $region282: #{tpu_custom_call.1} parent=179 // pred_check_branch
          %1495 = sbr.rel (%p1493) target = $region284
        $region283: #{tpu_custom_call.1} parent=179 // pred_region
          %1496 = dma.done [#allocation40], 512
        $region284: #{tpu_custom_call.1} parent=179 // pred_fallthru
          _
        %1497 = sfence
        %p1498 = pneg %p122
        %p1499 = pneg %p119
        %p1500 = scmp.lt.s32.totalorder %s106, 1
        %s1501 = scalar_select %p1500, %s106, 1
        %s1502 = smul.addr %s1501, 2
        %s1503 = smul.addr %s1502, 8
        %s1504 = scalar_lea.vmem %s3, %s1503
        %p1505 = pneg %p148
        %p1506 = pneg %p145
        %p1507 = scmp.lt.s32.totalorder %s106, 1
        %s1508 = scalar_select %p1507, %s106, 1
        %s1509 = smul.addr %s1508, 2
        %s1510 = smul.addr %s1509, 8
        %s1511 = scalar_lea.vmem %s5, %s1510
        %p1512 = pneg %p174
        %p1513 = pneg %p171
        %p1514 = scmp.lt.s32.totalorder %s106, 1
        %s1515 = scalar_select %p1514, %s106, 1
        %s1516 = smul.addr %s1515, 2
        %s1517 = smul.addr %s1516, 8
        %s1518 = scalar_lea.vmem %s7, %s1517
        %p1519 = pneg %p200
        %p1520 = pneg %p197
        %p1521 = pneg %p221
        %p1522 = pneg %p218
        %p1523 = pneg %p242
        %p1524 = pneg %p239
        %p1525 = pneg %p263
        %p1526 = pneg %p260
        %p1527 = pneg %p284
        %p1528 = pneg %p281
        %p1529 = pneg %p305
        %p1530 = pneg %p302
        %p1531 = pneg %p326
        %p1532 = pneg %p323
        %p1533 = pneg %p347
        %p1534 = pneg %p344
        %p1535 = pneg %p368
        %p1536 = pneg %p365
        %p1537 = pneg %p389
        %p1538 = pneg %p386
        %p1539 = pneg %p410
        %p1540 = pneg %p407
        %p1541 = pneg %p431
        %p1542 = pneg %p428
        %p1543 = pneg %p452
        %p1544 = pneg %p449
        %p1545 = pneg %p473
        %p1546 = pneg %p470
        %p1547 = pneg %p494
        %p1548 = pneg %p491
        %p1549 = pneg %p515
        %p1550 = pneg %p512
        %p1551 = pneg %p536
        %p1552 = pneg %p533
        %p1553 = pneg %p557
        %p1554 = pneg %p554
        %p1555 = pneg %p578
        %p1556 = pneg %p575
        %p1557 = pneg %p599
        %p1558 = pneg %p596
        %p1559 = pneg %p620
        %p1560 = pneg %p617
        %p1561 = pneg %p641
        %p1562 = pneg %p638
        %p1563 = pneg %p662
        %p1564 = pneg %p659
        %p1565 = pneg %p683
        %p1566 = pneg %p680
        %p1567 = pneg %p704
        %p1568 = pneg %p701
        %p1569 = pneg %p725
        %p1570 = pneg %p722
        %p1571 = pneg %p746
        %p1572 = pneg %p743
        %p1573 = pneg %p767
        %p1574 = pneg %p764
        %p1575 = pneg %p788
        %p1576 = pneg %p785
        %p1577 = pneg %p809
        %p1578 = pneg %p806
        %p1579 = pneg %p830
        %p1580 = pneg %p827
        %p1581 = pneg %p851
        %p1582 = pneg %p848
        %p1583 = pneg %p872
        %p1584 = pneg %p869
        %p1585 = pneg %p893
        %p1586 = pneg %p890
        %p1587 = pneg %p914
        %p1588 = pneg %p911
        %p1589 = pneg %p935
        %p1590 = pneg %p932
        %p1591 = pneg %p956
        %p1592 = pneg %p953
        %p1593 = pneg %p982
        %p1594 = pneg %p979
        %p1595 = scmp.lt.s32.totalorder %s106, 1
        %s1596 = scalar_select %p1595, %s106, 1
        %s1597 = smul.addr %s1596, 4
        %s1598 = smul.addr %s1597, 8
        %s1599 = scalar_lea.vmem %s81, %s1598
        %p1600 = scmp.lt.s32.totalorder %s106, 1
        %s1601 = scalar_select %p1600, %s106, 1
        %s1602 = smul.addr %s1601, 2
        %s1603 = smul.addr %s1602, 8
        %s1604 = scalar_lea.vmem %s3, %s1603
        %p1605 = scmp.lt.s32.totalorder %s106, 1
        %s1606 = scalar_select %p1605, %s106, 1
        %s1607 = smul.addr %s1606, 2
        %s1608 = smul.addr %s1607, 8
        %s1609 = scalar_lea.vmem %s5, %s1608
        %p1610 = scmp.lt.s32.totalorder %s106, 1
        %s1611 = scalar_select %p1610, %s106, 1
        %s1612 = smul.addr %s1611, 2
        %s1613 = smul.addr %s1612, 8
        %s1614 = scalar_lea.vmem %s7, %s1613
        %p1615 = scmp.lt.s32.totalorder %s106, 1
        %s1616 = scalar_select %p1615, %s106, 1
        %s1617 = smul.addr %s1616, 4
        %s1618 = smul.addr %s1617, 8
        %s1619 = scalar_lea.vmem %s81, %s1618
        %v1621 = vld [vmem:[%s1604] sm:$0xff]
        %v1622 = vld [vmem:[%s1604 + $0x8] sm:$0x1]
        %s1623 = sld [smem:[#allocation2]]
        %v1624 = vld [vmem:[%s9] sm:$0xf]
        %v1625 = vld [vmem:[%s9 + $0x4] sm:$0xf]
        %v1626 = vld [vmem:[%s9 + $0x8] sm:$0xf]
        %v1627 = vld [vmem:[%s9 + $0xc] sm:$0xf]
        %v1628 = vld [vmem:[%s9 + $0x10] sm:$0xf]
        %v1629 = vld [vmem:[%s9 + $0x14] sm:$0xf]
        %v1630 = vld [vmem:[%s9 + $0x18] sm:$0xf]
        %v1631 = vld [vmem:[%s9 + $0x1c] sm:$0xf]
        %v1632 = vld [vmem:[%s9 + $0x20] sm:$0xf]
        %v1633 = vld [vmem:[%s9 + $0x24] sm:$0xf]
        %v1634 = vld [vmem:[%s9 + $0x28] sm:$0xf]
        %v1635 = vld [vmem:[%s9 + $0x2c] sm:$0xf]
        %v1636 = vld [vmem:[%s9 + $0x30] sm:$0xf]
        %v1637 = vld [vmem:[%s9 + $0x34] sm:$0xf]
        %v1638 = vld [vmem:[%s9 + $0x38] sm:$0xf]
        %v1639 = vld [vmem:[%s9 + $0x3c] sm:$0xf]
        %v1640 = vld [vmem:[%s17] sm:$0xf]
        %v1641 = vld [vmem:[%s17 + $0x4] sm:$0xf]
        %v1642 = vld [vmem:[%s17 + $0x8] sm:$0xf]
        %v1643 = vld [vmem:[%s17 + $0xc] sm:$0xf]
        %v1644 = vld [vmem:[#allocation12] sm:$0xff]
        %v1645 = vld [vmem:[#allocation12 + $0x8] sm:$0xff]
        %v1646 = vld [vmem:[#allocation12 + $0x10] sm:$0xff]
        %v1647 = vld [vmem:[#allocation12 + $0x18] sm:$0xff]
        %v1648 = vpack.c.bf16 %v1622, %v1621
        %v1665 = vunpack.c.l.b16 %v1624
        %v1666 = vunpack.c.l.b16 %v1625
        %v1667 = vunpack.c.l.b16 %v1626
        %v1668 = vunpack.c.l.b16 %v1627
        %v1669 = vunpack.c.l.b16 %v1628
        %v1670 = vunpack.c.l.b16 %v1629
        %v1671 = vunpack.c.l.b16 %v1630
        %v1672 = vunpack.c.l.b16 %v1631
        %v1673 = vunpack.c.l.b16 %v1632
        %v1674 = vunpack.c.l.b16 %v1633
        %v1675 = vunpack.c.l.b16 %v1634
        %v1676 = vunpack.c.l.b16 %v1635
        %v1677 = vunpack.c.l.b16 %v1636
        %v1678 = vunpack.c.l.b16 %v1637
        %v1679 = vunpack.c.l.b16 %v1638
        %v1680 = vunpack.c.l.b16 %v1639
        %v1681 = vpack.c.b16 %v1666, %v1665
        %v1682 = vpack.c.b16 %v1668, %v1667
        %v1683 = vpack.c.b16 %v1670, %v1669
        %v1684 = vpack.c.b16 %v1672, %v1671
        %v1685 = vpack.c.b16 %v1674, %v1673
        %v1686 = vpack.c.b16 %v1676, %v1675
        %v1687 = vpack.c.b16 %v1678, %v1677
        %v1688 = vpack.c.b16 %v1680, %v1679
        %1697 = vmatprep.subr.bf16.mxu0 0
        %1698 = vmatpush1.bf16.msra.mxu0 %v1688
        %1699 = vmatprep.subr.bf16.mxu0 0
        %1700 = vmatpush1.bf16.msra.mxu0 %v1687
        %1701 = vmatprep.subr.bf16.mxu0 0
        %1702 = vmatpush1.bf16.msra.mxu0 %v1686
        %1703 = vmatprep.subr.bf16.mxu0 0
        %1704 = vmatpush1.bf16.msra.mxu0 %v1685
        %1705 = vmatprep.subr.bf16.mxu0 0
        %1706 = vmatpush1.bf16.msra.mxu0 %v1684
        %1707 = vmatprep.subr.bf16.mxu0 0
        %1708 = vmatpush1.bf16.msra.mxu0 %v1683
        %1709 = vmatprep.subr.bf16.mxu0 0
        %1710 = vmatpush1.bf16.msra.mxu0 %v1682
        %1711 = vmatprep.subr.bf16.mxu0 0
        %1712 = vmatpush1.bf16.msra.mxu0 %v1681
        %1713 = vmatprep.subr.bf16.mxu0 0
        %1714 = vmatpush2.bf16.msra.mxu0 0
        %1715 = vmatprep.subr.bf16.mxu0 0
        %1716 = vmatpush2.bf16.msra.mxu0 0
        %1717 = vmatprep.subr.bf16.mxu0 0
        %1718 = vmatpush2.bf16.msra.mxu0 0
        %1719 = vmatprep.subr.bf16.mxu0 0
        %1720 = vmatpush2.bf16.msra.mxu0 0
        %1721 = vmatprep.subr.bf16.mxu0 0
        %1722 = vmatpush2.bf16.msra.mxu0 0
        %1723 = vmatprep.subr.bf16.mxu0 0
        %1724 = vmatpush2.bf16.msra.mxu0 0
        %1725 = vmatprep.subr.bf16.mxu0 0
        %1726 = vmatpush2.bf16.msra.mxu0 0
        %1727 = vmatprep.subr.bf16.mxu0 0
        %1728 = vmatpush2.bf16.msra.mxu0 0
        %1729 = vmatprep.mubr.bf16.mxu0 0
        %1730 = vmatmul.mubr.bf16.gmra.mxu0 %v1648
        %v1731 = vpop.f32.mrf.mxu0
        %v1732 = vadd.f32 0.0, %v1731
        %v1733 = vpop.f32.mrf.mxu0
        %v1734 = vpop.f32.mrf.mxu0
        %v1735 = vadd.f32 0.0, %v1734
        %v1736 = vpop.f32.mrf.mxu0
        %1737 = vdwg.mxu0
        %vm1740 = vcmask 1040384
        %v1741 = vrot.slane %v1621, 7
        %v1742 = vrot.slane %v1622, 7
        %v1743 = vsel %vm1740, %v1741, %v1742
        %v1746 = vsel %vm1740, %v1735, %v1741
        %v1747 = vpack.c.bf16 %v1746, %v1732
        %v1748 = vpack.c.bf16 %v1743, %v1743
        %v1753 = vunpack.c.l.b16 %v1640
        %v1754 = vunpack.c.l.b16 %v1641
        %v1755 = vunpack.c.l.b16 %v1642
        %v1756 = vunpack.c.l.b16 %v1643
        %v1757 = vpack.c.b16 %v1754, %v1753
        %v1758 = vpack.c.b16 %v1756, %v1755
        %vm1759 = vcmask 146432
        %v1761 = vsel %vm1759, %v1757, 0
        %v1764 = vsel %vm1759, %v1758, 0
        %v1767 = vsel %vm1740, %v1748, 0
        %1769 = vmatprep.subr.bf16.mxu0 0
        %1770 = vmatpush1.bf16.msra.mxu0 0
        %1771 = vmatprep.subr.bf16.mxu0 0
        %1772 = vmatpush1.bf16.msra.mxu0 0
        %1773 = vmatprep.subr.bf16.mxu0 0
        %1774 = vmatpush1.bf16.msra.mxu0 0
        %1775 = vmatprep.subr.bf16.mxu0 0
        %1776 = vmatpush1.bf16.msra.mxu0 0
        %1777 = vmatprep.subr.bf16.mxu0 0
        %1778 = vmatpush1.bf16.msra.mxu0 0
        %1779 = vmatprep.subr.bf16.mxu0 0
        %1780 = vmatpush1.bf16.msra.mxu0 0
        %1781 = vmatprep.subr.bf16.mxu0 0
        %1782 = vmatpush1.bf16.msra.mxu0 %v1767
        %1783 = vmatprep.subr.bf16.mxu0 0
        %1784 = vmatpush1.bf16.msra.mxu0 %v1747
        %1785 = vmatprep.subr.bf16.mxu0 0
        %1786 = vmatpush2.bf16.msra.mxu0 0
        %1787 = vmatprep.subr.bf16.mxu0 0
        %1788 = vmatpush2.bf16.msra.mxu0 0
        %1789 = vmatprep.subr.bf16.mxu0 0
        %1790 = vmatpush2.bf16.msra.mxu0 0
        %1791 = vmatprep.subr.bf16.mxu0 0
        %1792 = vmatpush2.bf16.msra.mxu0 0
        %1793 = vmatprep.subr.bf16.mxu0 0
        %1794 = vmatpush2.bf16.msra.mxu0 0
        %1795 = vmatprep.subr.bf16.mxu0 0
        %1796 = vmatpush2.bf16.msra.mxu0 0
        %1797 = vmatprep.subr.bf16.mxu0 0
        %1798 = vmatpush2.bf16.msra.mxu0 0
        %1799 = vmatprep.subr.bf16.mxu0 0
        %1800 = vmatpush2.bf16.msra.mxu0 0
        %1801 = vmatprep.mubr.bf16.mxu0 0
        %1802 = vmatmul.mubr.bf16.gmra.mxu0 %v1761
        %v1803 = vpop.f32.mrf.mxu0
        %v1804 = vadd.f32 %v1644, %v1803
        %v1805 = vpop.f32.mrf.mxu0
        %v1806 = vpop.f32.mrf.mxu0
        %v1807 = vadd.f32 %v1645, %v1806
        %v1808 = vpop.f32.mrf.mxu0
        %1809 = vmatprep.mubr.bf16.mxu0 0
        %1810 = vmatmul.mubr.bf16.gmra.mxu0 %v1764
        %v1811 = vpop.f32.mrf.mxu0
        %v1812 = vadd.f32 %v1646, %v1811
        %v1813 = vpop.f32.mrf.mxu0
        %v1814 = vpop.f32.mrf.mxu0
        %v1815 = vadd.f32 %v1647, %v1814
        %v1816 = vpop.f32.mrf.mxu0
        %1817 = vdwg.mxu0
        %vm1818 = vcmp.ge.f32.partialorder %v1804, 0.0
        %vm1819 = vcmp.ge.f32.partialorder %v1807, 0.0
        %vm1820 = vcmp.ge.f32.partialorder %v1812, 0.0
        %vm1821 = vcmp.ge.f32.partialorder %v1815, 0.0
        %v1822 = vstv %s1623
        %v1823 = vmul.f32 %v1822, %v1804
        %v1824 = vmul.f32 %v1822, %v1807
        %v1825 = vmul.f32 %v1822, %v1812
        %v1826 = vmul.f32 %v1822, %v1815
        %v1827 = vsel %vm1818, %v1804, %v1823
        %v1828 = vsel %vm1819, %v1807, %v1824
        %v1829 = vsel %vm1820, %v1812, %v1825
        %v1830 = vsel %vm1821, %v1815, %v1826
        %s1831 = sld [smem:[#allocation2 + $0x1]]
        %v1832 = vld [vmem:[%s11] sm:$0xf]
        %v1833 = vld [vmem:[%s11 + $0x4] sm:$0xf]
        %v1834 = vld [vmem:[%s11 + $0x8] sm:$0xf]
        %v1835 = vld [vmem:[%s11 + $0xc] sm:$0xf]
        %v1836 = vld [vmem:[%s11 + $0x10] sm:$0xf]
        %v1837 = vld [vmem:[%s11 + $0x14] sm:$0xf]
        %v1838 = vld [vmem:[%s11 + $0x18] sm:$0xf]
        %v1839 = vld [vmem:[%s11 + $0x1c] sm:$0xf]
        %v1840 = vld [vmem:[%s11 + $0x20] sm:$0xf]
        %v1841 = vld [vmem:[%s11 + $0x24] sm:$0xf]
        %v1842 = vld [vmem:[%s11 + $0x28] sm:$0xf]
        %v1843 = vld [vmem:[%s11 + $0x2c] sm:$0xf]
        %v1844 = vld [vmem:[%s11 + $0x30] sm:$0xf]
        %v1845 = vld [vmem:[%s11 + $0x34] sm:$0xf]
        %v1846 = vld [vmem:[%s11 + $0x38] sm:$0xf]
        %v1847 = vld [vmem:[%s11 + $0x3c] sm:$0xf]
        %v1848 = vld [vmem:[#allocation8] sm:$0xf]
        %v1849 = vld [vmem:[#allocation8 + $0x4] sm:$0xf]
        %v1850 = vld [vmem:[#allocation8 + $0x8] sm:$0xf]
        %v1851 = vld [vmem:[#allocation8 + $0xc] sm:$0xf]
        %v1852 = vld [vmem:[#allocation14] sm:$0xff]
        %v1853 = vld [vmem:[#allocation14 + $0x8] sm:$0xff]
        %v1854 = vpack.c.bf16 %v1828, %v1827
        %v1855 = vpack.c.bf16 %v1830, %v1829
        %v1860 = vunpack.c.l.b16 %v1848
        %v1861 = vunpack.c.l.b16 %v1849
        %v1862 = vunpack.c.l.b16 %v1850
        %v1863 = vunpack.c.l.b16 %v1851
        %v1864 = vpack.c.b16 %v1861, %v1860
        %v1865 = vpack.c.b16 %v1863, %v1862
        %vm1866 = vcmask 261120
        %v1868 = vsel %vm1866, %v1864, 0
        %v1871 = vsel %vm1866, %v1865, 0
        %1873 = vmatprep.subr.bf16.mxu0 0
        %1874 = vmatpush1.bf16.msra.mxu0 0
        %1875 = vmatprep.subr.bf16.mxu0 0
        %1876 = vmatpush1.bf16.msra.mxu0 0
        %1877 = vmatprep.subr.bf16.mxu0 0
        %1878 = vmatpush1.bf16.msra.mxu0 0
        %1879 = vmatprep.subr.bf16.mxu0 0
        %1880 = vmatpush1.bf16.msra.mxu0 0
        %1881 = vmatprep.subr.bf16.mxu0 0
        %1882 = vmatpush1.bf16.msra.mxu0 0
        %1883 = vmatprep.subr.bf16.mxu0 0
        %1884 = vmatpush1.bf16.msra.mxu0 0
        %1885 = vmatprep.subr.bf16.mxu0 0
        %1886 = vmatpush1.bf16.msra.mxu0 %v1855
        %1887 = vmatprep.subr.bf16.mxu0 0
        %1888 = vmatpush1.bf16.msra.mxu0 %v1854
        %1889 = vmatprep.subr.bf16.mxu0 0
        %1890 = vmatpush2.bf16.msra.mxu0 0
        %1891 = vmatprep.subr.bf16.mxu0 0
        %1892 = vmatpush2.bf16.msra.mxu0 0
        %1893 = vmatprep.subr.bf16.mxu0 0
        %1894 = vmatpush2.bf16.msra.mxu0 0
        %1895 = vmatprep.subr.bf16.mxu0 0
        %1896 = vmatpush2.bf16.msra.mxu0 0
        %1897 = vmatprep.subr.bf16.mxu0 0
        %1898 = vmatpush2.bf16.msra.mxu0 0
        %1899 = vmatprep.subr.bf16.mxu0 0
        %1900 = vmatpush2.bf16.msra.mxu0 0
        %1901 = vmatprep.subr.bf16.mxu0 0
        %1902 = vmatpush2.bf16.msra.mxu0 0
        %1903 = vmatprep.subr.bf16.mxu0 0
        %1904 = vmatpush2.bf16.msra.mxu0 0
        %1905 = vmatprep.mubr.bf16.mxu0 0
        %1906 = vmatmul.mubr.bf16.gmra.mxu0 %v1868
        %v1907 = vpop.f32.mrf.mxu0
        %v1908 = vadd.f32 0.0, %v1907
        %v1909 = vpop.f32.mrf.mxu0
        %v1910 = vpop.f32.mrf.mxu0
        %v1911 = vadd.f32 0.0, %v1910
        %v1912 = vpop.f32.mrf.mxu0
        %1913 = vmatprep.mubr.bf16.mxu0 0
        %1914 = vmatmul.mubr.bf16.gmra.mxu0 %v1871
        %v1915 = vpop.f32.mrf.mxu0
        %v1916 = vadd.f32 0.0, %v1915
        %v1917 = vpop.f32.mrf.mxu0
        %v1918 = vpop.f32.mrf.mxu0
        %v1919 = vadd.f32 0.0, %v1918
        %v1920 = vpop.f32.mrf.mxu0
        %1921 = vdwg.mxu0
        %v1922 = vpack.c.bf16 %v1911, %v1908
        %v1939 = vunpack.c.l.b16 %v1832
        %v1940 = vunpack.c.l.b16 %v1833
        %v1941 = vunpack.c.l.b16 %v1834
        %v1942 = vunpack.c.l.b16 %v1835
        %v1943 = vunpack.c.l.b16 %v1836
        %v1944 = vunpack.c.l.b16 %v1837
        %v1945 = vunpack.c.l.b16 %v1838
        %v1946 = vunpack.c.l.b16 %v1839
        %v1947 = vunpack.c.l.b16 %v1840
        %v1948 = vunpack.c.l.b16 %v1841
        %v1949 = vunpack.c.l.b16 %v1842
        %v1950 = vunpack.c.l.b16 %v1843
        %v1951 = vunpack.c.l.b16 %v1844
        %v1952 = vunpack.c.l.b16 %v1845
        %v1953 = vunpack.c.l.b16 %v1846
        %v1954 = vunpack.c.l.b16 %v1847
        %v1955 = vpack.c.b16 %v1940, %v1939
        %v1956 = vpack.c.b16 %v1942, %v1941
        %v1957 = vpack.c.b16 %v1944, %v1943
        %v1958 = vpack.c.b16 %v1946, %v1945
        %v1959 = vpack.c.b16 %v1948, %v1947
        %v1960 = vpack.c.b16 %v1950, %v1949
        %v1961 = vpack.c.b16 %v1952, %v1951
        %v1962 = vpack.c.b16 %v1954, %v1953
        %1971 = vmatprep.subr.bf16.mxu0 0
        %1972 = vmatpush1.bf16.msra.mxu0 %v1962
        %1973 = vmatprep.subr.bf16.mxu0 0
        %1974 = vmatpush1.bf16.msra.mxu0 %v1961
        %1975 = vmatprep.subr.bf16.mxu0 0
        %1976 = vmatpush1.bf16.msra.mxu0 %v1960
        %1977 = vmatprep.subr.bf16.mxu0 0
        %1978 = vmatpush1.bf16.msra.mxu0 %v1959
        %1979 = vmatprep.subr.bf16.mxu0 0
        %1980 = vmatpush1.bf16.msra.mxu0 %v1958
        %1981 = vmatprep.subr.bf16.mxu0 0
        %1982 = vmatpush1.bf16.msra.mxu0 %v1957
        %1983 = vmatprep.subr.bf16.mxu0 0
        %1984 = vmatpush1.bf16.msra.mxu0 %v1956
        %1985 = vmatprep.subr.bf16.mxu0 0
        %1986 = vmatpush1.bf16.msra.mxu0 %v1955
        %1987 = vmatprep.subr.bf16.mxu0 0
        %1988 = vmatpush2.bf16.msra.mxu0 0
        %1989 = vmatprep.subr.bf16.mxu0 0
        %1990 = vmatpush2.bf16.msra.mxu0 0
        %1991 = vmatprep.subr.bf16.mxu0 0
        %1992 = vmatpush2.bf16.msra.mxu0 0
        %1993 = vmatprep.subr.bf16.mxu0 0
        %1994 = vmatpush2.bf16.msra.mxu0 0
        %1995 = vmatprep.subr.bf16.mxu0 0
        %1996 = vmatpush2.bf16.msra.mxu0 0
        %1997 = vmatprep.subr.bf16.mxu0 0
        %1998 = vmatpush2.bf16.msra.mxu0 0
        %1999 = vmatprep.subr.bf16.mxu0 0
        %2000 = vmatpush2.bf16.msra.mxu0 0
        %2001 = vmatprep.subr.bf16.mxu0 0
        %2002 = vmatpush2.bf16.msra.mxu0 0
        %2003 = vmatprep.mubr.bf16.mxu0 0
        %2004 = vmatmul.mubr.bf16.gmra.mxu0 %v1922
        %v2005 = vpop.f32.mrf.mxu0
        %v2006 = vadd.f32 %v1916, %v2005
        %v2007 = vpop.f32.mrf.mxu0
        %v2008 = vpop.f32.mrf.mxu0
        %v2009 = vadd.f32 %v1919, %v2008
        %v2010 = vpop.f32.mrf.mxu0
        %2011 = vdwg.mxu0
        %v2012 = vadd.f32 %v2006, %v1852
        %v2013 = vadd.f32 %v2009, %v1853
        %vm2014 = vcmp.ge.f32.partialorder %v2012, 0.0
        %vm2015 = vcmp.ge.f32.partialorder %v2013, 0.0
        %v2016 = vstv %s1831
        %v2017 = vmul.f32 %v2016, %v2012
        %v2018 = vmul.f32 %v2016, %v2013
        %v2019 = vsel %vm2014, %v2012, %v2017
        %v2020 = vsel %vm2015, %v2013, %v2018
        %s2021 = sld [smem:[#allocation2 + $0x2]]
        %v2022 = vld [vmem:[#allocation5] sm:$0xf]
        %v2023 = vld [vmem:[#allocation5 + $0x4] sm:$0xf]
        %v2024 = vld [vmem:[#allocation5 + $0x8] sm:$0xf]
        %v2025 = vld [vmem:[#allocation5 + $0xc] sm:$0xf]
        %v2026 = vld [vmem:[#allocation5 + $0x10] sm:$0xf]
        %v2027 = vld [vmem:[#allocation5 + $0x14] sm:$0xf]
        %v2028 = vld [vmem:[#allocation5 + $0x18] sm:$0xf]
        %v2029 = vld [vmem:[#allocation5 + $0x1c] sm:$0xf]
        %v2030 = vld [vmem:[#allocation5 + $0x20] sm:$0xf]
        %v2031 = vld [vmem:[#allocation5 + $0x24] sm:$0xf]
        %v2032 = vld [vmem:[#allocation5 + $0x28] sm:$0xf]
        %v2033 = vld [vmem:[#allocation5 + $0x2c] sm:$0xf]
        %v2034 = vld [vmem:[#allocation5 + $0x30] sm:$0xf]
        %v2035 = vld [vmem:[#allocation5 + $0x34] sm:$0xf]
        %v2036 = vld [vmem:[#allocation5 + $0x38] sm:$0xf]
        %v2037 = vld [vmem:[#allocation5 + $0x3c] sm:$0xf]
        %v2038 = vld [vmem:[#allocation9] sm:$0xf]
        %v2039 = vld [vmem:[#allocation9 + $0x4] sm:$0xf]
        %v2040 = vld [vmem:[#allocation9 + $0x8] sm:$0xf]
        %v2041 = vld [vmem:[#allocation9 + $0xc] sm:$0xf]
        %v2042 = vld [vmem:[#allocation15] sm:$0xff]
        %v2043 = vld [vmem:[#allocation15 + $0x8] sm:$0xff]
        %v2044 = vld [vmem:[#allocation15 + $0x10] sm:$0xff]
        %v2045 = vld [vmem:[#allocation15 + $0x18] sm:$0xff]
        %v2046 = vpack.c.bf16 %v2020, %v2019
        %v2063 = vunpack.c.l.b16 %v2022
        %v2064 = vunpack.c.l.b16 %v2023
        %v2065 = vunpack.c.l.b16 %v2024
        %v2066 = vunpack.c.l.b16 %v2025
        %v2067 = vunpack.c.l.b16 %v2026
        %v2068 = vunpack.c.l.b16 %v2027
        %v2069 = vunpack.c.l.b16 %v2028
        %v2070 = vunpack.c.l.b16 %v2029
        %v2071 = vunpack.c.l.b16 %v2030
        %v2072 = vunpack.c.l.b16 %v2031
        %v2073 = vunpack.c.l.b16 %v2032
        %v2074 = vunpack.c.l.b16 %v2033
        %v2075 = vunpack.c.l.b16 %v2034
        %v2076 = vunpack.c.l.b16 %v2035
        %v2077 = vunpack.c.l.b16 %v2036
        %v2078 = vunpack.c.l.b16 %v2037
        %v2079 = vpack.c.b16 %v2064, %v2063
        %v2080 = vpack.c.b16 %v2066, %v2065
        %v2081 = vpack.c.b16 %v2068, %v2067
        %v2082 = vpack.c.b16 %v2070, %v2069
        %v2083 = vpack.c.b16 %v2072, %v2071
        %v2084 = vpack.c.b16 %v2074, %v2073
        %v2085 = vpack.c.b16 %v2076, %v2075
        %v2086 = vpack.c.b16 %v2078, %v2077
        %2095 = vmatprep.subr.bf16.mxu0 0
        %2096 = vmatpush1.bf16.msra.mxu0 %v2086
        %2097 = vmatprep.subr.bf16.mxu0 0
        %2098 = vmatpush1.bf16.msra.mxu0 %v2085
        %2099 = vmatprep.subr.bf16.mxu0 0
        %2100 = vmatpush1.bf16.msra.mxu0 %v2084
        %2101 = vmatprep.subr.bf16.mxu0 0
        %2102 = vmatpush1.bf16.msra.mxu0 %v2083
        %2103 = vmatprep.subr.bf16.mxu0 0
        %2104 = vmatpush1.bf16.msra.mxu0 %v2082
        %2105 = vmatprep.subr.bf16.mxu0 0
        %2106 = vmatpush1.bf16.msra.mxu0 %v2081
        %2107 = vmatprep.subr.bf16.mxu0 0
        %2108 = vmatpush1.bf16.msra.mxu0 %v2080
        %2109 = vmatprep.subr.bf16.mxu0 0
        %2110 = vmatpush1.bf16.msra.mxu0 %v2079
        %2111 = vmatprep.subr.bf16.mxu0 0
        %2112 = vmatpush2.bf16.msra.mxu0 0
        %2113 = vmatprep.subr.bf16.mxu0 0
        %2114 = vmatpush2.bf16.msra.mxu0 0
        %2115 = vmatprep.subr.bf16.mxu0 0
        %2116 = vmatpush2.bf16.msra.mxu0 0
        %2117 = vmatprep.subr.bf16.mxu0 0
        %2118 = vmatpush2.bf16.msra.mxu0 0
        %2119 = vmatprep.subr.bf16.mxu0 0
        %2120 = vmatpush2.bf16.msra.mxu0 0
        %2121 = vmatprep.subr.bf16.mxu0 0
        %2122 = vmatpush2.bf16.msra.mxu0 0
        %2123 = vmatprep.subr.bf16.mxu0 0
        %2124 = vmatpush2.bf16.msra.mxu0 0
        %2125 = vmatprep.subr.bf16.mxu0 0
        %2126 = vmatpush2.bf16.msra.mxu0 0
        %2127 = vmatprep.mubr.bf16.mxu0 0
        %2128 = vmatmul.mubr.bf16.gmra.mxu0 %v2046
        %v2129 = vpop.f32.mrf.mxu0
        %v2130 = vadd.f32 0.0, %v2129
        %v2131 = vpop.f32.mrf.mxu0
        %v2132 = vpop.f32.mrf.mxu0
        %v2133 = vadd.f32 0.0, %v2132
        %v2134 = vpop.f32.mrf.mxu0
        %2135 = vdwg.mxu0
        %v2136 = vpack.c.bf16 %v2133, %v2130
        %v2141 = vunpack.c.l.b16 %v2038
        %v2142 = vunpack.c.l.b16 %v2039
        %v2143 = vunpack.c.l.b16 %v2040
        %v2144 = vunpack.c.l.b16 %v2041
        %v2145 = vpack.c.b16 %v2142, %v2141
        %v2146 = vpack.c.b16 %v2144, %v2143
        %v2148 = vsel %vm1866, %v2145, 0
        %v2151 = vsel %vm1866, %v2146, 0
        %2153 = vmatprep.subr.bf16.mxu0 0
        %2154 = vmatpush1.bf16.msra.mxu0 0
        %2155 = vmatprep.subr.bf16.mxu0 0
        %2156 = vmatpush1.bf16.msra.mxu0 0
        %2157 = vmatprep.subr.bf16.mxu0 0
        %2158 = vmatpush1.bf16.msra.mxu0 0
        %2159 = vmatprep.subr.bf16.mxu0 0
        %2160 = vmatpush1.bf16.msra.mxu0 0
        %2161 = vmatprep.subr.bf16.mxu0 0
        %2162 = vmatpush1.bf16.msra.mxu0 0
        %2163 = vmatprep.subr.bf16.mxu0 0
        %2164 = vmatpush1.bf16.msra.mxu0 0
        %2165 = vmatprep.subr.bf16.mxu0 0
        %2166 = vmatpush1.bf16.msra.mxu0 %v2046
        %2167 = vmatprep.subr.bf16.mxu0 0
        %2168 = vmatpush1.bf16.msra.mxu0 %v2136
        %2169 = vmatprep.subr.bf16.mxu0 0
        %2170 = vmatpush2.bf16.msra.mxu0 0
        %2171 = vmatprep.subr.bf16.mxu0 0
        %2172 = vmatpush2.bf16.msra.mxu0 0
        %2173 = vmatprep.subr.bf16.mxu0 0
        %2174 = vmatpush2.bf16.msra.mxu0 0
        %2175 = vmatprep.subr.bf16.mxu0 0
        %2176 = vmatpush2.bf16.msra.mxu0 0
        %2177 = vmatprep.subr.bf16.mxu0 0
        %2178 = vmatpush2.bf16.msra.mxu0 0
        %2179 = vmatprep.subr.bf16.mxu0 0
        %2180 = vmatpush2.bf16.msra.mxu0 0
        %2181 = vmatprep.subr.bf16.mxu0 0
        %2182 = vmatpush2.bf16.msra.mxu0 0
        %2183 = vmatprep.subr.bf16.mxu0 0
        %2184 = vmatpush2.bf16.msra.mxu0 0
        %2185 = vmatprep.mubr.bf16.mxu0 0
        %2186 = vmatmul.mubr.bf16.gmra.mxu0 %v2148
        %v2187 = vpop.f32.mrf.mxu0
        %v2188 = vadd.f32 %v2042, %v2187
        %v2189 = vpop.f32.mrf.mxu0
        %v2190 = vpop.f32.mrf.mxu0
        %v2191 = vadd.f32 %v2043, %v2190
        %v2192 = vpop.f32.mrf.mxu0
        %2193 = vmatprep.mubr.bf16.mxu0 0
        %2194 = vmatmul.mubr.bf16.gmra.mxu0 %v2151
        %v2195 = vpop.f32.mrf.mxu0
        %v2196 = vadd.f32 %v2044, %v2195
        %v2197 = vpop.f32.mrf.mxu0
        %v2198 = vpop.f32.mrf.mxu0
        %v2199 = vadd.f32 %v2045, %v2198
        %v2200 = vpop.f32.mrf.mxu0
        %2201 = vdwg.mxu0
        %vm2202 = vcmp.ge.f32.partialorder %v2188, 0.0
        %vm2203 = vcmp.ge.f32.partialorder %v2191, 0.0
        %vm2204 = vcmp.ge.f32.partialorder %v2196, 0.0
        %vm2205 = vcmp.ge.f32.partialorder %v2199, 0.0
        %v2206 = vstv %s2021
        %v2207 = vmul.f32 %v2206, %v2188
        %v2208 = vmul.f32 %v2206, %v2191
        %v2209 = vmul.f32 %v2206, %v2196
        %v2210 = vmul.f32 %v2206, %v2199
        %v2211 = vsel %vm2202, %v2188, %v2207
        %v2212 = vsel %vm2203, %v2191, %v2208
        %v2213 = vsel %vm2204, %v2196, %v2209
        %v2214 = vsel %vm2205, %v2199, %v2210
        %s2215 = sld [smem:[#allocation2 + $0x3]]
        %v2216 = vld [vmem:[#allocation6] sm:$0xf]
        %v2217 = vld [vmem:[#allocation6 + $0x4] sm:$0xf]
        %v2218 = vld [vmem:[#allocation6 + $0x8] sm:$0xf]
        %v2219 = vld [vmem:[#allocation6 + $0xc] sm:$0xf]
        %v2220 = vld [vmem:[#allocation6 + $0x10] sm:$0xf]
        %v2221 = vld [vmem:[#allocation6 + $0x14] sm:$0xf]
        %v2222 = vld [vmem:[#allocation6 + $0x18] sm:$0xf]
        %v2223 = vld [vmem:[#allocation6 + $0x1c] sm:$0xf]
        %v2224 = vld [vmem:[#allocation6 + $0x20] sm:$0xf]
        %v2225 = vld [vmem:[#allocation6 + $0x24] sm:$0xf]
        %v2226 = vld [vmem:[#allocation6 + $0x28] sm:$0xf]
        %v2227 = vld [vmem:[#allocation6 + $0x2c] sm:$0xf]
        %v2228 = vld [vmem:[#allocation6 + $0x30] sm:$0xf]
        %v2229 = vld [vmem:[#allocation6 + $0x34] sm:$0xf]
        %v2230 = vld [vmem:[#allocation6 + $0x38] sm:$0xf]
        %v2231 = vld [vmem:[#allocation6 + $0x3c] sm:$0xf]
        %v2232 = vld [vmem:[#allocation11] sm:$0xf]
        %v2233 = vld [vmem:[#allocation11 + $0x4] sm:$0xf]
        %v2234 = vld [vmem:[#allocation11 + $0x8] sm:$0x1]
        %v2235 = vld [vmem:[#allocation17] sm:$0xff]
        %v2236 = vld [vmem:[#allocation17 + $0x8] sm:$0x1]
        %v2237 = vpack.c.bf16 %v2212, %v2211
        %v2238 = vpack.c.bf16 %v2214, %v2213
        %v2242 = vunpack.c.l.b16 %v2232
        %v2243 = vunpack.c.l.b16 %v2233
        %v2244 = vunpack.c.l.b16 %v2234
        %v2245 = vpack.c.b16 %v2243, %v2242
        %v2246 = vpack.c.b16 %v2244, %v2244
        %v2248 = vsel %vm1866, %v2245, 0
        %v2251 = vsel %vm1866, %v2246, 0
        %2253 = vmatprep.subr.bf16.mxu0 0
        %2254 = vmatpush1.bf16.msra.mxu0 0
        %2255 = vmatprep.subr.bf16.mxu0 0
        %2256 = vmatpush1.bf16.msra.mxu0 0
        %2257 = vmatprep.subr.bf16.mxu0 0
        %2258 = vmatpush1.bf16.msra.mxu0 0
        %2259 = vmatprep.subr.bf16.mxu0 0
        %2260 = vmatpush1.bf16.msra.mxu0 0
        %2261 = vmatprep.subr.bf16.mxu0 0
        %2262 = vmatpush1.bf16.msra.mxu0 0
        %2263 = vmatprep.subr.bf16.mxu0 0
        %2264 = vmatpush1.bf16.msra.mxu0 0
        %2265 = vmatprep.subr.bf16.mxu0 0
        %2266 = vmatpush1.bf16.msra.mxu0 %v2238
        %2267 = vmatprep.subr.bf16.mxu0 0
        %2268 = vmatpush1.bf16.msra.mxu0 %v2237
        %2269 = vmatprep.subr.bf16.mxu0 0
        %2270 = vmatpush2.bf16.msra.mxu0 0
        %2271 = vmatprep.subr.bf16.mxu0 0
        %2272 = vmatpush2.bf16.msra.mxu0 0
        %2273 = vmatprep.subr.bf16.mxu0 0
        %2274 = vmatpush2.bf16.msra.mxu0 0
        %2275 = vmatprep.subr.bf16.mxu0 0
        %2276 = vmatpush2.bf16.msra.mxu0 0
        %2277 = vmatprep.subr.bf16.mxu0 0
        %2278 = vmatpush2.bf16.msra.mxu0 0
        %2279 = vmatprep.subr.bf16.mxu0 0
        %2280 = vmatpush2.bf16.msra.mxu0 0
        %2281 = vmatprep.subr.bf16.mxu0 0
        %2282 = vmatpush2.bf16.msra.mxu0 0
        %2283 = vmatprep.subr.bf16.mxu0 0
        %2284 = vmatpush2.bf16.msra.mxu0 0
        %2285 = vmatprep.mubr.bf16.mxu0 0
        %2286 = vmatmul.mubr.bf16.gmra.mxu0 %v2248
        %v2287 = vpop.f32.mrf.mxu0
        %v2288 = vadd.f32 0.0, %v2287
        %v2289 = vpop.f32.mrf.mxu0
        %v2290 = vpop.f32.mrf.mxu0
        %v2291 = vadd.f32 0.0, %v2290
        %v2292 = vpop.f32.mrf.mxu0
        %2293 = vmatprep.mubr.bf16.mxu0 0
        %2294 = vmatmul.mubr.bf16.gmra.mxu0 %v2251
        %v2295 = vpop.f32.mrf.mxu0
        %v2296 = vadd.f32 0.0, %v2295
        %v2297 = vpop.f32.mrf.mxu0
        %v2298 = vpop.f32.mrf.mxu0
        %v2299 = vpop.f32.mrf.mxu0
        %2300 = vdwg.mxu0
        %v2301 = vpack.c.bf16 %v2291, %v2288
        %v2318 = vunpack.c.l.b16 %v2216
        %v2319 = vunpack.c.l.b16 %v2217
        %v2320 = vunpack.c.l.b16 %v2218
        %v2321 = vunpack.c.l.b16 %v2219
        %v2322 = vunpack.c.l.b16 %v2220
        %v2323 = vunpack.c.l.b16 %v2221
        %v2324 = vunpack.c.l.b16 %v2222
        %v2325 = vunpack.c.l.b16 %v2223
        %v2326 = vunpack.c.l.b16 %v2224
        %v2327 = vunpack.c.l.b16 %v2225
        %v2328 = vunpack.c.l.b16 %v2226
        %v2329 = vunpack.c.l.b16 %v2227
        %v2330 = vunpack.c.l.b16 %v2228
        %v2331 = vunpack.c.l.b16 %v2229
        %v2332 = vunpack.c.l.b16 %v2230
        %v2333 = vunpack.c.l.b16 %v2231
        %v2334 = vpack.c.b16 %v2319, %v2318
        %v2335 = vpack.c.b16 %v2321, %v2320
        %v2336 = vpack.c.b16 %v2323, %v2322
        %v2337 = vpack.c.b16 %v2325, %v2324
        %v2338 = vpack.c.b16 %v2327, %v2326
        %v2339 = vpack.c.b16 %v2329, %v2328
        %v2340 = vpack.c.b16 %v2331, %v2330
        %v2341 = vpack.c.b16 %v2333, %v2332
        %vm2352 = vcmask 1046528
        %v2353 = vrot.slane %v2291, 1
        %v2354 = vrot.slane %v2296, 1
        %v2355 = vsel %vm2352, %v2353, %v2354
        %2358 = vmatprep.subr.bf16.mxu0 0
        %2359 = vmatpush1.bf16.msra.mxu0 %v2341
        %2360 = vmatprep.subr.bf16.mxu0 0
        %2361 = vmatpush1.bf16.msra.mxu0 %v2340
        %2362 = vmatprep.subr.bf16.mxu0 0
        %2363 = vmatpush1.bf16.msra.mxu0 %v2339
        %2364 = vmatprep.subr.bf16.mxu0 0
        %2365 = vmatpush1.bf16.msra.mxu0 %v2338
        %2366 = vmatprep.subr.bf16.mxu0 0
        %2367 = vmatpush1.bf16.msra.mxu0 %v2337
        %2368 = vmatprep.subr.bf16.mxu0 0
        %2369 = vmatpush1.bf16.msra.mxu0 %v2336
        %2370 = vmatprep.subr.bf16.mxu0 0
        %2371 = vmatpush1.bf16.msra.mxu0 %v2335
        %2372 = vmatprep.subr.bf16.mxu0 0
        %2373 = vmatpush1.bf16.msra.mxu0 %v2334
        %2374 = vmatprep.subr.bf16.mxu0 0
        %2375 = vmatpush2.bf16.msra.mxu0 0
        %2376 = vmatprep.subr.bf16.mxu0 0
        %2377 = vmatpush2.bf16.msra.mxu0 0
        %2378 = vmatprep.subr.bf16.mxu0 0
        %2379 = vmatpush2.bf16.msra.mxu0 0
        %2380 = vmatprep.subr.bf16.mxu0 0
        %2381 = vmatpush2.bf16.msra.mxu0 0
        %2382 = vmatprep.subr.bf16.mxu0 0
        %2383 = vmatpush2.bf16.msra.mxu0 0
        %2384 = vmatprep.subr.bf16.mxu0 0
        %2385 = vmatpush2.bf16.msra.mxu0 0
        %2386 = vmatprep.subr.bf16.mxu0 0
        %2387 = vmatpush2.bf16.msra.mxu0 0
        %2388 = vmatprep.subr.bf16.mxu0 0
        %2389 = vmatpush2.bf16.msra.mxu0 0
        %2390 = vmatprep.mubr.bf16.mxu0 0
        %2391 = vmatmul.mubr.bf16.gmra.mxu0 %v2301
        %v2392 = vpop.f32.mrf.mxu0
        %v2393 = vadd.f32 %v2355, %v2392
        %v2394 = vpop.f32.mrf.mxu0
        %v2395 = vpop.f32.mrf.mxu0
        %v2396 = vadd.f32 %v2354, %v2395
        %v2397 = vpop.f32.mrf.mxu0
        %2398 = vdwg.mxu0
        %v2399 = vadd.f32 %v2393, %v2235
        %v2400 = vadd.f32 %v2396, %v2236
        %vm2401 = vcmp.ge.f32.partialorder %v2399, 0.0
        %vm2402 = vcmp.ge.f32.partialorder %v2400, 0.0
        %v2403 = vstv %s2215
        %v2404 = vmul.f32 %v2403, %v2399
        %v2405 = vmul.f32 %v2403, %v2400
        %v2406 = vsel %vm2401, %v2399, %v2404
        %v2407 = vsel %vm2402, %v2400, %v2405
        %v2408 = vadd.f32 %v1621, %v2406
        %v2409 = vadd.f32 %v1622, %v2407
        %v2410 = vld [vmem:[%s1614] sm:$0xff]
        %v2411 = vld [vmem:[%s1614 + $0x8] sm:$0x1]
        %v2412 = vadd.f32 %v2408, %v2410
        %v2413 = vadd.f32 %v2409, %v2411
        %v2414 = vld [vmem:[%s1609] sm:$0xff]
        %v2415 = vld [vmem:[%s1609 + $0x8] sm:$0x1]
        %s2416 = sld [smem:[#allocation2 + $0x80]]
        %v2417 = vld [vmem:[#allocation18] sm:$0xf]
        %v2418 = vld [vmem:[%s41] sm:$0xf]
        %v2419 = vld [vmem:[%s41 + $0x4] sm:$0xf]
        %v2420 = vld [vmem:[%s41 + $0x8] sm:$0xf]
        %v2421 = vld [vmem:[%s41 + $0xc] sm:$0xf]
        %v2422 = vld [vmem:[%s49] sm:$0xff]
        %v2423 = vld [vmem:[%s49 + $0x8] sm:$0xff]
        %v2424 = vld [vmem:[%s49 + $0x10] sm:$0xff]
        %v2425 = vld [vmem:[%s49 + $0x18] sm:$0xff]
        %v2426 = vpack.c.bf16 %v2415, %v2414
        %vm2427 = vcmask 64512
        %v2429 = vsel %vm2427, %v2426, 0
        %vm2431 = vcmask 1043456
        %v2433 = vsel %vm2431, %v2417, 0
        %2435 = vmatprep.subr.bf16.mxu0 0
        %2436 = vmatpush1.bf16.msra.mxu0 0
        %2437 = vmatprep.subr.bf16.mxu0 0
        %2438 = vmatpush1.bf16.msra.mxu0 0
        %2439 = vmatprep.subr.bf16.mxu0 0
        %2440 = vmatpush1.bf16.msra.mxu0 0
        %2441 = vmatprep.subr.bf16.mxu0 0
        %2442 = vmatpush1.bf16.msra.mxu0 0
        %2443 = vmatprep.subr.bf16.mxu0 0
        %2444 = vmatpush1.bf16.msra.mxu0 0
        %2445 = vmatprep.subr.bf16.mxu0 0
        %2446 = vmatpush1.bf16.msra.mxu0 0
        %2447 = vmatprep.subr.bf16.mxu0 0
        %2448 = vmatpush1.bf16.msra.mxu0 0
        %2449 = vmatprep.subr.bf16.mxu0 0
        %2450 = vmatpush1.bf16.msra.mxu0 %v2433
        %2451 = vmatprep.subr.bf16.mxu0 0
        %2452 = vmatpush2.bf16.msra.mxu0 0
        %2453 = vmatprep.subr.bf16.mxu0 0
        %2454 = vmatpush2.bf16.msra.mxu0 0
        %2455 = vmatprep.subr.bf16.mxu0 0
        %2456 = vmatpush2.bf16.msra.mxu0 0
        %2457 = vmatprep.subr.bf16.mxu0 0
        %2458 = vmatpush2.bf16.msra.mxu0 0
        %2459 = vmatprep.subr.bf16.mxu0 0
        %2460 = vmatpush2.bf16.msra.mxu0 0
        %2461 = vmatprep.subr.bf16.mxu0 0
        %2462 = vmatpush2.bf16.msra.mxu0 0
        %2463 = vmatprep.subr.bf16.mxu0 0
        %2464 = vmatpush2.bf16.msra.mxu0 0
        %2465 = vmatprep.subr.bf16.mxu0 0
        %2466 = vmatpush2.bf16.msra.mxu0 0
        %2467 = vmatprep.mubr.bf16.mxu0 0
        %2468 = vmatmul.mubr.bf16.gmra.mxu0 %v2429
        %v2469 = vpop.f32.mrf.mxu0
        %v2470 = vadd.f32 0.0, %v2469
        %v2471 = vpop.f32.mrf.mxu0
        %v2472 = vpop.f32.mrf.mxu0
        %v2473 = vadd.f32 0.0, %v2472
        %v2474 = vpop.f32.mrf.mxu0
        %2475 = vdwg.mxu0
        %v2478 = vrot.slane %v2414, 7
        %v2479 = vrot.slane %v2415, 7
        %v2480 = vsel %vm1740, %v2478, %v2479
        %v2483 = vsel %vm1740, %v2473, %v2478
        %v2484 = vpack.c.bf16 %v2483, %v2470
        %v2485 = vpack.c.bf16 %v2480, %v2480
        %v2490 = vunpack.c.l.b16 %v2418
        %v2491 = vunpack.c.l.b16 %v2419
        %v2492 = vunpack.c.l.b16 %v2420
        %v2493 = vunpack.c.l.b16 %v2421
        %v2494 = vpack.c.b16 %v2491, %v2490
        %v2495 = vpack.c.b16 %v2493, %v2492
        %v2497 = vsel %vm1759, %v2494, 0
        %v2500 = vsel %vm1759, %v2495, 0
        %v2503 = vsel %vm1740, %v2485, 0
        %2505 = vmatprep.subr.bf16.mxu0 0
        %2506 = vmatpush1.bf16.msra.mxu0 0
        %2507 = vmatprep.subr.bf16.mxu0 0
        %2508 = vmatpush1.bf16.msra.mxu0 0
        %2509 = vmatprep.subr.bf16.mxu0 0
        %2510 = vmatpush1.bf16.msra.mxu0 0
        %2511 = vmatprep.subr.bf16.mxu0 0
        %2512 = vmatpush1.bf16.msra.mxu0 0
        %2513 = vmatprep.subr.bf16.mxu0 0
        %2514 = vmatpush1.bf16.msra.mxu0 0
        %2515 = vmatprep.subr.bf16.mxu0 0
        %2516 = vmatpush1.bf16.msra.mxu0 0
        %2517 = vmatprep.subr.bf16.mxu0 0
        %2518 = vmatpush1.bf16.msra.mxu0 %v2503
        %2519 = vmatprep.subr.bf16.mxu0 0
        %2520 = vmatpush1.bf16.msra.mxu0 %v2484
        %2521 = vmatprep.subr.bf16.mxu0 0
        %2522 = vmatpush2.bf16.msra.mxu0 0
        %2523 = vmatprep.subr.bf16.mxu0 0
        %2524 = vmatpush2.bf16.msra.mxu0 0
        %2525 = vmatprep.subr.bf16.mxu0 0
        %2526 = vmatpush2.bf16.msra.mxu0 0
        %2527 = vmatprep.subr.bf16.mxu0 0
        %2528 = vmatpush2.bf16.msra.mxu0 0
        %2529 = vmatprep.subr.bf16.mxu0 0
        %2530 = vmatpush2.bf16.msra.mxu0 0
        %2531 = vmatprep.subr.bf16.mxu0 0
        %2532 = vmatpush2.bf16.msra.mxu0 0
        %2533 = vmatprep.subr.bf16.mxu0 0
        %2534 = vmatpush2.bf16.msra.mxu0 0
        %2535 = vmatprep.subr.bf16.mxu0 0
        %2536 = vmatpush2.bf16.msra.mxu0 0
        %2537 = vmatprep.mubr.bf16.mxu0 0
        %2538 = vmatmul.mubr.bf16.gmra.mxu0 %v2497
        %v2539 = vpop.f32.mrf.mxu0
        %v2540 = vadd.f32 %v2422, %v2539
        %v2541 = vpop.f32.mrf.mxu0
        %v2542 = vpop.f32.mrf.mxu0
        %v2543 = vadd.f32 %v2423, %v2542
        %v2544 = vpop.f32.mrf.mxu0
        %2545 = vmatprep.mubr.bf16.mxu0 0
        %2546 = vmatmul.mubr.bf16.gmra.mxu0 %v2500
        %v2547 = vpop.f32.mrf.mxu0
        %v2548 = vadd.f32 %v2424, %v2547
        %v2549 = vpop.f32.mrf.mxu0
        %v2550 = vpop.f32.mrf.mxu0
        %v2551 = vadd.f32 %v2425, %v2550
        %v2552 = vpop.f32.mrf.mxu0
        %2553 = vdwg.mxu0
        %vm2554 = vcmp.ge.f32.partialorder %v2540, 0.0
        %vm2555 = vcmp.ge.f32.partialorder %v2543, 0.0
        %vm2556 = vcmp.ge.f32.partialorder %v2548, 0.0
        %vm2557 = vcmp.ge.f32.partialorder %v2551, 0.0
        %v2558 = vstv %s2416
        %v2559 = vmul.f32 %v2558, %v2540
        %v2560 = vmul.f32 %v2558, %v2543
        %v2561 = vmul.f32 %v2558, %v2548
        %v2562 = vmul.f32 %v2558, %v2551
        %v2563 = vsel %vm2554, %v2540, %v2559
        %v2564 = vsel %vm2555, %v2543, %v2560
        %v2565 = vsel %vm2556, %v2548, %v2561
        %v2566 = vsel %vm2557, %v2551, %v2562
        %s2567 = sld [smem:[#allocation2 + $0x81]]
        %v2568 = vld [vmem:[#allocation20] sm:$0xf]
        %v2569 = vld [vmem:[#allocation24] sm:$0xf]
        %v2570 = vld [vmem:[#allocation24 + $0x4] sm:$0xf]
        %v2571 = vld [vmem:[#allocation24 + $0x8] sm:$0xf]
        %v2572 = vld [vmem:[#allocation24 + $0xc] sm:$0xf]
        %v2573 = vld [vmem:[%s51] sm:$0xff]
        %v2574 = vld [vmem:[%s51 + $0x8] sm:$0xff]
        %v2575 = vpack.c.bf16 %v2564, %v2563
        %v2576 = vpack.c.bf16 %v2566, %v2565
        %v2581 = vunpack.c.l.b16 %v2569
        %v2582 = vunpack.c.l.b16 %v2570
        %v2583 = vunpack.c.l.b16 %v2571
        %v2584 = vunpack.c.l.b16 %v2572
        %v2585 = vpack.c.b16 %v2582, %v2581
        %v2586 = vpack.c.b16 %v2584, %v2583
        %v2588 = vsel %vm1866, %v2585, 0
        %v2591 = vsel %vm1866, %v2586, 0
        %2593 = vmatprep.subr.bf16.mxu0 0
        %2594 = vmatpush1.bf16.msra.mxu0 0
        %2595 = vmatprep.subr.bf16.mxu0 0
        %2596 = vmatpush1.bf16.msra.mxu0 0
        %2597 = vmatprep.subr.bf16.mxu0 0
        %2598 = vmatpush1.bf16.msra.mxu0 0
        %2599 = vmatprep.subr.bf16.mxu0 0
        %2600 = vmatpush1.bf16.msra.mxu0 0
        %2601 = vmatprep.subr.bf16.mxu0 0
        %2602 = vmatpush1.bf16.msra.mxu0 0
        %2603 = vmatprep.subr.bf16.mxu0 0
        %2604 = vmatpush1.bf16.msra.mxu0 0
        %2605 = vmatprep.subr.bf16.mxu0 0
        %2606 = vmatpush1.bf16.msra.mxu0 %v2576
        %2607 = vmatprep.subr.bf16.mxu0 0
        %2608 = vmatpush1.bf16.msra.mxu0 %v2575
        %2609 = vmatprep.subr.bf16.mxu0 0
        %2610 = vmatpush2.bf16.msra.mxu0 0
        %2611 = vmatprep.subr.bf16.mxu0 0
        %2612 = vmatpush2.bf16.msra.mxu0 0
        %2613 = vmatprep.subr.bf16.mxu0 0
        %2614 = vmatpush2.bf16.msra.mxu0 0
        %2615 = vmatprep.subr.bf16.mxu0 0
        %2616 = vmatpush2.bf16.msra.mxu0 0
        %2617 = vmatprep.subr.bf16.mxu0 0
        %2618 = vmatpush2.bf16.msra.mxu0 0
        %2619 = vmatprep.subr.bf16.mxu0 0
        %2620 = vmatpush2.bf16.msra.mxu0 0
        %2621 = vmatprep.subr.bf16.mxu0 0
        %2622 = vmatpush2.bf16.msra.mxu0 0
        %2623 = vmatprep.subr.bf16.mxu0 0
        %2624 = vmatpush2.bf16.msra.mxu0 0
        %2625 = vmatprep.mubr.bf16.mxu0 0
        %2626 = vmatmul.mubr.bf16.gmra.mxu0 %v2588
        %v2627 = vpop.f32.mrf.mxu0
        %v2628 = vadd.f32 0.0, %v2627
        %v2629 = vpop.f32.mrf.mxu0
        %v2630 = vpop.f32.mrf.mxu0
        %v2631 = vadd.f32 0.0, %v2630
        %v2632 = vpop.f32.mrf.mxu0
        %2633 = vmatprep.mubr.bf16.mxu0 0
        %2634 = vmatmul.mubr.bf16.gmra.mxu0 %v2591
        %v2635 = vpop.f32.mrf.mxu0
        %v2636 = vadd.f32 0.0, %v2635
        %v2637 = vpop.f32.mrf.mxu0
        %v2638 = vpop.f32.mrf.mxu0
        %v2639 = vadd.f32 0.0, %v2638
        %v2640 = vpop.f32.mrf.mxu0
        %2641 = vdwg.mxu0
        %v2642 = vpack.c.bf16 %v2631, %v2628
        %v2644 = vsel %vm2427, %v2642, 0
        %v2647 = vsel %vm2431, %v2568, 0
        %2649 = vmatprep.subr.bf16.mxu0 0
        %2650 = vmatpush1.bf16.msra.mxu0 0
        %2651 = vmatprep.subr.bf16.mxu0 0
        %2652 = vmatpush1.bf16.msra.mxu0 0
        %2653 = vmatprep.subr.bf16.mxu0 0
        %2654 = vmatpush1.bf16.msra.mxu0 0
        %2655 = vmatprep.subr.bf16.mxu0 0
        %2656 = vmatpush1.bf16.msra.mxu0 0
        %2657 = vmatprep.subr.bf16.mxu0 0
        %2658 = vmatpush1.bf16.msra.mxu0 0
        %2659 = vmatprep.subr.bf16.mxu0 0
        %2660 = vmatpush1.bf16.msra.mxu0 0
        %2661 = vmatprep.subr.bf16.mxu0 0
        %2662 = vmatpush1.bf16.msra.mxu0 0
        %2663 = vmatprep.subr.bf16.mxu0 0
        %2664 = vmatpush1.bf16.msra.mxu0 %v2647
        %2665 = vmatprep.subr.bf16.mxu0 0
        %2666 = vmatpush2.bf16.msra.mxu0 0
        %2667 = vmatprep.subr.bf16.mxu0 0
        %2668 = vmatpush2.bf16.msra.mxu0 0
        %2669 = vmatprep.subr.bf16.mxu0 0
        %2670 = vmatpush2.bf16.msra.mxu0 0
        %2671 = vmatprep.subr.bf16.mxu0 0
        %2672 = vmatpush2.bf16.msra.mxu0 0
        %2673 = vmatprep.subr.bf16.mxu0 0
        %2674 = vmatpush2.bf16.msra.mxu0 0
        %2675 = vmatprep.subr.bf16.mxu0 0
        %2676 = vmatpush2.bf16.msra.mxu0 0
        %2677 = vmatprep.subr.bf16.mxu0 0
        %2678 = vmatpush2.bf16.msra.mxu0 0
        %2679 = vmatprep.subr.bf16.mxu0 0
        %2680 = vmatpush2.bf16.msra.mxu0 0
        %2681 = vmatprep.mubr.bf16.mxu0 0
        %2682 = vmatmul.mubr.bf16.gmra.mxu0 %v2644
        %v2683 = vpop.f32.mrf.mxu0
        %v2684 = vadd.f32 %v2636, %v2683
        %v2685 = vpop.f32.mrf.mxu0
        %v2686 = vpop.f32.mrf.mxu0
        %v2687 = vadd.f32 %v2639, %v2686
        %v2688 = vpop.f32.mrf.mxu0
        %2689 = vdwg.mxu0
        %v2690 = vadd.f32 %v2684, %v2573
        %v2691 = vadd.f32 %v2687, %v2574
        %vm2692 = vcmp.ge.f32.partialorder %v2690, 0.0
        %vm2693 = vcmp.ge.f32.partialorder %v2691, 0.0
        %v2694 = vstv %s2567
        %v2695 = vmul.f32 %v2694, %v2690
        %v2696 = vmul.f32 %v2694, %v2691
        %v2697 = vsel %vm2692, %v2690, %v2695
        %v2698 = vsel %vm2693, %v2691, %v2696
        %s2699 = sld [smem:[#allocation2 + $0x82]]
        %v2700 = vld [vmem:[#allocation21] sm:$0xf]
        %v2701 = vld [vmem:[#allocation26] sm:$0xf]
        %v2702 = vld [vmem:[#allocation26 + $0x4] sm:$0xf]
        %v2703 = vld [vmem:[#allocation26 + $0x8] sm:$0xf]
        %v2704 = vld [vmem:[#allocation26 + $0xc] sm:$0xf]
        %v2705 = vld [vmem:[%s53] sm:$0xff]
        %v2706 = vld [vmem:[%s53 + $0x8] sm:$0xff]
        %v2707 = vld [vmem:[%s53 + $0x10] sm:$0xff]
        %v2708 = vld [vmem:[%s53 + $0x18] sm:$0xff]
        %v2709 = vpack.c.bf16 %v2698, %v2697
        %v2711 = vsel %vm2427, %v2709, 0
        %v2714 = vsel %vm2431, %v2700, 0
        %2716 = vmatprep.subr.bf16.mxu0 0
        %2717 = vmatpush1.bf16.msra.mxu0 0
        %2718 = vmatprep.subr.bf16.mxu0 0
        %2719 = vmatpush1.bf16.msra.mxu0 0
        %2720 = vmatprep.subr.bf16.mxu0 0
        %2721 = vmatpush1.bf16.msra.mxu0 0
        %2722 = vmatprep.subr.bf16.mxu0 0
        %2723 = vmatpush1.bf16.msra.mxu0 0
        %2724 = vmatprep.subr.bf16.mxu0 0
        %2725 = vmatpush1.bf16.msra.mxu0 0
        %2726 = vmatprep.subr.bf16.mxu0 0
        %2727 = vmatpush1.bf16.msra.mxu0 0
        %2728 = vmatprep.subr.bf16.mxu0 0
        %2729 = vmatpush1.bf16.msra.mxu0 0
        %2730 = vmatprep.subr.bf16.mxu0 0
        %2731 = vmatpush1.bf16.msra.mxu0 %v2714
        %2732 = vmatprep.subr.bf16.mxu0 0
        %2733 = vmatpush2.bf16.msra.mxu0 0
        %2734 = vmatprep.subr.bf16.mxu0 0
        %2735 = vmatpush2.bf16.msra.mxu0 0
        %2736 = vmatprep.subr.bf16.mxu0 0
        %2737 = vmatpush2.bf16.msra.mxu0 0
        %2738 = vmatprep.subr.bf16.mxu0 0
        %2739 = vmatpush2.bf16.msra.mxu0 0
        %2740 = vmatprep.subr.bf16.mxu0 0
        %2741 = vmatpush2.bf16.msra.mxu0 0
        %2742 = vmatprep.subr.bf16.mxu0 0
        %2743 = vmatpush2.bf16.msra.mxu0 0
        %2744 = vmatprep.subr.bf16.mxu0 0
        %2745 = vmatpush2.bf16.msra.mxu0 0
        %2746 = vmatprep.subr.bf16.mxu0 0
        %2747 = vmatpush2.bf16.msra.mxu0 0
        %2748 = vmatprep.mubr.bf16.mxu0 0
        %2749 = vmatmul.mubr.bf16.gmra.mxu0 %v2711
        %v2750 = vpop.f32.mrf.mxu0
        %v2751 = vadd.f32 0.0, %v2750
        %v2752 = vpop.f32.mrf.mxu0
        %v2753 = vpop.f32.mrf.mxu0
        %v2754 = vadd.f32 0.0, %v2753
        %v2755 = vpop.f32.mrf.mxu0
        %2756 = vdwg.mxu0
        %v2757 = vpack.c.bf16 %v2754, %v2751
        %v2762 = vunpack.c.l.b16 %v2701
        %v2763 = vunpack.c.l.b16 %v2702
        %v2764 = vunpack.c.l.b16 %v2703
        %v2765 = vunpack.c.l.b16 %v2704
        %v2766 = vpack.c.b16 %v2763, %v2762
        %v2767 = vpack.c.b16 %v2765, %v2764
        %v2769 = vsel %vm1866, %v2766, 0
        %v2772 = vsel %vm1866, %v2767, 0
        %2774 = vmatprep.subr.bf16.mxu0 0
        %2775 = vmatpush1.bf16.msra.mxu0 0
        %2776 = vmatprep.subr.bf16.mxu0 0
        %2777 = vmatpush1.bf16.msra.mxu0 0
        %2778 = vmatprep.subr.bf16.mxu0 0
        %2779 = vmatpush1.bf16.msra.mxu0 0
        %2780 = vmatprep.subr.bf16.mxu0 0
        %2781 = vmatpush1.bf16.msra.mxu0 0
        %2782 = vmatprep.subr.bf16.mxu0 0
        %2783 = vmatpush1.bf16.msra.mxu0 0
        %2784 = vmatprep.subr.bf16.mxu0 0
        %2785 = vmatpush1.bf16.msra.mxu0 0
        %2786 = vmatprep.subr.bf16.mxu0 0
        %2787 = vmatpush1.bf16.msra.mxu0 %v2709
        %2788 = vmatprep.subr.bf16.mxu0 0
        %2789 = vmatpush1.bf16.msra.mxu0 %v2757
        %2790 = vmatprep.subr.bf16.mxu0 0
        %2791 = vmatpush2.bf16.msra.mxu0 0
        %2792 = vmatprep.subr.bf16.mxu0 0
        %2793 = vmatpush2.bf16.msra.mxu0 0
        %2794 = vmatprep.subr.bf16.mxu0 0
        %2795 = vmatpush2.bf16.msra.mxu0 0
        %2796 = vmatprep.subr.bf16.mxu0 0
        %2797 = vmatpush2.bf16.msra.mxu0 0
        %2798 = vmatprep.subr.bf16.mxu0 0
        %2799 = vmatpush2.bf16.msra.mxu0 0
        %2800 = vmatprep.subr.bf16.mxu0 0
        %2801 = vmatpush2.bf16.msra.mxu0 0
        %2802 = vmatprep.subr.bf16.mxu0 0
        %2803 = vmatpush2.bf16.msra.mxu0 0
        %2804 = vmatprep.subr.bf16.mxu0 0
        %2805 = vmatpush2.bf16.msra.mxu0 0
        %2806 = vmatprep.mubr.bf16.mxu0 0
        %2807 = vmatmul.mubr.bf16.gmra.mxu0 %v2769
        %v2808 = vpop.f32.mrf.mxu0
        %v2809 = vadd.f32 %v2705, %v2808
        %v2810 = vpop.f32.mrf.mxu0
        %v2811 = vpop.f32.mrf.mxu0
        %v2812 = vadd.f32 %v2706, %v2811
        %v2813 = vpop.f32.mrf.mxu0
        %2814 = vmatprep.mubr.bf16.mxu0 0
        %2815 = vmatmul.mubr.bf16.gmra.mxu0 %v2772
        %v2816 = vpop.f32.mrf.mxu0
        %v2817 = vadd.f32 %v2707, %v2816
        %v2818 = vpop.f32.mrf.mxu0
        %v2819 = vpop.f32.mrf.mxu0
        %v2820 = vadd.f32 %v2708, %v2819
        %v2821 = vpop.f32.mrf.mxu0
        %2822 = vdwg.mxu0
        %vm2823 = vcmp.ge.f32.partialorder %v2809, 0.0
        %vm2824 = vcmp.ge.f32.partialorder %v2812, 0.0
        %vm2825 = vcmp.ge.f32.partialorder %v2817, 0.0
        %vm2826 = vcmp.ge.f32.partialorder %v2820, 0.0
        %v2827 = vstv %s2699
        %v2828 = vmul.f32 %v2827, %v2809
        %v2829 = vmul.f32 %v2827, %v2812
        %v2830 = vmul.f32 %v2827, %v2817
        %v2831 = vmul.f32 %v2827, %v2820
        %v2832 = vsel %vm2823, %v2809, %v2828
        %v2833 = vsel %vm2824, %v2812, %v2829
        %v2834 = vsel %vm2825, %v2817, %v2830
        %v2835 = vsel %vm2826, %v2820, %v2831
        %s2836 = sld [smem:[#allocation2 + $0x83]]
        %v2837 = vld [vmem:[#allocation23] sm:$0xf]
        %v2838 = vld [vmem:[#allocation27] sm:$0xf]
        %v2839 = vld [vmem:[#allocation27 + $0x4] sm:$0xf]
        %v2840 = vld [vmem:[#allocation27 + $0x8] sm:$0x1]
        %v2841 = vld [vmem:[%s55] sm:$0xff]
        %v2842 = vld [vmem:[%s55 + $0x8] sm:$0x1]
        %v2843 = vpack.c.bf16 %v2833, %v2832
        %v2844 = vpack.c.bf16 %v2835, %v2834
        %v2848 = vunpack.c.l.b16 %v2838
        %v2849 = vunpack.c.l.b16 %v2839
        %v2850 = vunpack.c.l.b16 %v2840
        %v2851 = vpack.c.b16 %v2849, %v2848
        %v2852 = vpack.c.b16 %v2850, %v2850
        %v2854 = vsel %vm1866, %v2851, 0
        %v2857 = vsel %vm1866, %v2852, 0
        %2859 = vmatprep.subr.bf16.mxu0 0
        %2860 = vmatpush1.bf16.msra.mxu0 0
        %2861 = vmatprep.subr.bf16.mxu0 0
        %2862 = vmatpush1.bf16.msra.mxu0 0
        %2863 = vmatprep.subr.bf16.mxu0 0
        %2864 = vmatpush1.bf16.msra.mxu0 0
        %2865 = vmatprep.subr.bf16.mxu0 0
        %2866 = vmatpush1.bf16.msra.mxu0 0
        %2867 = vmatprep.subr.bf16.mxu0 0
        %2868 = vmatpush1.bf16.msra.mxu0 0
        %2869 = vmatprep.subr.bf16.mxu0 0
        %2870 = vmatpush1.bf16.msra.mxu0 0
        %2871 = vmatprep.subr.bf16.mxu0 0
        %2872 = vmatpush1.bf16.msra.mxu0 %v2844
        %2873 = vmatprep.subr.bf16.mxu0 0
        %2874 = vmatpush1.bf16.msra.mxu0 %v2843
        %2875 = vmatprep.subr.bf16.mxu0 0
        %2876 = vmatpush2.bf16.msra.mxu0 0
        %2877 = vmatprep.subr.bf16.mxu0 0
        %2878 = vmatpush2.bf16.msra.mxu0 0
        %2879 = vmatprep.subr.bf16.mxu0 0
        %2880 = vmatpush2.bf16.msra.mxu0 0
        %2881 = vmatprep.subr.bf16.mxu0 0
        %2882 = vmatpush2.bf16.msra.mxu0 0
        %2883 = vmatprep.subr.bf16.mxu0 0
        %2884 = vmatpush2.bf16.msra.mxu0 0
        %2885 = vmatprep.subr.bf16.mxu0 0
        %2886 = vmatpush2.bf16.msra.mxu0 0
        %2887 = vmatprep.subr.bf16.mxu0 0
        %2888 = vmatpush2.bf16.msra.mxu0 0
        %2889 = vmatprep.subr.bf16.mxu0 0
        %2890 = vmatpush2.bf16.msra.mxu0 0
        %2891 = vmatprep.mubr.bf16.mxu0 0
        %2892 = vmatmul.mubr.bf16.gmra.mxu0 %v2854
        %v2893 = vpop.f32.mrf.mxu0
        %v2894 = vadd.f32 0.0, %v2893
        %v2895 = vpop.f32.mrf.mxu0
        %v2896 = vpop.f32.mrf.mxu0
        %v2897 = vadd.f32 0.0, %v2896
        %v2898 = vpop.f32.mrf.mxu0
        %2899 = vmatprep.mubr.bf16.mxu0 0
        %2900 = vmatmul.mubr.bf16.gmra.mxu0 %v2857
        %v2901 = vpop.f32.mrf.mxu0
        %v2902 = vadd.f32 0.0, %v2901
        %v2903 = vpop.f32.mrf.mxu0
        %v2904 = vpop.f32.mrf.mxu0
        %v2905 = vpop.f32.mrf.mxu0
        %2906 = vdwg.mxu0
        %v2907 = vpack.c.bf16 %v2897, %v2894
        %v2910 = vrot.slane %v2897, 1
        %v2911 = vrot.slane %v2902, 1
        %v2912 = vsel %vm2352, %v2910, %v2911
        %v2916 = vsel %vm2427, %v2907, 0
        %v2919 = vsel %vm2431, %v2837, 0
        %2921 = vmatprep.subr.bf16.mxu0 0
        %2922 = vmatpush1.bf16.msra.mxu0 0
        %2923 = vmatprep.subr.bf16.mxu0 0
        %2924 = vmatpush1.bf16.msra.mxu0 0
        %2925 = vmatprep.subr.bf16.mxu0 0
        %2926 = vmatpush1.bf16.msra.mxu0 0
        %2927 = vmatprep.subr.bf16.mxu0 0
        %2928 = vmatpush1.bf16.msra.mxu0 0
        %2929 = vmatprep.subr.bf16.mxu0 0
        %2930 = vmatpush1.bf16.msra.mxu0 0
        %2931 = vmatprep.subr.bf16.mxu0 0
        %2932 = vmatpush1.bf16.msra.mxu0 0
        %2933 = vmatprep.subr.bf16.mxu0 0
        %2934 = vmatpush1.bf16.msra.mxu0 0
        %2935 = vmatprep.subr.bf16.mxu0 0
        %2936 = vmatpush1.bf16.msra.mxu0 %v2919
        %2937 = vmatprep.subr.bf16.mxu0 0
        %2938 = vmatpush2.bf16.msra.mxu0 0
        %2939 = vmatprep.subr.bf16.mxu0 0
        %2940 = vmatpush2.bf16.msra.mxu0 0
        %2941 = vmatprep.subr.bf16.mxu0 0
        %2942 = vmatpush2.bf16.msra.mxu0 0
        %2943 = vmatprep.subr.bf16.mxu0 0
        %2944 = vmatpush2.bf16.msra.mxu0 0
        %2945 = vmatprep.subr.bf16.mxu0 0
        %2946 = vmatpush2.bf16.msra.mxu0 0
        %2947 = vmatprep.subr.bf16.mxu0 0
        %2948 = vmatpush2.bf16.msra.mxu0 0
        %2949 = vmatprep.subr.bf16.mxu0 0
        %2950 = vmatpush2.bf16.msra.mxu0 0
        %2951 = vmatprep.subr.bf16.mxu0 0
        %2952 = vmatpush2.bf16.msra.mxu0 0
        %2953 = vmatprep.mubr.bf16.mxu0 0
        %2954 = vmatmul.mubr.bf16.gmra.mxu0 %v2916
        %v2955 = vpop.f32.mrf.mxu0
        %v2956 = vadd.f32 %v2912, %v2955
        %v2957 = vpop.f32.mrf.mxu0
        %v2958 = vpop.f32.mrf.mxu0
        %v2959 = vadd.f32 %v2911, %v2958
        %v2960 = vpop.f32.mrf.mxu0
        %2961 = vdwg.mxu0
        %v2962 = vadd.f32 %v2956, %v2841
        %v2963 = vadd.f32 %v2959, %v2842
        %vm2964 = vcmp.ge.f32.partialorder %v2962, 0.0
        %vm2965 = vcmp.ge.f32.partialorder %v2963, 0.0
        %v2966 = vstv %s2836
        %v2967 = vmul.f32 %v2966, %v2962
        %v2968 = vmul.f32 %v2966, %v2963
        %v2969 = vsel %vm2964, %v2962, %v2967
        %v2970 = vsel %vm2965, %v2963, %v2968
        %v2971 = vadd.f32 %v2414, %v2969
        %v2972 = vadd.f32 %v2415, %v2970
        %2975 = vrot.lane.b32.xlu0 %v2412, 8
        %v2976 = vpop.permute.xlu0 %2975
        %2977 = vrot.lane.b32.xlu0 %v2413, 8
        %v2978 = vpop.permute.xlu0 %2977
        %v2981 = vsel %vm2427, %v2971, %v2976
        %v2982 = vsel %vm2427, %v2972, %v2978
        %v2983 = vsel %vm2427, %v2976, 0.0
        %v2984 = vsel %vm2427, %v2978, 0.0
        %s2985 = sld [smem:[#allocation2 + $0x100]]
        %v2986 = vld [vmem:[%s57] sm:$0xff]
        %v2987 = vld [vmem:[%s57 + $0x8] sm:$0xff]
        %v2988 = vld [vmem:[%s57 + $0x10] sm:$0xff]
        %v2989 = vld [vmem:[%s57 + $0x18] sm:$0xff]
        %v2990 = vld [vmem:[%s57 + $0x20] sm:$0xff]
        %v2991 = vld [vmem:[%s57 + $0x28] sm:$0xff]
        %v2992 = vld [vmem:[%s57 + $0x30] sm:$0xff]
        %v2993 = vld [vmem:[%s57 + $0x38] sm:$0xff]
        %v2994 = vld [vmem:[%s57 + $0x40] sm:$0xff]
        %v2995 = vld [vmem:[%s57 + $0x48] sm:$0xff]
        %v2996 = vld [vmem:[%s57 + $0x50] sm:$0xff]
        %v2997 = vld [vmem:[%s57 + $0x58] sm:$0xff]
        %v2998 = vld [vmem:[%s57 + $0x60] sm:$0xff]
        %v2999 = vld [vmem:[%s57 + $0x68] sm:$0xff]
        %v3000 = vld [vmem:[%s57 + $0x70] sm:$0xff]
        %v3001 = vld [vmem:[%s57 + $0x78] sm:$0xff]
        %v3002 = vld [vmem:[%s57 + $0x80] sm:$0xff]
        %v3003 = vld [vmem:[%s57 + $0x88] sm:$0xff]
        %v3004 = vld [vmem:[%s57 + $0x90] sm:$0xff]
        %v3005 = vld [vmem:[%s57 + $0x98] sm:$0xff]
        %v3006 = vld [vmem:[%s57 + $0xa0] sm:$0xff]
        %v3007 = vld [vmem:[%s57 + $0xa8] sm:$0xff]
        %v3008 = vld [vmem:[%s57 + $0xb0] sm:$0xff]
        %v3009 = vld [vmem:[%s57 + $0xb8] sm:$0xff]
        %v3010 = vld [vmem:[%s57 + $0xc0] sm:$0xff]
        %v3011 = vld [vmem:[%s57 + $0xc8] sm:$0xff]
        %v3012 = vld [vmem:[%s57 + $0xd0] sm:$0xff]
        %v3013 = vld [vmem:[%s57 + $0xd8] sm:$0xff]
        %v3014 = vld [vmem:[%s57 + $0xe0] sm:$0xff]
        %v3015 = vld [vmem:[%s57 + $0xe8] sm:$0xff]
        %v3016 = vld [vmem:[%s57 + $0xf0] sm:$0xff]
        %v3017 = vld [vmem:[%s57 + $0xf8] sm:$0xff]
        %v3018 = vld [vmem:[%s65] sm:$0xf]
        %v3019 = vld [vmem:[%s65 + $0x4] sm:$0xf]
        %v3020 = vld [vmem:[%s65 + $0x8] sm:$0xf]
        %v3021 = vld [vmem:[%s65 + $0xc] sm:$0xf]
        %v3022 = vld [vmem:[#allocation38] sm:$0xff]
        %v3023 = vld [vmem:[#allocation38 + $0x8] sm:$0xff]
        %v3024 = vld [vmem:[#allocation38 + $0x10] sm:$0xff]
        %v3025 = vld [vmem:[#allocation38 + $0x18] sm:$0xff]
        %v3026 = vld [vmem:[#allocation38 + $0x20] sm:$0xff]
        %v3027 = vld [vmem:[#allocation38 + $0x28] sm:$0xff]
        %v3028 = vld [vmem:[#allocation38 + $0x30] sm:$0xff]
        %v3029 = vld [vmem:[#allocation38 + $0x38] sm:$0xff]
        %v3030 = vpack.c.bf16 %v2982, %v2981
        %v3031 = vpack.c.bf16 %v2984, %v2983
        %v3064 = vunpack.c.l.b16 %v2986
        %v3065 = vunpack.c.h.b16 %v2986
        %v3066 = vunpack.c.l.b16 %v2987
        %v3067 = vunpack.c.h.b16 %v2987
        %v3068 = vunpack.c.l.b16 %v2988
        %v3069 = vunpack.c.h.b16 %v2988
        %v3070 = vunpack.c.l.b16 %v2989
        %v3071 = vunpack.c.h.b16 %v2989
        %v3072 = vunpack.c.l.b16 %v2990
        %v3073 = vunpack.c.h.b16 %v2990
        %v3074 = vunpack.c.l.b16 %v2991
        %v3075 = vunpack.c.h.b16 %v2991
        %v3076 = vunpack.c.l.b16 %v2992
        %v3077 = vunpack.c.h.b16 %v2992
        %v3078 = vunpack.c.l.b16 %v2993
        %v3079 = vunpack.c.h.b16 %v2993
        %v3080 = vunpack.c.l.b16 %v2994
        %v3081 = vunpack.c.h.b16 %v2994
        %v3082 = vunpack.c.l.b16 %v2995
        %v3083 = vunpack.c.h.b16 %v2995
        %v3084 = vunpack.c.l.b16 %v2996
        %v3085 = vunpack.c.h.b16 %v2996
        %v3086 = vunpack.c.l.b16 %v2997
        %v3087 = vunpack.c.h.b16 %v2997
        %v3088 = vunpack.c.l.b16 %v2998
        %v3089 = vunpack.c.h.b16 %v2998
        %v3090 = vunpack.c.l.b16 %v2999
        %v3091 = vunpack.c.h.b16 %v2999
        %v3092 = vunpack.c.l.b16 %v3000
        %v3093 = vunpack.c.h.b16 %v3000
        %v3094 = vunpack.c.l.b16 %v3001
        %v3095 = vunpack.c.h.b16 %v3001
        %v3096 = vunpack.c.l.b16 %v3002
        %v3097 = vunpack.c.h.b16 %v3002
        %v3098 = vunpack.c.l.b16 %v3003
        %v3099 = vunpack.c.h.b16 %v3003
        %v3100 = vunpack.c.l.b16 %v3004
        %v3101 = vunpack.c.h.b16 %v3004
        %v3102 = vunpack.c.l.b16 %v3005
        %v3103 = vunpack.c.h.b16 %v3005
        %v3104 = vunpack.c.l.b16 %v3006
        %v3105 = vunpack.c.h.b16 %v3006
        %v3106 = vunpack.c.l.b16 %v3007
        %v3107 = vunpack.c.h.b16 %v3007
        %v3108 = vunpack.c.l.b16 %v3008
        %v3109 = vunpack.c.h.b16 %v3008
        %v3110 = vunpack.c.l.b16 %v3009
        %v3111 = vunpack.c.h.b16 %v3009
        %v3112 = vunpack.c.l.b16 %v3010
        %v3113 = vunpack.c.h.b16 %v3010
        %v3114 = vunpack.c.l.b16 %v3011
        %v3115 = vunpack.c.h.b16 %v3011
        %v3116 = vunpack.c.l.b16 %v3012
        %v3117 = vunpack.c.h.b16 %v3012
        %v3118 = vunpack.c.l.b16 %v3013
        %v3119 = vunpack.c.h.b16 %v3013
        %v3120 = vunpack.c.l.b16 %v3014
        %v3121 = vunpack.c.h.b16 %v3014
        %v3122 = vunpack.c.l.b16 %v3015
        %v3123 = vunpack.c.h.b16 %v3015
        %v3124 = vunpack.c.l.b16 %v3016
        %v3125 = vunpack.c.h.b16 %v3016
        %v3126 = vunpack.c.l.b16 %v3017
        %v3127 = vunpack.c.h.b16 %v3017
        %v3128 = vpack.c.b16 %v3066, %v3064
        %v3129 = vpack.c.b16 %v3067, %v3065
        %v3130 = vpack.c.b16 %v3070, %v3068
        %v3131 = vpack.c.b16 %v3071, %v3069
        %v3132 = vpack.c.b16 %v3074, %v3072
        %v3133 = vpack.c.b16 %v3075, %v3073
        %v3134 = vpack.c.b16 %v3078, %v3076
        %v3135 = vpack.c.b16 %v3079, %v3077
        %v3136 = vpack.c.b16 %v3082, %v3080
        %v3137 = vpack.c.b16 %v3083, %v3081
        %v3138 = vpack.c.b16 %v3086, %v3084
        %v3139 = vpack.c.b16 %v3087, %v3085
        %v3140 = vpack.c.b16 %v3090, %v3088
        %v3141 = vpack.c.b16 %v3091, %v3089
        %v3142 = vpack.c.b16 %v3094, %v3092
        %v3143 = vpack.c.b16 %v3095, %v3093
        %v3144 = vpack.c.b16 %v3098, %v3096
        %v3145 = vpack.c.b16 %v3099, %v3097
        %v3146 = vpack.c.b16 %v3102, %v3100
        %v3147 = vpack.c.b16 %v3103, %v3101
        %v3148 = vpack.c.b16 %v3106, %v3104
        %v3149 = vpack.c.b16 %v3107, %v3105
        %v3150 = vpack.c.b16 %v3110, %v3108
        %v3151 = vpack.c.b16 %v3111, %v3109
        %v3152 = vpack.c.b16 %v3114, %v3112
        %v3153 = vpack.c.b16 %v3115, %v3113
        %v3154 = vpack.c.b16 %v3118, %v3116
        %v3155 = vpack.c.b16 %v3119, %v3117
        %v3156 = vpack.c.b16 %v3122, %v3120
        %v3157 = vpack.c.b16 %v3123, %v3121
        %v3158 = vpack.c.b16 %v3126, %v3124
        %v3159 = vpack.c.b16 %v3127, %v3125
        %3192 = vmatprep.subr.bf16.mxu0 %v3143
        %3193 = vmatpush1.bf16.msra.mxu0 %v3142
        %3194 = vmatprep.subr.bf16.mxu0 %v3141
        %3195 = vmatpush1.bf16.msra.mxu0 %v3140
        %3196 = vmatprep.subr.bf16.mxu0 %v3139
        %3197 = vmatpush1.bf16.msra.mxu0 %v3138
        %3198 = vmatprep.subr.bf16.mxu0 %v3137
        %3199 = vmatpush1.bf16.msra.mxu0 %v3136
        %3200 = vmatprep.subr.bf16.mxu0 %v3135
        %3201 = vmatpush1.bf16.msra.mxu0 %v3134
        %3202 = vmatprep.subr.bf16.mxu0 %v3133
        %3203 = vmatpush1.bf16.msra.mxu0 %v3132
        %3204 = vmatprep.subr.bf16.mxu0 %v3131
        %3205 = vmatpush1.bf16.msra.mxu0 %v3130
        %3206 = vmatprep.subr.bf16.mxu0 %v3129
        %3207 = vmatpush1.bf16.msra.mxu0 %v3128
        %3208 = vmatprep.subr.bf16.mxu0 %v3159
        %3209 = vmatpush2.bf16.msra.mxu0 %v3158
        %3210 = vmatprep.subr.bf16.mxu0 %v3157
        %3211 = vmatpush2.bf16.msra.mxu0 %v3156
        %3212 = vmatprep.subr.bf16.mxu0 %v3155
        %3213 = vmatpush2.bf16.msra.mxu0 %v3154
        %3214 = vmatprep.subr.bf16.mxu0 %v3153
        %3215 = vmatpush2.bf16.msra.mxu0 %v3152
        %3216 = vmatprep.subr.bf16.mxu0 %v3151
        %3217 = vmatpush2.bf16.msra.mxu0 %v3150
        %3218 = vmatprep.subr.bf16.mxu0 %v3149
        %3219 = vmatpush2.bf16.msra.mxu0 %v3148
        %3220 = vmatprep.subr.bf16.mxu0 %v3147
        %3221 = vmatpush2.bf16.msra.mxu0 %v3146
        %3222 = vmatprep.subr.bf16.mxu0 %v3145
        %3223 = vmatpush2.bf16.msra.mxu0 %v3144
        %3224 = vmatprep.mubr.bf16.mxu0 %v3031
        %3225 = vmatmul.mubr.bf16.gmra.mxu0 %v3030
        %v3226 = vpop.f32.mrf.mxu0
        %v3227 = vadd.f32 0.0, %v3226
        %v3228 = vpop.f32.mrf.mxu0
        %v3229 = vadd.f32 0.0, %v3228
        %v3230 = vpop.f32.mrf.mxu0
        %v3231 = vadd.f32 0.0, %v3230
        %v3232 = vpop.f32.mrf.mxu0
        %v3233 = vadd.f32 0.0, %v3232
        %3234 = vdwg.mxu0
        %v3239 = vrot.slane %v2981, 7
        %v3240 = vrot.slane %v2983, 7
        %v3241 = vrot.slane %v2982, 7
        %v3242 = vsel %vm1740, %v3239, %v3241
        %v3243 = vrot.slane %v2984, 7
        %v3244 = vsel %vm1740, %v3240, %v3243
        %v3249 = vsel %vm1740, %v3231, %v3239
        %v3250 = vsel %vm1740, %v3233, %v3240
        %v3251 = vpack.c.bf16 %v3249, %v3227
        %v3252 = vpack.c.bf16 %v3250, %v3229
        %v3253 = vpack.c.bf16 %v3242, %v3242
        %v3254 = vpack.c.bf16 %v3244, %v3244
        %v3259 = vunpack.c.l.b16 %v3018
        %v3260 = vunpack.c.l.b16 %v3019
        %v3261 = vunpack.c.l.b16 %v3020
        %v3262 = vunpack.c.l.b16 %v3021
        %v3263 = vpack.c.b16 %v3260, %v3259
        %v3264 = vpack.c.b16 %v3262, %v3261
        %v3266 = vsel %vm1759, %v3263, 0
        %v3269 = vsel %vm1759, %v3264, 0
        %v3272 = vsel %vm1740, %v3253, 0
        %v3275 = vsel %vm1740, %v3254, 0
        %3277 = vmatprep.subr.bf16.mxu0 0
        %3278 = vmatpush1.bf16.msra.mxu0 0
        %3279 = vmatprep.subr.bf16.mxu0 0
        %3280 = vmatpush1.bf16.msra.mxu0 0
        %3281 = vmatprep.subr.bf16.mxu0 0
        %3282 = vmatpush1.bf16.msra.mxu0 0
        %3283 = vmatprep.subr.bf16.mxu0 0
        %3284 = vmatpush1.bf16.msra.mxu0 0
        %3285 = vmatprep.subr.bf16.mxu0 0
        %3286 = vmatpush1.bf16.msra.mxu0 0
        %3287 = vmatprep.subr.bf16.mxu0 0
        %3288 = vmatpush1.bf16.msra.mxu0 0
        %3289 = vmatprep.subr.bf16.mxu0 %v3275
        %3290 = vmatpush1.bf16.msra.mxu0 %v3272
        %3291 = vmatprep.subr.bf16.mxu0 %v3252
        %3292 = vmatpush1.bf16.msra.mxu0 %v3251
        %3293 = vmatprep.subr.bf16.mxu0 0
        %3294 = vmatpush2.bf16.msra.mxu0 0
        %3295 = vmatprep.subr.bf16.mxu0 0
        %3296 = vmatpush2.bf16.msra.mxu0 0
        %3297 = vmatprep.subr.bf16.mxu0 0
        %3298 = vmatpush2.bf16.msra.mxu0 0
        %3299 = vmatprep.subr.bf16.mxu0 0
        %3300 = vmatpush2.bf16.msra.mxu0 0
        %3301 = vmatprep.subr.bf16.mxu0 0
        %3302 = vmatpush2.bf16.msra.mxu0 0
        %3303 = vmatprep.subr.bf16.mxu0 0
        %3304 = vmatpush2.bf16.msra.mxu0 0
        %3305 = vmatprep.subr.bf16.mxu0 0
        %3306 = vmatpush2.bf16.msra.mxu0 0
        %3307 = vmatprep.subr.bf16.mxu0 0
        %3308 = vmatpush2.bf16.msra.mxu0 0
        %3309 = vmatprep.mubr.bf16.mxu0 0
        %3310 = vmatmul.mubr.bf16.gmra.mxu0 %v3266
        %v3311 = vpop.f32.mrf.mxu0
        %v3312 = vadd.f32 %v3022, %v3311
        %v3313 = vpop.f32.mrf.mxu0
        %v3314 = vadd.f32 %v3023, %v3313
        %v3315 = vpop.f32.mrf.mxu0
        %v3316 = vadd.f32 %v3024, %v3315
        %v3317 = vpop.f32.mrf.mxu0
        %v3318 = vadd.f32 %v3025, %v3317
        %3319 = vmatprep.mubr.bf16.mxu0 0
        %3320 = vmatmul.mubr.bf16.gmra.mxu0 %v3269
        %v3321 = vpop.f32.mrf.mxu0
        %v3322 = vadd.f32 %v3026, %v3321
        %v3323 = vpop.f32.mrf.mxu0
        %v3324 = vadd.f32 %v3027, %v3323
        %v3325 = vpop.f32.mrf.mxu0
        %v3326 = vadd.f32 %v3028, %v3325
        %v3327 = vpop.f32.mrf.mxu0
        %v3328 = vadd.f32 %v3029, %v3327
        %3329 = vdwg.mxu0
        %vm3330 = vcmp.ge.f32.partialorder %v3312, 0.0
        %vm3331 = vcmp.ge.f32.partialorder %v3314, 0.0
        %vm3332 = vcmp.ge.f32.partialorder %v3316, 0.0
        %vm3333 = vcmp.ge.f32.partialorder %v3318, 0.0
        %vm3334 = vcmp.ge.f32.partialorder %v3322, 0.0
        %vm3335 = vcmp.ge.f32.partialorder %v3324, 0.0
        %vm3336 = vcmp.ge.f32.partialorder %v3326, 0.0
        %vm3337 = vcmp.ge.f32.partialorder %v3328, 0.0
        %v3338 = vstv %s2985
        %v3339 = vmul.f32 %v3338, %v3312
        %v3340 = vmul.f32 %v3338, %v3314
        %v3341 = vmul.f32 %v3338, %v3316
        %v3342 = vmul.f32 %v3338, %v3318
        %v3343 = vmul.f32 %v3338, %v3322
        %v3344 = vmul.f32 %v3338, %v3324
        %v3345 = vmul.f32 %v3338, %v3326
        %v3346 = vmul.f32 %v3338, %v3328
        %v3347 = vsel %vm3330, %v3312, %v3339
        %v3348 = vsel %vm3331, %v3314, %v3340
        %v3349 = vsel %vm3332, %v3316, %v3341
        %v3350 = vsel %vm3333, %v3318, %v3342
        %v3351 = vsel %vm3334, %v3322, %v3343
        %v3352 = vsel %vm3335, %v3324, %v3344
        %v3353 = vsel %vm3336, %v3326, %v3345
        %v3354 = vsel %vm3337, %v3328, %v3346
        %s3355 = sld [smem:[#allocation2 + $0x101]]
        %v3356 = vld [vmem:[#allocation29] sm:$0xff]
        %v3357 = vld [vmem:[#allocation29 + $0x8] sm:$0xff]
        %v3358 = vld [vmem:[#allocation29 + $0x10] sm:$0xff]
        %v3359 = vld [vmem:[#allocation29 + $0x18] sm:$0xff]
        %v3360 = vld [vmem:[#allocation29 + $0x20] sm:$0xff]
        %v3361 = vld [vmem:[#allocation29 + $0x28] sm:$0xff]
        %v3362 = vld [vmem:[#allocation29 + $0x30] sm:$0xff]
        %v3363 = vld [vmem:[#allocation29 + $0x38] sm:$0xff]
        %v3364 = vld [vmem:[#allocation29 + $0x40] sm:$0xff]
        %v3365 = vld [vmem:[#allocation29 + $0x48] sm:$0xff]
        %v3366 = vld [vmem:[#allocation29 + $0x50] sm:$0xff]
        %v3367 = vld [vmem:[#allocation29 + $0x58] sm:$0xff]
        %v3368 = vld [vmem:[#allocation29 + $0x60] sm:$0xff]
        %v3369 = vld [vmem:[#allocation29 + $0x68] sm:$0xff]
        %v3370 = vld [vmem:[#allocation29 + $0x70] sm:$0xff]
        %v3371 = vld [vmem:[#allocation29 + $0x78] sm:$0xff]
        %v3372 = vld [vmem:[#allocation29 + $0x80] sm:$0xff]
        %v3373 = vld [vmem:[#allocation29 + $0x88] sm:$0xff]
        %v3374 = vld [vmem:[#allocation29 + $0x90] sm:$0xff]
        %v3375 = vld [vmem:[#allocation29 + $0x98] sm:$0xff]
        %v3376 = vld [vmem:[#allocation29 + $0xa0] sm:$0xff]
        %v3377 = vld [vmem:[#allocation29 + $0xa8] sm:$0xff]
        %v3378 = vld [vmem:[#allocation29 + $0xb0] sm:$0xff]
        %v3379 = vld [vmem:[#allocation29 + $0xb8] sm:$0xff]
        %v3380 = vld [vmem:[#allocation29 + $0xc0] sm:$0xff]
        %v3381 = vld [vmem:[#allocation29 + $0xc8] sm:$0xff]
        %v3382 = vld [vmem:[#allocation29 + $0xd0] sm:$0xff]
        %v3383 = vld [vmem:[#allocation29 + $0xd8] sm:$0xff]
        %v3384 = vld [vmem:[#allocation29 + $0xe0] sm:$0xff]
        %v3385 = vld [vmem:[#allocation29 + $0xe8] sm:$0xff]
        %v3386 = vld [vmem:[#allocation29 + $0xf0] sm:$0xff]
        %v3387 = vld [vmem:[#allocation29 + $0xf8] sm:$0xff]
        %v3388 = vld [vmem:[#allocation33] sm:$0xf]
        %v3389 = vld [vmem:[#allocation33 + $0x4] sm:$0xf]
        %v3390 = vld [vmem:[#allocation33 + $0x8] sm:$0xf]
        %v3391 = vld [vmem:[#allocation33 + $0xc] sm:$0xf]
        %v3392 = vld [vmem:[%s75] sm:$0xff]
        %v3393 = vld [vmem:[%s75 + $0x8] sm:$0xff]
        %v3394 = vld [vmem:[%s75 + $0x10] sm:$0xff]
        %v3395 = vld [vmem:[%s75 + $0x18] sm:$0xff]
        %v3396 = vpack.c.bf16 %v3349, %v3347
        %v3397 = vpack.c.bf16 %v3350, %v3348
        %v3398 = vpack.c.bf16 %v3353, %v3351
        %v3399 = vpack.c.bf16 %v3354, %v3352
        %v3404 = vunpack.c.l.b16 %v3388
        %v3405 = vunpack.c.l.b16 %v3389
        %v3406 = vunpack.c.l.b16 %v3390
        %v3407 = vunpack.c.l.b16 %v3391
        %v3408 = vpack.c.b16 %v3405, %v3404
        %v3409 = vpack.c.b16 %v3407, %v3406
        %v3411 = vsel %vm1866, %v3408, 0
        %v3414 = vsel %vm1866, %v3409, 0
        %3416 = vmatprep.subr.bf16.mxu0 0
        %3417 = vmatpush1.bf16.msra.mxu0 0
        %3418 = vmatprep.subr.bf16.mxu0 0
        %3419 = vmatpush1.bf16.msra.mxu0 0
        %3420 = vmatprep.subr.bf16.mxu0 0
        %3421 = vmatpush1.bf16.msra.mxu0 0
        %3422 = vmatprep.subr.bf16.mxu0 0
        %3423 = vmatpush1.bf16.msra.mxu0 0
        %3424 = vmatprep.subr.bf16.mxu0 0
        %3425 = vmatpush1.bf16.msra.mxu0 0
        %3426 = vmatprep.subr.bf16.mxu0 0
        %3427 = vmatpush1.bf16.msra.mxu0 0
        %3428 = vmatprep.subr.bf16.mxu0 %v3399
        %3429 = vmatpush1.bf16.msra.mxu0 %v3398
        %3430 = vmatprep.subr.bf16.mxu0 %v3397
        %3431 = vmatpush1.bf16.msra.mxu0 %v3396
        %3432 = vmatprep.subr.bf16.mxu0 0
        %3433 = vmatpush2.bf16.msra.mxu0 0
        %3434 = vmatprep.subr.bf16.mxu0 0
        %3435 = vmatpush2.bf16.msra.mxu0 0
        %3436 = vmatprep.subr.bf16.mxu0 0
        %3437 = vmatpush2.bf16.msra.mxu0 0
        %3438 = vmatprep.subr.bf16.mxu0 0
        %3439 = vmatpush2.bf16.msra.mxu0 0
        %3440 = vmatprep.subr.bf16.mxu0 0
        %3441 = vmatpush2.bf16.msra.mxu0 0
        %3442 = vmatprep.subr.bf16.mxu0 0
        %3443 = vmatpush2.bf16.msra.mxu0 0
        %3444 = vmatprep.subr.bf16.mxu0 0
        %3445 = vmatpush2.bf16.msra.mxu0 0
        %3446 = vmatprep.subr.bf16.mxu0 0
        %3447 = vmatpush2.bf16.msra.mxu0 0
        %3448 = vmatprep.mubr.bf16.mxu0 0
        %3449 = vmatmul.mubr.bf16.gmra.mxu0 %v3411
        %v3450 = vpop.f32.mrf.mxu0
        %v3451 = vadd.f32 0.0, %v3450
        %v3452 = vpop.f32.mrf.mxu0
        %v3453 = vadd.f32 0.0, %v3452
        %v3454 = vpop.f32.mrf.mxu0
        %v3455 = vadd.f32 0.0, %v3454
        %v3456 = vpop.f32.mrf.mxu0
        %v3457 = vadd.f32 0.0, %v3456
        %3458 = vmatprep.mubr.bf16.mxu0 0
        %3459 = vmatmul.mubr.bf16.gmra.mxu0 %v3414
        %v3460 = vpop.f32.mrf.mxu0
        %v3461 = vadd.f32 0.0, %v3460
        %v3462 = vpop.f32.mrf.mxu0
        %v3463 = vadd.f32 0.0, %v3462
        %v3464 = vpop.f32.mrf.mxu0
        %v3465 = vadd.f32 0.0, %v3464
        %v3466 = vpop.f32.mrf.mxu0
        %v3467 = vadd.f32 0.0, %v3466
        %3468 = vdwg.mxu0
        %v3469 = vpack.c.bf16 %v3455, %v3451
        %v3470 = vpack.c.bf16 %v3457, %v3453
        %v3503 = vunpack.c.l.b16 %v3356
        %v3504 = vunpack.c.h.b16 %v3356
        %v3505 = vunpack.c.l.b16 %v3357
        %v3506 = vunpack.c.h.b16 %v3357
        %v3507 = vunpack.c.l.b16 %v3358
        %v3508 = vunpack.c.h.b16 %v3358
        %v3509 = vunpack.c.l.b16 %v3359
        %v3510 = vunpack.c.h.b16 %v3359
        %v3511 = vunpack.c.l.b16 %v3360
        %v3512 = vunpack.c.h.b16 %v3360
        %v3513 = vunpack.c.l.b16 %v3361
        %v3514 = vunpack.c.h.b16 %v3361
        %v3515 = vunpack.c.l.b16 %v3362
        %v3516 = vunpack.c.h.b16 %v3362
        %v3517 = vunpack.c.l.b16 %v3363
        %v3518 = vunpack.c.h.b16 %v3363
        %v3519 = vunpack.c.l.b16 %v3364
        %v3520 = vunpack.c.h.b16 %v3364
        %v3521 = vunpack.c.l.b16 %v3365
        %v3522 = vunpack.c.h.b16 %v3365
        %v3523 = vunpack.c.l.b16 %v3366
        %v3524 = vunpack.c.h.b16 %v3366
        %v3525 = vunpack.c.l.b16 %v3367
        %v3526 = vunpack.c.h.b16 %v3367
        %v3527 = vunpack.c.l.b16 %v3368
        %v3528 = vunpack.c.h.b16 %v3368
        %v3529 = vunpack.c.l.b16 %v3369
        %v3530 = vunpack.c.h.b16 %v3369
        %v3531 = vunpack.c.l.b16 %v3370
        %v3532 = vunpack.c.h.b16 %v3370
        %v3533 = vunpack.c.l.b16 %v3371
        %v3534 = vunpack.c.h.b16 %v3371
        %v3535 = vunpack.c.l.b16 %v3372
        %v3536 = vunpack.c.h.b16 %v3372
        %v3537 = vunpack.c.l.b16 %v3373
        %v3538 = vunpack.c.h.b16 %v3373
        %v3539 = vunpack.c.l.b16 %v3374
        %v3540 = vunpack.c.h.b16 %v3374
        %v3541 = vunpack.c.l.b16 %v3375
        %v3542 = vunpack.c.h.b16 %v3375
        %v3543 = vunpack.c.l.b16 %v3376
        %v3544 = vunpack.c.h.b16 %v3376
        %v3545 = vunpack.c.l.b16 %v3377
        %v3546 = vunpack.c.h.b16 %v3377
        %v3547 = vunpack.c.l.b16 %v3378
        %v3548 = vunpack.c.h.b16 %v3378
        %v3549 = vunpack.c.l.b16 %v3379
        %v3550 = vunpack.c.h.b16 %v3379
        %v3551 = vunpack.c.l.b16 %v3380
        %v3552 = vunpack.c.h.b16 %v3380
        %v3553 = vunpack.c.l.b16 %v3381
        %v3554 = vunpack.c.h.b16 %v3381
        %v3555 = vunpack.c.l.b16 %v3382
        %v3556 = vunpack.c.h.b16 %v3382
        %v3557 = vunpack.c.l.b16 %v3383
        %v3558 = vunpack.c.h.b16 %v3383
        %v3559 = vunpack.c.l.b16 %v3384
        %v3560 = vunpack.c.h.b16 %v3384
        %v3561 = vunpack.c.l.b16 %v3385
        %v3562 = vunpack.c.h.b16 %v3385
        %v3563 = vunpack.c.l.b16 %v3386
        %v3564 = vunpack.c.h.b16 %v3386
        %v3565 = vunpack.c.l.b16 %v3387
        %v3566 = vunpack.c.h.b16 %v3387
        %v3567 = vpack.c.b16 %v3505, %v3503
        %v3568 = vpack.c.b16 %v3506, %v3504
        %v3569 = vpack.c.b16 %v3509, %v3507
        %v3570 = vpack.c.b16 %v3510, %v3508
        %v3571 = vpack.c.b16 %v3513, %v3511
        %v3572 = vpack.c.b16 %v3514, %v3512
        %v3573 = vpack.c.b16 %v3517, %v3515
        %v3574 = vpack.c.b16 %v3518, %v3516
        %v3575 = vpack.c.b16 %v3521, %v3519
        %v3576 = vpack.c.b16 %v3522, %v3520
        %v3577 = vpack.c.b16 %v3525, %v3523
        %v3578 = vpack.c.b16 %v3526, %v3524
        %v3579 = vpack.c.b16 %v3529, %v3527
        %v3580 = vpack.c.b16 %v3530, %v3528
        %v3581 = vpack.c.b16 %v3533, %v3531
        %v3582 = vpack.c.b16 %v3534, %v3532
        %v3583 = vpack.c.b16 %v3537, %v3535
        %v3584 = vpack.c.b16 %v3538, %v3536
        %v3585 = vpack.c.b16 %v3541, %v3539
        %v3586 = vpack.c.b16 %v3542, %v3540
        %v3587 = vpack.c.b16 %v3545, %v3543
        %v3588 = vpack.c.b16 %v3546, %v3544
        %v3589 = vpack.c.b16 %v3549, %v3547
        %v3590 = vpack.c.b16 %v3550, %v3548
        %v3591 = vpack.c.b16 %v3553, %v3551
        %v3592 = vpack.c.b16 %v3554, %v3552
        %v3593 = vpack.c.b16 %v3557, %v3555
        %v3594 = vpack.c.b16 %v3558, %v3556
        %v3595 = vpack.c.b16 %v3561, %v3559
        %v3596 = vpack.c.b16 %v3562, %v3560
        %v3597 = vpack.c.b16 %v3565, %v3563
        %v3598 = vpack.c.b16 %v3566, %v3564
        %3631 = vmatprep.subr.bf16.mxu0 %v3582
        %3632 = vmatpush1.bf16.msra.mxu0 %v3581
        %3633 = vmatprep.subr.bf16.mxu0 %v3580
        %3634 = vmatpush1.bf16.msra.mxu0 %v3579
        %3635 = vmatprep.subr.bf16.mxu0 %v3578
        %3636 = vmatpush1.bf16.msra.mxu0 %v3577
        %3637 = vmatprep.subr.bf16.mxu0 %v3576
        %3638 = vmatpush1.bf16.msra.mxu0 %v3575
        %3639 = vmatprep.subr.bf16.mxu0 %v3574
        %3640 = vmatpush1.bf16.msra.mxu0 %v3573
        %3641 = vmatprep.subr.bf16.mxu0 %v3572
        %3642 = vmatpush1.bf16.msra.mxu0 %v3571
        %3643 = vmatprep.subr.bf16.mxu0 %v3570
        %3644 = vmatpush1.bf16.msra.mxu0 %v3569
        %3645 = vmatprep.subr.bf16.mxu0 %v3568
        %3646 = vmatpush1.bf16.msra.mxu0 %v3567
        %3647 = vmatprep.subr.bf16.mxu0 %v3598
        %3648 = vmatpush2.bf16.msra.mxu0 %v3597
        %3649 = vmatprep.subr.bf16.mxu0 %v3596
        %3650 = vmatpush2.bf16.msra.mxu0 %v3595
        %3651 = vmatprep.subr.bf16.mxu0 %v3594
        %3652 = vmatpush2.bf16.msra.mxu0 %v3593
        %3653 = vmatprep.subr.bf16.mxu0 %v3592
        %3654 = vmatpush2.bf16.msra.mxu0 %v3591
        %3655 = vmatprep.subr.bf16.mxu0 %v3590
        %3656 = vmatpush2.bf16.msra.mxu0 %v3589
        %3657 = vmatprep.subr.bf16.mxu0 %v3588
        %3658 = vmatpush2.bf16.msra.mxu0 %v3587
        %3659 = vmatprep.subr.bf16.mxu0 %v3586
        %3660 = vmatpush2.bf16.msra.mxu0 %v3585
        %3661 = vmatprep.subr.bf16.mxu0 %v3584
        %3662 = vmatpush2.bf16.msra.mxu0 %v3583
        %3663 = vmatprep.mubr.bf16.mxu0 %v3470
        %3664 = vmatmul.mubr.bf16.gmra.mxu0 %v3469
        %v3665 = vpop.f32.mrf.mxu0
        %v3666 = vadd.f32 %v3461, %v3665
        %v3667 = vpop.f32.mrf.mxu0
        %v3668 = vadd.f32 %v3463, %v3667
        %v3669 = vpop.f32.mrf.mxu0
        %v3670 = vadd.f32 %v3465, %v3669
        %v3671 = vpop.f32.mrf.mxu0
        %v3672 = vadd.f32 %v3467, %v3671
        %3673 = vdwg.mxu0
        %v3674 = vadd.f32 %v3666, %v3392
        %v3675 = vadd.f32 %v3668, %v3393
        %v3676 = vadd.f32 %v3670, %v3394
        %v3677 = vadd.f32 %v3672, %v3395
        %vm3678 = vcmp.ge.f32.partialorder %v3674, 0.0
        %vm3679 = vcmp.ge.f32.partialorder %v3675, 0.0
        %vm3680 = vcmp.ge.f32.partialorder %v3676, 0.0
        %vm3681 = vcmp.ge.f32.partialorder %v3677, 0.0
        %v3682 = vstv %s3355
        %v3683 = vmul.f32 %v3682, %v3674
        %v3684 = vmul.f32 %v3682, %v3675
        %v3685 = vmul.f32 %v3682, %v3676
        %v3686 = vmul.f32 %v3682, %v3677
        %v3687 = vsel %vm3678, %v3674, %v3683
        %v3688 = vsel %vm3679, %v3675, %v3684
        %v3689 = vsel %vm3680, %v3676, %v3685
        %v3690 = vsel %vm3681, %v3677, %v3686
        %s3691 = sld [smem:[#allocation2 + $0x102]]
        %v3692 = vld [vmem:[#allocation30] sm:$0xff]
        %v3693 = vld [vmem:[#allocation30 + $0x8] sm:$0xff]
        %v3694 = vld [vmem:[#allocation30 + $0x10] sm:$0xff]
        %v3695 = vld [vmem:[#allocation30 + $0x18] sm:$0xff]
        %v3696 = vld [vmem:[#allocation30 + $0x20] sm:$0xff]
        %v3697 = vld [vmem:[#allocation30 + $0x28] sm:$0xff]
        %v3698 = vld [vmem:[#allocation30 + $0x30] sm:$0xff]
        %v3699 = vld [vmem:[#allocation30 + $0x38] sm:$0xff]
        %v3700 = vld [vmem:[#allocation30 + $0x40] sm:$0xff]
        %v3701 = vld [vmem:[#allocation30 + $0x48] sm:$0xff]
        %v3702 = vld [vmem:[#allocation30 + $0x50] sm:$0xff]
        %v3703 = vld [vmem:[#allocation30 + $0x58] sm:$0xff]
        %v3704 = vld [vmem:[#allocation30 + $0x60] sm:$0xff]
        %v3705 = vld [vmem:[#allocation30 + $0x68] sm:$0xff]
        %v3706 = vld [vmem:[#allocation30 + $0x70] sm:$0xff]
        %v3707 = vld [vmem:[#allocation30 + $0x78] sm:$0xff]
        %v3708 = vld [vmem:[#allocation30 + $0x80] sm:$0xff]
        %v3709 = vld [vmem:[#allocation30 + $0x88] sm:$0xff]
        %v3710 = vld [vmem:[#allocation30 + $0x90] sm:$0xff]
        %v3711 = vld [vmem:[#allocation30 + $0x98] sm:$0xff]
        %v3712 = vld [vmem:[#allocation30 + $0xa0] sm:$0xff]
        %v3713 = vld [vmem:[#allocation30 + $0xa8] sm:$0xff]
        %v3714 = vld [vmem:[#allocation30 + $0xb0] sm:$0xff]
        %v3715 = vld [vmem:[#allocation30 + $0xb8] sm:$0xff]
        %v3716 = vld [vmem:[#allocation30 + $0xc0] sm:$0xff]
        %v3717 = vld [vmem:[#allocation30 + $0xc8] sm:$0xff]
        %v3718 = vld [vmem:[#allocation30 + $0xd0] sm:$0xff]
        %v3719 = vld [vmem:[#allocation30 + $0xd8] sm:$0xff]
        %v3720 = vld [vmem:[#allocation30 + $0xe0] sm:$0xff]
        %v3721 = vld [vmem:[#allocation30 + $0xe8] sm:$0xff]
        %v3722 = vld [vmem:[#allocation30 + $0xf0] sm:$0xff]
        %v3723 = vld [vmem:[#allocation30 + $0xf8] sm:$0xff]
        %v3724 = vld [vmem:[#allocation35] sm:$0xf]
        %v3725 = vld [vmem:[#allocation35 + $0x4] sm:$0xf]
        %v3726 = vld [vmem:[#allocation35 + $0x8] sm:$0xf]
        %v3727 = vld [vmem:[#allocation35 + $0xc] sm:$0xf]
        %v3728 = vld [vmem:[#allocation39] sm:$0xff]
        %v3729 = vld [vmem:[#allocation39 + $0x8] sm:$0xff]
        %v3730 = vld [vmem:[#allocation39 + $0x10] sm:$0xff]
        %v3731 = vld [vmem:[#allocation39 + $0x18] sm:$0xff]
        %v3732 = vld [vmem:[#allocation39 + $0x20] sm:$0xff]
        %v3733 = vld [vmem:[#allocation39 + $0x28] sm:$0xff]
        %v3734 = vld [vmem:[#allocation39 + $0x30] sm:$0xff]
        %v3735 = vld [vmem:[#allocation39 + $0x38] sm:$0xff]
        %v3736 = vpack.c.bf16 %v3689, %v3687
        %v3737 = vpack.c.bf16 %v3690, %v3688
        %v3770 = vunpack.c.l.b16 %v3692
        %v3771 = vunpack.c.h.b16 %v3692
        %v3772 = vunpack.c.l.b16 %v3693
        %v3773 = vunpack.c.h.b16 %v3693
        %v3774 = vunpack.c.l.b16 %v3694
        %v3775 = vunpack.c.h.b16 %v3694
        %v3776 = vunpack.c.l.b16 %v3695
        %v3777 = vunpack.c.h.b16 %v3695
        %v3778 = vunpack.c.l.b16 %v3696
        %v3779 = vunpack.c.h.b16 %v3696
        %v3780 = vunpack.c.l.b16 %v3697
        %v3781 = vunpack.c.h.b16 %v3697
        %v3782 = vunpack.c.l.b16 %v3698
        %v3783 = vunpack.c.h.b16 %v3698
        %v3784 = vunpack.c.l.b16 %v3699
        %v3785 = vunpack.c.h.b16 %v3699
        %v3786 = vunpack.c.l.b16 %v3700
        %v3787 = vunpack.c.h.b16 %v3700
        %v3788 = vunpack.c.l.b16 %v3701
        %v3789 = vunpack.c.h.b16 %v3701
        %v3790 = vunpack.c.l.b16 %v3702
        %v3791 = vunpack.c.h.b16 %v3702
        %v3792 = vunpack.c.l.b16 %v3703
        %v3793 = vunpack.c.h.b16 %v3703
        %v3794 = vunpack.c.l.b16 %v3704
        %v3795 = vunpack.c.h.b16 %v3704
        %v3796 = vunpack.c.l.b16 %v3705
        %v3797 = vunpack.c.h.b16 %v3705
        %v3798 = vunpack.c.l.b16 %v3706
        %v3799 = vunpack.c.h.b16 %v3706
        %v3800 = vunpack.c.l.b16 %v3707
        %v3801 = vunpack.c.h.b16 %v3707
        %v3802 = vunpack.c.l.b16 %v3708
        %v3803 = vunpack.c.h.b16 %v3708
        %v3804 = vunpack.c.l.b16 %v3709
        %v3805 = vunpack.c.h.b16 %v3709
        %v3806 = vunpack.c.l.b16 %v3710
        %v3807 = vunpack.c.h.b16 %v3710
        %v3808 = vunpack.c.l.b16 %v3711
        %v3809 = vunpack.c.h.b16 %v3711
        %v3810 = vunpack.c.l.b16 %v3712
        %v3811 = vunpack.c.h.b16 %v3712
        %v3812 = vunpack.c.l.b16 %v3713
        %v3813 = vunpack.c.h.b16 %v3713
        %v3814 = vunpack.c.l.b16 %v3714
        %v3815 = vunpack.c.h.b16 %v3714
        %v3816 = vunpack.c.l.b16 %v3715
        %v3817 = vunpack.c.h.b16 %v3715
        %v3818 = vunpack.c.l.b16 %v3716
        %v3819 = vunpack.c.h.b16 %v3716
        %v3820 = vunpack.c.l.b16 %v3717
        %v3821 = vunpack.c.h.b16 %v3717
        %v3822 = vunpack.c.l.b16 %v3718
        %v3823 = vunpack.c.h.b16 %v3718
        %v3824 = vunpack.c.l.b16 %v3719
        %v3825 = vunpack.c.h.b16 %v3719
        %v3826 = vunpack.c.l.b16 %v3720
        %v3827 = vunpack.c.h.b16 %v3720
        %v3828 = vunpack.c.l.b16 %v3721
        %v3829 = vunpack.c.h.b16 %v3721
        %v3830 = vunpack.c.l.b16 %v3722
        %v3831 = vunpack.c.h.b16 %v3722
        %v3832 = vunpack.c.l.b16 %v3723
        %v3833 = vunpack.c.h.b16 %v3723
        %v3834 = vpack.c.b16 %v3772, %v3770
        %v3835 = vpack.c.b16 %v3773, %v3771
        %v3836 = vpack.c.b16 %v3776, %v3774
        %v3837 = vpack.c.b16 %v3777, %v3775
        %v3838 = vpack.c.b16 %v3780, %v3778
        %v3839 = vpack.c.b16 %v3781, %v3779
        %v3840 = vpack.c.b16 %v3784, %v3782
        %v3841 = vpack.c.b16 %v3785, %v3783
        %v3842 = vpack.c.b16 %v3788, %v3786
        %v3843 = vpack.c.b16 %v3789, %v3787
        %v3844 = vpack.c.b16 %v3792, %v3790
        %v3845 = vpack.c.b16 %v3793, %v3791
        %v3846 = vpack.c.b16 %v3796, %v3794
        %v3847 = vpack.c.b16 %v3797, %v3795
        %v3848 = vpack.c.b16 %v3800, %v3798
        %v3849 = vpack.c.b16 %v3801, %v3799
        %v3850 = vpack.c.b16 %v3804, %v3802
        %v3851 = vpack.c.b16 %v3805, %v3803
        %v3852 = vpack.c.b16 %v3808, %v3806
        %v3853 = vpack.c.b16 %v3809, %v3807
        %v3854 = vpack.c.b16 %v3812, %v3810
        %v3855 = vpack.c.b16 %v3813, %v3811
        %v3856 = vpack.c.b16 %v3816, %v3814
        %v3857 = vpack.c.b16 %v3817, %v3815
        %v3858 = vpack.c.b16 %v3820, %v3818
        %v3859 = vpack.c.b16 %v3821, %v3819
        %v3860 = vpack.c.b16 %v3824, %v3822
        %v3861 = vpack.c.b16 %v3825, %v3823
        %v3862 = vpack.c.b16 %v3828, %v3826
        %v3863 = vpack.c.b16 %v3829, %v3827
        %v3864 = vpack.c.b16 %v3832, %v3830
        %v3865 = vpack.c.b16 %v3833, %v3831
        %3898 = vmatprep.subr.bf16.mxu0 %v3849
        %3899 = vmatpush1.bf16.msra.mxu0 %v3848
        %3900 = vmatprep.subr.bf16.mxu0 %v3847
        %3901 = vmatpush1.bf16.msra.mxu0 %v3846
        %3902 = vmatprep.subr.bf16.mxu0 %v3845
        %3903 = vmatpush1.bf16.msra.mxu0 %v3844
        %3904 = vmatprep.subr.bf16.mxu0 %v3843
        %3905 = vmatpush1.bf16.msra.mxu0 %v3842
        %3906 = vmatprep.subr.bf16.mxu0 %v3841
        %3907 = vmatpush1.bf16.msra.mxu0 %v3840
        %3908 = vmatprep.subr.bf16.mxu0 %v3839
        %3909 = vmatpush1.bf16.msra.mxu0 %v3838
        %3910 = vmatprep.subr.bf16.mxu0 %v3837
        %3911 = vmatpush1.bf16.msra.mxu0 %v3836
        %3912 = vmatprep.subr.bf16.mxu0 %v3835
        %3913 = vmatpush1.bf16.msra.mxu0 %v3834
        %3914 = vmatprep.subr.bf16.mxu0 %v3865
        %3915 = vmatpush2.bf16.msra.mxu0 %v3864
        %3916 = vmatprep.subr.bf16.mxu0 %v3863
        %3917 = vmatpush2.bf16.msra.mxu0 %v3862
        %3918 = vmatprep.subr.bf16.mxu0 %v3861
        %3919 = vmatpush2.bf16.msra.mxu0 %v3860
        %3920 = vmatprep.subr.bf16.mxu0 %v3859
        %3921 = vmatpush2.bf16.msra.mxu0 %v3858
        %3922 = vmatprep.subr.bf16.mxu0 %v3857
        %3923 = vmatpush2.bf16.msra.mxu0 %v3856
        %3924 = vmatprep.subr.bf16.mxu0 %v3855
        %3925 = vmatpush2.bf16.msra.mxu0 %v3854
        %3926 = vmatprep.subr.bf16.mxu0 %v3853
        %3927 = vmatpush2.bf16.msra.mxu0 %v3852
        %3928 = vmatprep.subr.bf16.mxu0 %v3851
        %3929 = vmatpush2.bf16.msra.mxu0 %v3850
        %3930 = vmatprep.mubr.bf16.mxu0 %v3737
        %3931 = vmatmul.mubr.bf16.gmra.mxu0 %v3736
        %v3932 = vpop.f32.mrf.mxu0
        %v3933 = vadd.f32 0.0, %v3932
        %v3934 = vpop.f32.mrf.mxu0
        %v3935 = vadd.f32 0.0, %v3934
        %v3936 = vpop.f32.mrf.mxu0
        %v3937 = vadd.f32 0.0, %v3936
        %v3938 = vpop.f32.mrf.mxu0
        %v3939 = vadd.f32 0.0, %v3938
        %3940 = vdwg.mxu0
        %v3941 = vpack.c.bf16 %v3937, %v3933
        %v3942 = vpack.c.bf16 %v3939, %v3935
        %v3947 = vunpack.c.l.b16 %v3724
        %v3948 = vunpack.c.l.b16 %v3725
        %v3949 = vunpack.c.l.b16 %v3726
        %v3950 = vunpack.c.l.b16 %v3727
        %v3951 = vpack.c.b16 %v3948, %v3947
        %v3952 = vpack.c.b16 %v3950, %v3949
        %v3954 = vsel %vm1866, %v3951, 0
        %v3957 = vsel %vm1866, %v3952, 0
        %3959 = vmatprep.subr.bf16.mxu0 0
        %3960 = vmatpush1.bf16.msra.mxu0 0
        %3961 = vmatprep.subr.bf16.mxu0 0
        %3962 = vmatpush1.bf16.msra.mxu0 0
        %3963 = vmatprep.subr.bf16.mxu0 0
        %3964 = vmatpush1.bf16.msra.mxu0 0
        %3965 = vmatprep.subr.bf16.mxu0 0
        %3966 = vmatpush1.bf16.msra.mxu0 0
        %3967 = vmatprep.subr.bf16.mxu0 0
        %3968 = vmatpush1.bf16.msra.mxu0 0
        %3969 = vmatprep.subr.bf16.mxu0 0
        %3970 = vmatpush1.bf16.msra.mxu0 0
        %3971 = vmatprep.subr.bf16.mxu0 %v3737
        %3972 = vmatpush1.bf16.msra.mxu0 %v3736
        %3973 = vmatprep.subr.bf16.mxu0 %v3942
        %3974 = vmatpush1.bf16.msra.mxu0 %v3941
        %3975 = vmatprep.subr.bf16.mxu0 0
        %3976 = vmatpush2.bf16.msra.mxu0 0
        %3977 = vmatprep.subr.bf16.mxu0 0
        %3978 = vmatpush2.bf16.msra.mxu0 0
        %3979 = vmatprep.subr.bf16.mxu0 0
        %3980 = vmatpush2.bf16.msra.mxu0 0
        %3981 = vmatprep.subr.bf16.mxu0 0
        %3982 = vmatpush2.bf16.msra.mxu0 0
        %3983 = vmatprep.subr.bf16.mxu0 0
        %3984 = vmatpush2.bf16.msra.mxu0 0
        %3985 = vmatprep.subr.bf16.mxu0 0
        %3986 = vmatpush2.bf16.msra.mxu0 0
        %3987 = vmatprep.subr.bf16.mxu0 0
        %3988 = vmatpush2.bf16.msra.mxu0 0
        %3989 = vmatprep.subr.bf16.mxu0 0
        %3990 = vmatpush2.bf16.msra.mxu0 0
        %3991 = vmatprep.mubr.bf16.mxu0 0
        %3992 = vmatmul.mubr.bf16.gmra.mxu0 %v3954
        %v3993 = vpop.f32.mrf.mxu0
        %v3994 = vadd.f32 %v3728, %v3993
        %v3995 = vpop.f32.mrf.mxu0
        %v3996 = vadd.f32 %v3729, %v3995
        %v3997 = vpop.f32.mrf.mxu0
        %v3998 = vadd.f32 %v3730, %v3997
        %v3999 = vpop.f32.mrf.mxu0
        %v4000 = vadd.f32 %v3731, %v3999
        %4001 = vmatprep.mubr.bf16.mxu0 0
        %4002 = vmatmul.mubr.bf16.gmra.mxu0 %v3957
        %v4003 = vpop.f32.mrf.mxu0
        %v4004 = vadd.f32 %v3732, %v4003
        %v4005 = vpop.f32.mrf.mxu0
        %v4006 = vadd.f32 %v3733, %v4005
        %v4007 = vpop.f32.mrf.mxu0
        %v4008 = vadd.f32 %v3734, %v4007
        %v4009 = vpop.f32.mrf.mxu0
        %v4010 = vadd.f32 %v3735, %v4009
        %4011 = vdwg.mxu0
        %vm4012 = vcmp.ge.f32.partialorder %v3994, 0.0
        %vm4013 = vcmp.ge.f32.partialorder %v3996, 0.0
        %vm4014 = vcmp.ge.f32.partialorder %v3998, 0.0
        %vm4015 = vcmp.ge.f32.partialorder %v4000, 0.0
        %vm4016 = vcmp.ge.f32.partialorder %v4004, 0.0
        %vm4017 = vcmp.ge.f32.partialorder %v4006, 0.0
        %vm4018 = vcmp.ge.f32.partialorder %v4008, 0.0
        %vm4019 = vcmp.ge.f32.partialorder %v4010, 0.0
        %v4020 = vstv %s3691
        %v4021 = vmul.f32 %v4020, %v3994
        %v4022 = vmul.f32 %v4020, %v3996
        %v4023 = vmul.f32 %v4020, %v3998
        %v4024 = vmul.f32 %v4020, %v4000
        %v4025 = vmul.f32 %v4020, %v4004
        %v4026 = vmul.f32 %v4020, %v4006
        %v4027 = vmul.f32 %v4020, %v4008
        %v4028 = vmul.f32 %v4020, %v4010
        %v4029 = vsel %vm4012, %v3994, %v4021
        %v4030 = vsel %vm4013, %v3996, %v4022
        %v4031 = vsel %vm4014, %v3998, %v4023
        %v4032 = vsel %vm4015, %v4000, %v4024
        %v4033 = vsel %vm4016, %v4004, %v4025
        %v4034 = vsel %vm4017, %v4006, %v4026
        %v4035 = vsel %vm4018, %v4008, %v4027
        %v4036 = vsel %vm4019, %v4010, %v4028
        %s4037 = sld [smem:[#allocation2 + $0x103]]
        %v4038 = vld [vmem:[#allocation32] sm:$0xff]
        %v4039 = vld [vmem:[#allocation32 + $0x8] sm:$0xff]
        %v4040 = vld [vmem:[#allocation32 + $0x10] sm:$0xff]
        %v4041 = vld [vmem:[#allocation32 + $0x18] sm:$0xff]
        %v4042 = vld [vmem:[#allocation32 + $0x20] sm:$0xff]
        %v4043 = vld [vmem:[#allocation32 + $0x28] sm:$0xff]
        %v4044 = vld [vmem:[#allocation32 + $0x30] sm:$0xff]
        %v4045 = vld [vmem:[#allocation32 + $0x38] sm:$0xff]
        %v4046 = vld [vmem:[#allocation32 + $0x40] sm:$0xff]
        %v4047 = vld [vmem:[#allocation32 + $0x48] sm:$0xff]
        %v4048 = vld [vmem:[#allocation32 + $0x50] sm:$0xff]
        %v4049 = vld [vmem:[#allocation32 + $0x58] sm:$0xff]
        %v4050 = vld [vmem:[#allocation32 + $0x60] sm:$0xff]
        %v4051 = vld [vmem:[#allocation32 + $0x68] sm:$0xff]
        %v4052 = vld [vmem:[#allocation32 + $0x70] sm:$0xff]
        %v4053 = vld [vmem:[#allocation32 + $0x78] sm:$0xff]
        %v4054 = vld [vmem:[#allocation32 + $0x80] sm:$0xff]
        %v4055 = vld [vmem:[#allocation32 + $0x88] sm:$0xff]
        %v4056 = vld [vmem:[#allocation32 + $0x90] sm:$0xff]
        %v4057 = vld [vmem:[#allocation32 + $0x98] sm:$0xff]
        %v4058 = vld [vmem:[#allocation32 + $0xa0] sm:$0xff]
        %v4059 = vld [vmem:[#allocation32 + $0xa8] sm:$0xff]
        %v4060 = vld [vmem:[#allocation32 + $0xb0] sm:$0xff]
        %v4061 = vld [vmem:[#allocation32 + $0xb8] sm:$0xff]
        %v4062 = vld [vmem:[#allocation32 + $0xc0] sm:$0xff]
        %v4063 = vld [vmem:[#allocation32 + $0xc8] sm:$0xff]
        %v4064 = vld [vmem:[#allocation32 + $0xd0] sm:$0xff]
        %v4065 = vld [vmem:[#allocation32 + $0xd8] sm:$0xff]
        %v4066 = vld [vmem:[#allocation32 + $0xe0] sm:$0xff]
        %v4067 = vld [vmem:[#allocation32 + $0xe8] sm:$0xff]
        %v4068 = vld [vmem:[#allocation32 + $0xf0] sm:$0xff]
        %v4069 = vld [vmem:[#allocation32 + $0xf8] sm:$0xff]
        %v4070 = vld [vmem:[#allocation36] sm:$0xf]
        %v4071 = vld [vmem:[#allocation36 + $0x4] sm:$0xf]
        %v4072 = vld [vmem:[#allocation36 + $0x8] sm:$0x1]
        %v4073 = vld [vmem:[#allocation41] sm:$0xff]
        %v4074 = vld [vmem:[#allocation41 + $0x8] sm:$0xff]
        %v4075 = vld [vmem:[#allocation41 + $0x10] sm:$0x1]
        %v4076 = vld [vmem:[#allocation41 + $0x18] sm:$0x1]
        %v4077 = vpack.c.bf16 %v4031, %v4029
        %v4078 = vpack.c.bf16 %v4032, %v4030
        %v4079 = vpack.c.bf16 %v4035, %v4033
        %v4080 = vpack.c.bf16 %v4036, %v4034
        %v4084 = vunpack.c.l.b16 %v4070
        %v4085 = vunpack.c.l.b16 %v4071
        %v4086 = vunpack.c.l.b16 %v4072
        %v4087 = vpack.c.b16 %v4085, %v4084
        %v4088 = vpack.c.b16 %v4086, %v4086
        %v4090 = vsel %vm1866, %v4087, 0
        %v4093 = vsel %vm1866, %v4088, 0
        %4095 = vmatprep.subr.bf16.mxu0 0
        %4096 = vmatpush1.bf16.msra.mxu0 0
        %4097 = vmatprep.subr.bf16.mxu0 0
        %4098 = vmatpush1.bf16.msra.mxu0 0
        %4099 = vmatprep.subr.bf16.mxu0 0
        %4100 = vmatpush1.bf16.msra.mxu0 0
        %4101 = vmatprep.subr.bf16.mxu0 0
        %4102 = vmatpush1.bf16.msra.mxu0 0
        %4103 = vmatprep.subr.bf16.mxu0 0
        %4104 = vmatpush1.bf16.msra.mxu0 0
        %4105 = vmatprep.subr.bf16.mxu0 0
        %4106 = vmatpush1.bf16.msra.mxu0 0
        %4107 = vmatprep.subr.bf16.mxu0 %v4080
        %4108 = vmatpush1.bf16.msra.mxu0 %v4079
        %4109 = vmatprep.subr.bf16.mxu0 %v4078
        %4110 = vmatpush1.bf16.msra.mxu0 %v4077
        %4111 = vmatprep.subr.bf16.mxu0 0
        %4112 = vmatpush2.bf16.msra.mxu0 0
        %4113 = vmatprep.subr.bf16.mxu0 0
        %4114 = vmatpush2.bf16.msra.mxu0 0
        %4115 = vmatprep.subr.bf16.mxu0 0
        %4116 = vmatpush2.bf16.msra.mxu0 0
        %4117 = vmatprep.subr.bf16.mxu0 0
        %4118 = vmatpush2.bf16.msra.mxu0 0
        %4119 = vmatprep.subr.bf16.mxu0 0
        %4120 = vmatpush2.bf16.msra.mxu0 0
        %4121 = vmatprep.subr.bf16.mxu0 0
        %4122 = vmatpush2.bf16.msra.mxu0 0
        %4123 = vmatprep.subr.bf16.mxu0 0
        %4124 = vmatpush2.bf16.msra.mxu0 0
        %4125 = vmatprep.subr.bf16.mxu0 0
        %4126 = vmatpush2.bf16.msra.mxu0 0
        %4127 = vmatprep.mubr.bf16.mxu0 0
        %4128 = vmatmul.mubr.bf16.gmra.mxu0 %v4090
        %v4129 = vpop.f32.mrf.mxu0
        %v4130 = vadd.f32 0.0, %v4129
        %v4131 = vpop.f32.mrf.mxu0
        %v4132 = vadd.f32 0.0, %v4131
        %v4133 = vpop.f32.mrf.mxu0
        %v4134 = vadd.f32 0.0, %v4133
        %v4135 = vpop.f32.mrf.mxu0
        %v4136 = vadd.f32 0.0, %v4135
        %4137 = vmatprep.mubr.bf16.mxu0 0
        %4138 = vmatmul.mubr.bf16.gmra.mxu0 %v4093
        %v4139 = vpop.f32.mrf.mxu0
        %v4140 = vadd.f32 0.0, %v4139
        %v4141 = vpop.f32.mrf.mxu0
        %v4142 = vadd.f32 0.0, %v4141
        %v4143 = vpop.f32.mrf.mxu0
        %v4144 = vpop.f32.mrf.mxu0
        %4145 = vdwg.mxu0
        %v4146 = vpack.c.bf16 %v4134, %v4130
        %v4147 = vpack.c.bf16 %v4136, %v4132
        %v4180 = vunpack.c.l.b16 %v4038
        %v4181 = vunpack.c.h.b16 %v4038
        %v4182 = vunpack.c.l.b16 %v4039
        %v4183 = vunpack.c.h.b16 %v4039
        %v4184 = vunpack.c.l.b16 %v4040
        %v4185 = vunpack.c.h.b16 %v4040
        %v4186 = vunpack.c.l.b16 %v4041
        %v4187 = vunpack.c.h.b16 %v4041
        %v4188 = vunpack.c.l.b16 %v4042
        %v4189 = vunpack.c.h.b16 %v4042
        %v4190 = vunpack.c.l.b16 %v4043
        %v4191 = vunpack.c.h.b16 %v4043
        %v4192 = vunpack.c.l.b16 %v4044
        %v4193 = vunpack.c.h.b16 %v4044
        %v4194 = vunpack.c.l.b16 %v4045
        %v4195 = vunpack.c.h.b16 %v4045
        %v4196 = vunpack.c.l.b16 %v4046
        %v4197 = vunpack.c.h.b16 %v4046
        %v4198 = vunpack.c.l.b16 %v4047
        %v4199 = vunpack.c.h.b16 %v4047
        %v4200 = vunpack.c.l.b16 %v4048
        %v4201 = vunpack.c.h.b16 %v4048
        %v4202 = vunpack.c.l.b16 %v4049
        %v4203 = vunpack.c.h.b16 %v4049
        %v4204 = vunpack.c.l.b16 %v4050
        %v4205 = vunpack.c.h.b16 %v4050
        %v4206 = vunpack.c.l.b16 %v4051
        %v4207 = vunpack.c.h.b16 %v4051
        %v4208 = vunpack.c.l.b16 %v4052
        %v4209 = vunpack.c.h.b16 %v4052
        %v4210 = vunpack.c.l.b16 %v4053
        %v4211 = vunpack.c.h.b16 %v4053
        %v4212 = vunpack.c.l.b16 %v4054
        %v4213 = vunpack.c.h.b16 %v4054
        %v4214 = vunpack.c.l.b16 %v4055
        %v4215 = vunpack.c.h.b16 %v4055
        %v4216 = vunpack.c.l.b16 %v4056
        %v4217 = vunpack.c.h.b16 %v4056
        %v4218 = vunpack.c.l.b16 %v4057
        %v4219 = vunpack.c.h.b16 %v4057
        %v4220 = vunpack.c.l.b16 %v4058
        %v4221 = vunpack.c.h.b16 %v4058
        %v4222 = vunpack.c.l.b16 %v4059
        %v4223 = vunpack.c.h.b16 %v4059
        %v4224 = vunpack.c.l.b16 %v4060
        %v4225 = vunpack.c.h.b16 %v4060
        %v4226 = vunpack.c.l.b16 %v4061
        %v4227 = vunpack.c.h.b16 %v4061
        %v4228 = vunpack.c.l.b16 %v4062
        %v4229 = vunpack.c.h.b16 %v4062
        %v4230 = vunpack.c.l.b16 %v4063
        %v4231 = vunpack.c.h.b16 %v4063
        %v4232 = vunpack.c.l.b16 %v4064
        %v4233 = vunpack.c.h.b16 %v4064
        %v4234 = vunpack.c.l.b16 %v4065
        %v4235 = vunpack.c.h.b16 %v4065
        %v4236 = vunpack.c.l.b16 %v4066
        %v4237 = vunpack.c.h.b16 %v4066
        %v4238 = vunpack.c.l.b16 %v4067
        %v4239 = vunpack.c.h.b16 %v4067
        %v4240 = vunpack.c.l.b16 %v4068
        %v4241 = vunpack.c.h.b16 %v4068
        %v4242 = vunpack.c.l.b16 %v4069
        %v4243 = vunpack.c.h.b16 %v4069
        %v4244 = vpack.c.b16 %v4182, %v4180
        %v4245 = vpack.c.b16 %v4183, %v4181
        %v4246 = vpack.c.b16 %v4186, %v4184
        %v4247 = vpack.c.b16 %v4187, %v4185
        %v4248 = vpack.c.b16 %v4190, %v4188
        %v4249 = vpack.c.b16 %v4191, %v4189
        %v4250 = vpack.c.b16 %v4194, %v4192
        %v4251 = vpack.c.b16 %v4195, %v4193
        %v4252 = vpack.c.b16 %v4198, %v4196
        %v4253 = vpack.c.b16 %v4199, %v4197
        %v4254 = vpack.c.b16 %v4202, %v4200
        %v4255 = vpack.c.b16 %v4203, %v4201
        %v4256 = vpack.c.b16 %v4206, %v4204
        %v4257 = vpack.c.b16 %v4207, %v4205
        %v4258 = vpack.c.b16 %v4210, %v4208
        %v4259 = vpack.c.b16 %v4211, %v4209
        %v4260 = vpack.c.b16 %v4214, %v4212
        %v4261 = vpack.c.b16 %v4215, %v4213
        %v4262 = vpack.c.b16 %v4218, %v4216
        %v4263 = vpack.c.b16 %v4219, %v4217
        %v4264 = vpack.c.b16 %v4222, %v4220
        %v4265 = vpack.c.b16 %v4223, %v4221
        %v4266 = vpack.c.b16 %v4226, %v4224
        %v4267 = vpack.c.b16 %v4227, %v4225
        %v4268 = vpack.c.b16 %v4230, %v4228
        %v4269 = vpack.c.b16 %v4231, %v4229
        %v4270 = vpack.c.b16 %v4234, %v4232
        %v4271 = vpack.c.b16 %v4235, %v4233
        %v4272 = vpack.c.b16 %v4238, %v4236
        %v4273 = vpack.c.b16 %v4239, %v4237
        %v4274 = vpack.c.b16 %v4242, %v4240
        %v4275 = vpack.c.b16 %v4243, %v4241
        %v4312 = vrot.slane %v4134, 1
        %v4313 = vrot.slane %v4140, 1
        %v4314 = vsel %vm2352, %v4312, %v4313
        %v4315 = vrot.slane %v4136, 1
        %v4316 = vrot.slane %v4142, 1
        %v4317 = vsel %vm2352, %v4315, %v4316
        %4322 = vmatprep.subr.bf16.mxu0 %v4259
        %4323 = vmatpush1.bf16.msra.mxu0 %v4258
        %4324 = vmatprep.subr.bf16.mxu0 %v4257
        %4325 = vmatpush1.bf16.msra.mxu0 %v4256
        %4326 = vmatprep.subr.bf16.mxu0 %v4255
        %4327 = vmatpush1.bf16.msra.mxu0 %v4254
        %4328 = vmatprep.subr.bf16.mxu0 %v4253
        %4329 = vmatpush1.bf16.msra.mxu0 %v4252
        %4330 = vmatprep.subr.bf16.mxu0 %v4251
        %4331 = vmatpush1.bf16.msra.mxu0 %v4250
        %4332 = vmatprep.subr.bf16.mxu0 %v4249
        %4333 = vmatpush1.bf16.msra.mxu0 %v4248
        %4334 = vmatprep.subr.bf16.mxu0 %v4247
        %4335 = vmatpush1.bf16.msra.mxu0 %v4246
        %4336 = vmatprep.subr.bf16.mxu0 %v4245
        %4337 = vmatpush1.bf16.msra.mxu0 %v4244
        %4338 = vmatprep.subr.bf16.mxu0 %v4275
        %4339 = vmatpush2.bf16.msra.mxu0 %v4274
        %4340 = vmatprep.subr.bf16.mxu0 %v4273
        %4341 = vmatpush2.bf16.msra.mxu0 %v4272
        %4342 = vmatprep.subr.bf16.mxu0 %v4271
        %4343 = vmatpush2.bf16.msra.mxu0 %v4270
        %4344 = vmatprep.subr.bf16.mxu0 %v4269
        %4345 = vmatpush2.bf16.msra.mxu0 %v4268
        %4346 = vmatprep.subr.bf16.mxu0 %v4267
        %4347 = vmatpush2.bf16.msra.mxu0 %v4266
        %4348 = vmatprep.subr.bf16.mxu0 %v4265
        %4349 = vmatpush2.bf16.msra.mxu0 %v4264
        %4350 = vmatprep.subr.bf16.mxu0 %v4263
        %4351 = vmatpush2.bf16.msra.mxu0 %v4262
        %4352 = vmatprep.subr.bf16.mxu0 %v4261
        %4353 = vmatpush2.bf16.msra.mxu0 %v4260
        %4354 = vmatprep.mubr.bf16.mxu0 %v4147
        %4355 = vmatmul.mubr.bf16.gmra.mxu0 %v4146
        %v4356 = vpop.f32.mrf.mxu0
        %v4357 = vadd.f32 %v4314, %v4356
        %v4358 = vpop.f32.mrf.mxu0
        %v4359 = vadd.f32 %v4317, %v4358
        %v4360 = vpop.f32.mrf.mxu0
        %v4361 = vadd.f32 %v4313, %v4360
        %v4362 = vpop.f32.mrf.mxu0
        %v4363 = vadd.f32 %v4316, %v4362
        %4364 = vdwg.mxu0
        %v4365 = vadd.f32 %v4357, %v4073
        %v4366 = vadd.f32 %v4359, %v4074
        %v4367 = vadd.f32 %v4361, %v4075
        %v4368 = vadd.f32 %v4363, %v4076
        %vm4369 = vcmp.ge.f32.partialorder %v4365, 0.0
        %vm4370 = vcmp.ge.f32.partialorder %v4366, 0.0
        %vm4371 = vcmp.ge.f32.partialorder %v4367, 0.0
        %vm4372 = vcmp.ge.f32.partialorder %v4368, 0.0
        %v4373 = vstv %s4037
        %v4374 = vmul.f32 %v4373, %v4365
        %v4375 = vmul.f32 %v4373, %v4366
        %v4376 = vmul.f32 %v4373, %v4367
        %v4377 = vmul.f32 %v4373, %v4368
        %v4378 = vsel %vm4369, %v4365, %v4374
        %v4379 = vsel %vm4370, %v4366, %v4375
        %v4380 = vsel %vm4371, %v4367, %v4376
        %v4381 = vsel %vm4372, %v4368, %v4377
        %v4382 = vadd.f32 %v2981, %v4378
        %v4383 = vadd.f32 %v2983, %v4379
        %v4384 = vadd.f32 %v2982, %v4380
        %v4385 = vadd.f32 %v2984, %v4381
        %4386 = vst [vmem:[%s1619] sm:$0xff] %v4382
        %4387 = vst [vmem:[%s1619 + $0x8] sm:$0xff] %v4383
        %4388 = vst [vmem:[%s1619 + $0x10] sm:$0x1] %v4384
        %4389 = vst [vmem:[%s1619 + $0x18] sm:$0x1] %v4385
        %p4390 = scmp.lt.s32.totalorder %s106, 1
        %s4391 = scalar_select %p4390, %s106, 1
        %s4392 = smul.addr %s4391, 4
        %s4393 = smul.addr %s4392, 8
        %s4394 = scalar_lea.vmem %s81, %s4393
        // Predicated region
        $region285: #{tpu_custom_call.1} parent=179 // pred_check
          %p4395 = pneg %p979
        $region286: #{tpu_custom_call.1} parent=179 // pred_check_branch
          %4397 = sbr.rel (%p4395) target = $region288
        $region287: #{tpu_custom_call.1} parent=179 // pred_region
          _
        $region288: #{tpu_custom_call.1} parent=179 // pred_fallthru
          _
      $region180: #{tpu_custom_call.1} parent=5 // pred_fallthru
        _
      %p4398 = scmp.le.s32.totalorder 2, %s101
      // Predicated region
      $region289: #{tpu_custom_call.1} parent=5 // pred_check
        %p4399 = pneg %p4398
      $region290: #{tpu_custom_call.1} parent=5 // pred_check_branch
        %4401 = sbr.rel (%p4399) target = $region292
      $region291: #{tpu_custom_call.1} parent=5 // pred_region
        %s4402 = ssub.s32 %s101, 2
        // Predicated region
        $region293: #{tpu_custom_call.1} parent=291 // pred_check
          %p4403 = pneg %p985
        $region294: #{tpu_custom_call.1} parent=291 // pred_check_branch
          %4405 = sbr.rel (%p4403) target = $region296
        $region295: #{tpu_custom_call.1} parent=291 // pred_region
          %p4406 = scmp.lt.s32.totalorder %s107, 1
          %s4407 = scalar_select %p4406, %s107, 1
          %s4408 = smul.addr %s4407, 4
          %s4409 = smul.addr %s4408, 8
          %s4410 = scalar_lea.vmem %s81, %s4409
        $region296: #{tpu_custom_call.1} parent=291 // pred_fallthru
          _
      $region292: #{tpu_custom_call.1} parent=5 // pred_fallthru
        _
    $region6: #{tpu_custom_call.1} parent=1 // loop_footer
      %s105 = sadd.s32 1, %s101
    $region7: #{tpu_custom_call.1} parent=1 // loop_footer_branch
      %100 = sbr.rel target = $region3
    $region8: #{tpu_custom_call.1} parent=1 // loop_exit
      _
    %4411 = vsyncpa [#allocation3], 1
    %s4412 = scalar_lea.sflag [#allocation3], 1
    %4413 = vsyncpa %s4412, 1
    %4414 = vsyncpa [#allocation7], 1
    %4415 = vsyncpa [#allocation10], 1
    %4416 = vsyncpa [#allocation13], 1
    %4417 = vsyncpa [#allocation16], 1
    %4418 = vsyncpa [#allocation19], 1
    %4419 = vsyncpa [#allocation22], 1
    %4420 = vsyncpa [#allocation25], 1
    %4421 = vsyncpa [#allocation28], 1
    %4422 = vsyncpa [#allocation31], 1
    %4423 = vsyncpa [#allocation34], 1
    %4424 = vsyncpa [#allocation37], 1
    %4425 = vsyncpa [#allocation40], 1
    %4426 = vsyncpa [#allocation4], 1
    %s4427 = scalar_lea.sflag [#allocation4], 1
    %4428 = vsyncpa %s4427, 1

</llo_original>
